<compile_context>
chip_gen: v7x
topology: tpu7x:2x2x1
jax: 0.10.0
libtpu: 0.0.40
codegen_flags: <defaults>
</compile_context>

<pallas_src>
import math

import jax
import jax.numpy as jnp
from jax.experimental import pallas as pl
from jax.experimental.pallas import tpu as pltpu


# -----------------------------------------------------------------------------
# Problem sizes (MiniGrid-style observation: C x 7 x 7, discrete action space)
# -----------------------------------------------------------------------------
B = 2            # batch
C_IN = 3         # n_input_channels = env.observation_space.shape[0]
H = W = 7        # spatial size
N_ACTIONS = 7    # env.action_space.n
STD_INIT = 1.0   # NoisyQNetMiniGrid default

H1, W1 = H - 1, W - 1          # after conv1 (2x2, stride 1, valid) -> 6x6
H2, W2 = H - 2, W - 2          # after conv2                         -> 5x5
H3, W3 = H - 3, W - 3          # after conv3                         -> 4x4
N_FLAT = 64 * H3 * W3          # n_flatten (= 1024 for 7x7 input)
HID = 128
CPAD = 128                     # lane-padded channel width used throughout
NPATCH1 = B * H1 * W1          # 72 rows of conv1 im2col patches (multiple of 8)
NFLAT_PAD = H3 * W3 * CPAD     # 2048: zero-channel-padded flatten width

# Row offsets of the individual weights inside the packed weight slab.
_W1_OFF = 0                    # (128, 128)
_W2_OFF = _W1_OFF + CPAD       # (512, 128)
_W3_OFF = _W2_OFF + 4 * CPAD   # (512, 128)
_WF2_OFF = _W3_OFF + 4 * CPAD  # (128, 128)
_WPACK_ROWS = _WF2_OFF + CPAD  # 1280


# -----------------------------------------------------------------------------
# Fused Pallas kernel: conv stack + flatten + noisy head, one invocation
# -----------------------------------------------------------------------------
def fused_qnet_kernel(p1_ref, w_ref, b_ref, fc1w_hbm, o_ref, fc1w_vmem, sem):
    """Whole forward pass; no grid.

    p1_ref   : (72, 128)   bf16  conv1 im2col patches (cols: tap*C_IN+c, zero-padded)
    w_ref    : (1280, 128) bf16  packed [w1 | w2 | w3 | fc2] weight slab
    b_ref    : (8, 128)    f32   rows 0..4 = b1, b2, b3, fc1_b, fc2_b (zero-padded)
    fc1w_hbm : (2048, 128) bf16  fc1 weight, left in HBM; DMA'd manually
    o_ref    : (B, 128)    f32   lane-dense Q output; wrapper slices [:, :N_ACTIONS]
    fc1w_vmem: (2048, 128) bf16  VMEM landing buffer for fc1 weight
    sem      : DMA semaphore
    """
    # Start the fc1 weight DMA immediately so it overlaps the conv-stack compute.
    fc1_cp = pltpu.make_async_copy(fc1w_hbm, fc1w_vmem, sem)
    fc1_cp.start()

    bias = b_ref[...]                                        # (8, 128) f32

    # --- conv1: patches prebuilt in glue -> one (72,128) x (128,128) matmul ---
    w1 = w_ref[pl.ds(_W1_OFF, CPAD), :]
    y1 = jnp.dot(p1_ref[...], w1, preferred_element_type=jnp.float32)
    y1 = jnp.maximum(y1 + bias[0:1, :], 0.0).reshape(B, H1, W1, CPAD)

    def conv2x2_relu(x4, w, brow, hout, wout):
        # im2col: 4 shifted static slices concatenated along the lane-aligned
        # channel axis -> one (B*hout*wout, 4*CPAD) x (4*CPAD, CPAD) MXU matmul.
        patches = jnp.concatenate(
            [x4[:, kh:kh + hout, kw:kw + wout, :]
             for kh in range(2) for kw in range(2)], axis=-1)
        p2d = patches.reshape(B * hout * wout, 4 * CPAD).astype(jnp.bfloat16)
        y = jnp.dot(p2d, w, preferred_element_type=jnp.float32)
        y = jnp.maximum(y + brow, 0.0)                       # bias + ReLU in f32
        return y.reshape(B, hout, wout, CPAD)

    w2 = w_ref[pl.ds(_W2_OFF, 4 * CPAD), :]
    w3 = w_ref[pl.ds(_W3_OFF, 4 * CPAD), :]
    wf2 = w_ref[pl.ds(_WF2_OFF, CPAD), :]

    y2 = conv2x2_relu(y1, w2, bias[1:2, :], H2, W2)          # (B, 5, 5, 128)
    y3 = conv2x2_relu(y2, w3, bias[2:3, :], H3, W3)          # (B, 4, 4, 128)

    # Lane-dense flatten kept entirely in VMEM (feature idx = (h*W3+w)*CPAD + c).
    feats = y3.reshape(B, NFLAT_PAD).astype(jnp.bfloat16)    # (B, 2048)

    # --- noisy head ---
    fc1_cp.wait()                                            # fc1 weight landed
    h = jnp.dot(feats, fc1w_vmem[...], preferred_element_type=jnp.float32)
    h = jnp.maximum(h + bias[3:4, :], 0.0).astype(jnp.bfloat16)   # (B, HID)
    q = jnp.dot(h, wf2, preferred_element_type=jnp.float32)
    o_ref[...] = (q + bias[4:5, :]).astype(o_ref.dtype)      # (B, 128) lane-dense


# -----------------------------------------------------------------------------
# Deterministic parameter construction (synthetic, mirrors PyTorch __init__)
# -----------------------------------------------------------------------------
def _conv_weights(key, cin, cout):
    k1, k2 = jax.random.split(key)
    bound = 1.0 / math.sqrt(cin * 2 * 2)
    w_oihw = jax.random.uniform(k1, (cout, cin, 2, 2), jnp.float32,
                                minval=-bound, maxval=bound)
    b = jax.random.uniform(k2, (cout,), jnp.float32, minval=-bound, maxval=bound)
    # (kh, kw, c_in, c_out): row ordering = (kh*2+kw)*cin + c_in
    w_hwio = jnp.transpose(w_oihw, (2, 3, 1, 0)).reshape(4, cin, cout)
    return w_hwio, b


def make_noisy_linear(key, in_f, out_f, std_init):
    """Effective training-mode weight (out,in) and bias (out,)."""
    k1, k2, k3, k4 = jax.random.split(key, 4)
    mu_range = 1.0 / math.sqrt(in_f)
    w_mu = jax.random.uniform(k1, (out_f, in_f), jnp.float32,
                              minval=-mu_range, maxval=mu_range)
    b_mu = jax.random.uniform(k2, (out_f,), jnp.float32,
                              minval=-mu_range, maxval=mu_range)
    w_sigma = jnp.full((out_f, in_f), std_init / math.sqrt(in_f), jnp.float32)
    b_sigma = jnp.full((out_f,), std_init / math.sqrt(out_f), jnp.float32)

    def scale_noise(x):
        return jnp.sign(x) * jnp.sqrt(jnp.abs(x))

    eps_in = scale_noise(jax.random.normal(k3, (in_f,), jnp.float32))
    eps_out = scale_noise(jax.random.normal(k4, (out_f,), jnp.float32))
    weight = w_mu + w_sigma * jnp.outer(eps_out, eps_in)
    bias = b_mu + b_sigma * eps_out
    return weight, bias


def make_params(key):
    kc1, kc2, kc3, kf1, kf2 = jax.random.split(key, 5)

    # conv1: compact packing (rows = tap*C_IN + c_in, padded to 128) -> (128,128)
    w1_hwio, b1 = _conv_weights(kc1, C_IN, 16)
    w1_packed = (jnp.zeros((CPAD, CPAD), jnp.float32)
                 .at[:4 * C_IN, :16].set(w1_hwio.reshape(4 * C_IN, 16)))

    # conv2/conv3: lane-padded im2col packing (rows = tap*CPAD + c_in) -> (512,128)
    def pack_wide(w_hwio, cin, cout):
        return (jnp.zeros((4, CPAD, CPAD), jnp.float32)
                .at[:, :cin, :cout].set(w_hwio)
                .reshape(4 * CPAD, CPAD))

    w2_hwio, b2 = _conv_weights(kc2, 16, 32)
    w3_hwio, b3 = _conv_weights(kc3, 32, 64)
    w2_packed = pack_wide(w2_hwio, 16, 32)
    w3_packed = pack_wide(w3_hwio, 32, 64)

    # NoisyLinear weights in PyTorch (out, in) convention; fc1 in-index = c*H3*W3 + h*W3 + w
    fc1_w, fc1_b = make_noisy_linear(kf1, N_FLAT, HID, STD_INIT)
    fc2_w, fc2_b = make_noisy_linear(kf2, HID, N_ACTIONS, STD_INIT)

    # Permute + pad fc1 so it consumes the kernel's (h, w, c_pad)-ordered flatten
    # (feature index = (h*W3 + w)*CPAD + c) while matching NCHW flatten exactly.
    fc1_w_hwc = fc1_w.reshape(HID, 64, H3, W3).transpose(2, 3, 1, 0)  # (H3,W3,64,HID)
    fc1_w_packed = (jnp.zeros((H3, W3, CPAD, HID), jnp.float32)
                    .at[:, :, :64, :].set(fc1_w_hwc)
                    .reshape(NFLAT_PAD, HID))

    # fc2: transpose to (HID, N_ACTIONS), zero-pad output lanes to 128.
    fc2_w_packed = (jnp.zeros((HID, CPAD), jnp.float32)
                    .at[:, :N_ACTIONS].set(fc2_w.T))

    # Single packed bf16 weight slab for everything except fc1 (overlapped DMA).
    wpack = jnp.concatenate(
        [w1_packed, w2_packed, w3_packed, fc2_w_packed], axis=0
    ).astype(jnp.bfloat16)                                   # (1280, 128)
    assert wpack.shape == (_WPACK_ROWS, CPAD)

    # Single packed f32 bias slab: rows b1, b2, b3, fc1_b, fc2_b (+3 zero rows).
    bpack = jnp.zeros((8, CPAD), jnp.float32)
    bpack = bpack.at[0, :16].set(b1)
    bpack = bpack.at[1, :32].set(b2)
    bpack = bpack.at[2, :64].set(b3)
    bpack = bpack.at[3, :HID].set(fc1_b)
    bpack = bpack.at[4, :N_ACTIONS].set(fc2_b)

    return dict(wpack=wpack, bpack=bpack,
                fc1_w=fc1_w_packed.astype(jnp.bfloat16))     # (2048, 128) bf16


# -----------------------------------------------------------------------------
# Wrapper: one gridless pallas_call, whole-array VMEM residency (< 1.5 MiB)
# -----------------------------------------------------------------------------
_VMEM_SPEC = pl.BlockSpec(memory_space=pltpu.MemorySpace.VMEM)
_ANY_SPEC = pl.BlockSpec(memory_space=pl.ANY)


@jax.jit
def noisy_qnet_forward(x_nchw, params):
    # Build conv1's im2col patch matrix directly from the NCHW input: this folds
    # the old transpose+pad relayout and conv1's patch extraction into one tiny
    # fused XLA op feeding the Pallas call (columns: tap*C_IN + c_in, padded).
    x = x_nchw.astype(jnp.float32)
    taps = [x[:, :, kh:kh + H1, kw:kw + W1]
            for kh in range(2) for kw in range(2)]           # each (B, C_IN, 6, 6)
    p = jnp.stack(taps, axis=1)                              # (B, 4, C_IN, 6, 6)
    p = p.transpose(0, 3, 4, 1, 2).reshape(NPATCH1, 4 * C_IN)
    p1 = (jnp.zeros((NPATCH1, CPAD), jnp.bfloat16)
          .at[:, :4 * C_IN].set(p.astype(jnp.bfloat16)))     # (72, 128) bf16

    q_pad = pl.pallas_call(
        fused_qnet_kernel,
        out_shape=jax.ShapeDtypeStruct((B, CPAD), jnp.float32),
        in_specs=[_VMEM_SPEC, _VMEM_SPEC, _VMEM_SPEC, _ANY_SPEC],
        out_specs=_VMEM_SPEC,
        scratch_shapes=[pltpu.VMEM((NFLAT_PAD, HID), jnp.bfloat16),
                        pltpu.SemaphoreType.DMA(())],
    )(p1, params["wpack"], params["bpack"], params["fc1_w"])

    return q_pad[:, :N_ACTIONS]   # drop the zero-padded action lanes (free slice)


if __name__ == "__main__":
    key = jax.random.PRNGKey(0)
    k_params, k_x = jax.random.split(key)
    params = make_params(k_params)
    x = jax.random.normal(k_x, (B, C_IN, H, W), jnp.float32)  # NCHW input

    q = noisy_qnet_forward(x, params)
    jax.block_until_ready(q)
    assert q.shape == (B, N_ACTIONS) and q.dtype == jnp.float32
    assert bool(jnp.all(jnp.isfinite(q)))
    print("KERNEL_OK")
</pallas_src>

<mosaic_0001>
module attributes {stable_mosaic.version = 11 : i64} {
  func.func @fused_qnet_kernel(%arg0: memref<72x128xbf16, #tpu.memory_space<vmem>>, %arg1: memref<1280x128xbf16, #tpu.memory_space<vmem>>, %arg2: memref<8x128xf32, #tpu.memory_space<vmem>>, %arg3: memref<2048x128xbf16, #tpu.memory_space<any>>, %arg4: memref<2x128xf32, #tpu.memory_space<vmem>>, %arg5: memref<2048x128xbf16, #tpu.memory_space<vmem>>, %arg6: memref<!tpu.dma_semaphore, #tpu.memory_space<semaphore_mem>>) attributes {dimension_semantics = [], scalar_prefetch = 0 : i64, scratch_operands = 2 : i64, tpu.core_type = #tpu.core_type<tc>} {
    tpu.enqueue_dma source(%arg3 : memref<2048x128xbf16, #tpu.memory_space<any>>) target(%arg5 : memref<2048x128xbf16, #tpu.memory_space<vmem>>) target_semaphore(%arg6 : memref<!tpu.dma_semaphore, #tpu.memory_space<semaphore_mem>>)
    %c0 = arith.constant 0 : index
    %c0_0 = arith.constant 0 : index
    %0 = vector.load %arg2[%c0, %c0_0] : memref<8x128xf32, #tpu.memory_space<vmem>>, vector<8x128xf32>
    %c0_1 = arith.constant 0 : index
    %c0_2 = arith.constant 0 : index
    %1 = vector.load %arg1[%c0_1, %c0_2] : memref<1280x128xbf16, #tpu.memory_space<vmem>>, vector<128x128xbf16>
    %c0_3 = arith.constant 0 : index
    %c0_4 = arith.constant 0 : index
    %2 = vector.load %arg0[%c0_3, %c0_4] : memref<72x128xbf16, #tpu.memory_space<vmem>>, vector<72x128xbf16>
    %cst = arith.constant dense<0.000000e+00> : vector<72x128xf32>
    %3 = tpu.matmul %2, %1, %cst {dimension_numbers = #tpu.dot_dimension_numbers<[1], [0], [0], [1], [0, 0, 1, 1], [], []>} : vector<72x128xbf16>, vector<128x128xbf16>, vector<72x128xf32> -> vector<72x128xf32>
    %4 = vector.extract_strided_slice %0 {offsets = [0, 0], sizes = [1, 128], strides = [1, 1]} : vector<8x128xf32> to vector<1x128xf32>
    %5 = vector.broadcast %4 : vector<1x128xf32> to vector<72x128xf32>
    %6 = arith.addf %3, %5 : vector<72x128xf32>
    %cst_5 = arith.constant 0.000000e+00 : f32
    %7 = vector.broadcast %cst_5 : f32 to vector<72x128xf32>
    %8 = arith.maximumf %6, %7 : vector<72x128xf32>
    %9 = vector.shape_cast %8 : vector<72x128xf32> to vector<2x6x6x128xf32>
    %c128 = arith.constant 128 : index
    %c0_6 = arith.constant 0 : index
    %10 = vector.load %arg1[%c128, %c0_6] : memref<1280x128xbf16, #tpu.memory_space<vmem>>, vector<512x128xbf16>
    %c640 = arith.constant 640 : index
    %c0_7 = arith.constant 0 : index
    %11 = vector.load %arg1[%c640, %c0_7] : memref<1280x128xbf16, #tpu.memory_space<vmem>>, vector<512x128xbf16>
    %c1152 = arith.constant 1152 : index
    %c0_8 = arith.constant 0 : index
    %12 = vector.load %arg1[%c1152, %c0_8] : memref<1280x128xbf16, #tpu.memory_space<vmem>>, vector<128x128xbf16>
    %13 = vector.extract_strided_slice %0 {offsets = [1, 0], sizes = [1, 128], strides = [1, 1]} : vector<8x128xf32> to vector<1x128xf32>
    %14 = vector.extract_strided_slice %9 {offsets = [0, 0, 0, 0], sizes = [2, 5, 5, 128], strides = [1, 1, 1, 1]} : vector<2x6x6x128xf32> to vector<2x5x5x128xf32>
    %15 = vector.extract_strided_slice %9 {offsets = [0, 0, 1, 0], sizes = [2, 5, 5, 128], strides = [1, 1, 1, 1]} : vector<2x6x6x128xf32> to vector<2x5x5x128xf32>
    %16 = vector.extract_strided_slice %9 {offsets = [0, 1, 0, 0], sizes = [2, 5, 5, 128], strides = [1, 1, 1, 1]} : vector<2x6x6x128xf32> to vector<2x5x5x128xf32>
    %17 = vector.extract_strided_slice %9 {offsets = [0, 1, 1, 0], sizes = [2, 5, 5, 128], strides = [1, 1, 1, 1]} : vector<2x6x6x128xf32> to vector<2x5x5x128xf32>
    %18 = tpu.concatenate %14, %15, %16, %17 in 3 : vector<2x5x5x128xf32>, vector<2x5x5x128xf32>, vector<2x5x5x128xf32>, vector<2x5x5x128xf32> -> vector<2x5x5x512xf32>
    %19 = vector.shape_cast %18 : vector<2x5x5x512xf32> to vector<50x512xf32>
    %20 = arith.truncf %19 : vector<50x512xf32> to vector<50x512xbf16>
    %cst_9 = arith.constant dense<0.000000e+00> : vector<50x128xf32>
    %21 = tpu.matmul %20, %10, %cst_9 {dimension_numbers = #tpu.dot_dimension_numbers<[1], [0], [0], [1], [0, 0, 1, 1], [], []>} : vector<50x512xbf16>, vector<512x128xbf16>, vector<50x128xf32> -> vector<50x128xf32>
    %22 = vector.broadcast %13 : vector<1x128xf32> to vector<50x128xf32>
    %23 = arith.addf %21, %22 : vector<50x128xf32>
    %cst_10 = arith.constant 0.000000e+00 : f32
    %24 = vector.broadcast %cst_10 : f32 to vector<50x128xf32>
    %25 = arith.maximumf %23, %24 : vector<50x128xf32>
    %26 = vector.shape_cast %25 : vector<50x128xf32> to vector<2x5x5x128xf32>
    %27 = vector.extract_strided_slice %0 {offsets = [2, 0], sizes = [1, 128], strides = [1, 1]} : vector<8x128xf32> to vector<1x128xf32>
    %28 = vector.extract_strided_slice %26 {offsets = [0, 0, 0, 0], sizes = [2, 4, 4, 128], strides = [1, 1, 1, 1]} : vector<2x5x5x128xf32> to vector<2x4x4x128xf32>
    %29 = vector.extract_strided_slice %26 {offsets = [0, 0, 1, 0], sizes = [2, 4, 4, 128], strides = [1, 1, 1, 1]} : vector<2x5x5x128xf32> to vector<2x4x4x128xf32>
    %30 = vector.extract_strided_slice %26 {offsets = [0, 1, 0, 0], sizes = [2, 4, 4, 128], strides = [1, 1, 1, 1]} : vector<2x5x5x128xf32> to vector<2x4x4x128xf32>
    %31 = vector.extract_strided_slice %26 {offsets = [0, 1, 1, 0], sizes = [2, 4, 4, 128], strides = [1, 1, 1, 1]} : vector<2x5x5x128xf32> to vector<2x4x4x128xf32>
    %32 = tpu.concatenate %28, %29, %30, %31 in 3 : vector<2x4x4x128xf32>, vector<2x4x4x128xf32>, vector<2x4x4x128xf32>, vector<2x4x4x128xf32> -> vector<2x4x4x512xf32>
    %33 = vector.shape_cast %32 : vector<2x4x4x512xf32> to vector<32x512xf32>
    %34 = arith.truncf %33 : vector<32x512xf32> to vector<32x512xbf16>
    %cst_11 = arith.constant dense<0.000000e+00> : vector<32x128xf32>
    %35 = tpu.matmul %34, %11, %cst_11 {dimension_numbers = #tpu.dot_dimension_numbers<[1], [0], [0], [1], [0, 0, 1, 1], [], []>} : vector<32x512xbf16>, vector<512x128xbf16>, vector<32x128xf32> -> vector<32x128xf32>
    %36 = vector.broadcast %27 : vector<1x128xf32> to vector<32x128xf32>
    %37 = arith.addf %35, %36 : vector<32x128xf32>
    %cst_12 = arith.constant 0.000000e+00 : f32
    %38 = vector.broadcast %cst_12 : f32 to vector<32x128xf32>
    %39 = arith.maximumf %37, %38 : vector<32x128xf32>
    %40 = vector.shape_cast %39 : vector<32x128xf32> to vector<2x4x4x128xf32>
    %41 = vector.shape_cast %40 : vector<2x4x4x128xf32> to vector<2x2048xf32>
    %42 = arith.truncf %41 : vector<2x2048xf32> to vector<2x2048xbf16>
    tpu.wait_dma2 semaphore(%arg6 : memref<!tpu.dma_semaphore, #tpu.memory_space<semaphore_mem>>) src(%arg3 : memref<2048x128xbf16, #tpu.memory_space<any>>) dst(%arg5 : memref<2048x128xbf16, #tpu.memory_space<vmem>>)
    %c0_13 = arith.constant 0 : index
    %c0_14 = arith.constant 0 : index
    %43 = vector.load %arg5[%c0_13, %c0_14] : memref<2048x128xbf16, #tpu.memory_space<vmem>>, vector<2048x128xbf16>
    %cst_15 = arith.constant dense<0.000000e+00> : vector<2x128xf32>
    %44 = tpu.matmul %42, %43, %cst_15 {dimension_numbers = #tpu.dot_dimension_numbers<[1], [0], [0], [1], [0, 0, 1, 1], [], []>} : vector<2x2048xbf16>, vector<2048x128xbf16>, vector<2x128xf32> -> vector<2x128xf32>
    %45 = vector.extract_strided_slice %0 {offsets = [3, 0], sizes = [1, 128], strides = [1, 1]} : vector<8x128xf32> to vector<1x128xf32>
    %46 = vector.broadcast %45 : vector<1x128xf32> to vector<2x128xf32>
    %47 = arith.addf %44, %46 : vector<2x128xf32>
    %cst_16 = arith.constant 0.000000e+00 : f32
    %48 = vector.broadcast %cst_16 : f32 to vector<2x128xf32>
    %49 = arith.maximumf %47, %48 : vector<2x128xf32>
    %50 = arith.truncf %49 : vector<2x128xf32> to vector<2x128xbf16>
    %cst_17 = arith.constant dense<0.000000e+00> : vector<2x128xf32>
    %51 = tpu.matmul %50, %12, %cst_17 {dimension_numbers = #tpu.dot_dimension_numbers<[1], [0], [0], [1], [0, 0, 1, 1], [], []>} : vector<2x128xbf16>, vector<128x128xbf16>, vector<2x128xf32> -> vector<2x128xf32>
    %52 = vector.extract_strided_slice %0 {offsets = [4, 0], sizes = [1, 128], strides = [1, 1]} : vector<8x128xf32> to vector<1x128xf32>
    %53 = vector.broadcast %52 : vector<1x128xf32> to vector<2x128xf32>
    %54 = arith.addf %51, %53 : vector<2x128xf32>
    %c0_18 = arith.constant 0 : index
    %c0_19 = arith.constant 0 : index
    %55 = vector.load %arg4[%c0_18, %c0_19] : memref<2x128xf32, #tpu.memory_space<vmem>>, vector<2x128xf32>
    tpu.vector_store %arg4[%c0_18, %c0_19], %54 {strides = array<i32>} : memref<2x128xf32, #tpu.memory_space<vmem>>, vector<2x128xf32>,
    return
  }
}

</mosaic_0001>

<llo_original>
// kernel: noisy_qnet_forward.1
$region0: #{noisy_qnet_forward.1}
  #allocation0 [shape = 'u32[]', space=smem, size = 0x4, offset = 0x4, fixed_abs, tag = 'smem constant byte address 0x4 - core index']
  #allocation1 [shape = 'u32[144,128]{1,0:T(1,128)}', space=vmem, size = 0x12000, scoped, tag = 'internal scratch']
  #allocation2 [shape = 'bf16[2048,128]{1,0:T(16,128)(2,1)}', space=vmem, size = 0x80000, scoped, tag = 'scratch operand']
  #allocation3 [shape = 's32[1]{0}', space=sflag, size = 0x4, scoped, tag = 'scratch operand']
  #allocation6 [shape = 's32[]', space=sflag, size = 0x4, offset = 0, fixed_abs, tag = 'sflag constant byte address 0x0 - dummy sync flag']
  #allocation7 [shape = 's32[]', space=sflag, size = 0x4, offset = 0, fixed_abs, tag = 'sflag constant byte address 0x0 - dummy sync flag']
  #allocation8 [shape = 'u32[]', space=smem, size = 0x4, offset = 0x44, fixed_abs, tag = 'smem constant byte address 0x44 - assertion arg 0']
  #allocation9 [shape = 'u32[]', space=smem, size = 0x4, offset = 0x48, fixed_abs, tag = 'smem constant byte address 0x48 - assertion arg 1']
  %s0 = inlined_call_operand.vmem [shape: bf16[72,128], index: 0, kind: input, shape index: {}]
  %s1 = inlined_call_operand.vmem [shape: bf16[1280,128], index: 1, kind: input, shape index: {}]
  %s2 = inlined_call_operand.vmem [shape: f32[8,128], index: 2, kind: input, shape index: {}]
  %s3 = inlined_call_operand.hbm [shape: bf16[2048,128], index: 3, kind: input, shape index: {}]
  %s4 = inlined_call_operand.hbm [shape: f32[2,128], index: 4, kind: output, shape index: {}]
  %s5 = sld [smem:[#allocation0]]
  $region26: #{noisy_qnet_forward.1} parent=0
    _
  %s7 = ssub.s32 1, %s5
  %s8 = scalar_select 0, %s7, %s5
  $region1: #{noisy_qnet_forward.1} parent=0
    #allocation4 [shape = 'u8[1024]{0}', space=vmem, size = 0x400, scoped, tag = 'output window, operand 0, single buffered']
    #allocation5 [shape = 's32[1]{0}', space=sflag, size = 0x4, scoped, tag = 'scoped memory for noisy_qnet_forward.1']
    %9 = vsyncpa [#allocation5], 0
    // Predicated region
    $region2: #{noisy_qnet_forward.1} parent=1 // pred_check
      _
    $region3: #{noisy_qnet_forward.1} parent=1 // pred_check_branch
      %11 = sbr.rel (0) target = $region5
    $region4: #{noisy_qnet_forward.1} parent=1 // pred_region
      _
    $region5: #{noisy_qnet_forward.1} parent=1 // pred_fallthru
      _
    // Predicated region
    $region6: #{noisy_qnet_forward.1} parent=1 // pred_check
      _
    $region7: #{noisy_qnet_forward.1} parent=1 // pred_check_branch
      %13 = sbr.rel (0) target = $region9
    $region8: #{noisy_qnet_forward.1} parent=1 // pred_region
      _
    $region9: #{noisy_qnet_forward.1} parent=1 // pred_fallthru
      _
    // Predicated region
    $region10: #{noisy_qnet_forward.1} parent=1 // pred_check
      _
    $region11: #{noisy_qnet_forward.1} parent=1 // pred_check_branch
      %15 = sbr.rel (0) target = $region13
    $region12: #{noisy_qnet_forward.1} parent=1 // pred_region
      _
    $region13: #{noisy_qnet_forward.1} parent=1 // pred_fallthru
      _
    // Predicated region
    $region14: #{noisy_qnet_forward.1} parent=1 // pred_check
      _
    $region15: #{noisy_qnet_forward.1} parent=1 // pred_check_branch
      %18 = sbr.rel target = $region17
    $region16: #{noisy_qnet_forward.1} parent=1 // pred_region
      %19 = sst [smem:[#allocation8]] [#allocation7]
      %20 = sst [smem:[#allocation9]] [#allocation6]
    $region17: #{noisy_qnet_forward.1} parent=1 // pred_fallthru
      _
    %22 = shalt.err (0)
    %s24 = sshll.u32 [#allocation2], 4
    %s25 = int_to_ptr.vmem [resolvable:$true] %s24
    %27 = dma.hbm_to_vmem [thread:$0]  %s3, 16384, %s25, [#allocation3]
    %v28 = vld [vmem:[%s2] sm:$0xff]
    %v29 = vld [vmem:[%s1] sm:$0xf]
    %v30 = vld [vmem:[%s1 + $0x4] sm:$0xf]
    %v31 = vld [vmem:[%s1 + $0x8] sm:$0xf]
    %v32 = vld [vmem:[%s1 + $0xc] sm:$0xf]
    %v33 = vld [vmem:[%s1 + $0x10] sm:$0xf]
    %v34 = vld [vmem:[%s1 + $0x14] sm:$0xf]
    %v35 = vld [vmem:[%s1 + $0x18] sm:$0xf]
    %v36 = vld [vmem:[%s1 + $0x1c] sm:$0xf]
    %v37 = vld [vmem:[%s1 + $0x20] sm:$0xf]
    %v38 = vld [vmem:[%s1 + $0x24] sm:$0xf]
    %v39 = vld [vmem:[%s1 + $0x28] sm:$0xf]
    %v40 = vld [vmem:[%s1 + $0x2c] sm:$0xf]
    %v41 = vld [vmem:[%s1 + $0x30] sm:$0xf]
    %v42 = vld [vmem:[%s1 + $0x34] sm:$0xf]
    %v43 = vld [vmem:[%s1 + $0x38] sm:$0xf]
    %v44 = vld [vmem:[%s1 + $0x3c] sm:$0xf]
    %v45 = vld [vmem:[%s0] sm:$0xf]
    %v46 = vld [vmem:[%s0 + $0x4] sm:$0xf]
    %v47 = vld [vmem:[%s0 + $0x8] sm:$0xf]
    %v48 = vld [vmem:[%s0 + $0xc] sm:$0xf]
    %v49 = vld [vmem:[%s0 + $0x10] sm:$0xf]
    %v50 = vld [vmem:[%s0 + $0x14] sm:$0xf]
    %v51 = vld [vmem:[%s0 + $0x18] sm:$0xf]
    %v52 = vld [vmem:[%s0 + $0x1c] sm:$0xf]
    %v53 = vld [vmem:[%s0 + $0x20] sm:$0xf]
    %v54 = vlaneseq
    %v55 = vshrl.u32 %v54, 7
    %v56 = vsub.s32 0, %v55
    %v57 = vrot.slane %v28, %v56
    %v67 = vunpack.c.l.b16 %v45
    %v68 = vunpack.c.l.b16 %v46
    %v69 = vunpack.c.l.b16 %v47
    %v70 = vunpack.c.l.b16 %v48
    %v71 = vunpack.c.l.b16 %v49
    %v72 = vunpack.c.l.b16 %v50
    %v73 = vunpack.c.l.b16 %v51
    %v74 = vunpack.c.l.b16 %v52
    %v75 = vunpack.c.l.b16 %v53
    %v76 = vpack.c.b16 %v68, %v67
    %v77 = vpack.c.b16 %v70, %v69
    %v78 = vpack.c.b16 %v72, %v71
    %v79 = vpack.c.b16 %v74, %v73
    %v80 = vpack.c.b16 %v75, %v75
    %v102 = vunpack.c.l.b16 %v29
    %v103 = vunpack.c.l.b16 %v30
    %v104 = vunpack.c.l.b16 %v31
    %v105 = vunpack.c.l.b16 %v32
    %v106 = vunpack.c.l.b16 %v33
    %v107 = vunpack.c.l.b16 %v34
    %v108 = vunpack.c.l.b16 %v35
    %v109 = vunpack.c.l.b16 %v36
    %v110 = vunpack.c.l.b16 %v37
    %v111 = vunpack.c.l.b16 %v38
    %v112 = vunpack.c.l.b16 %v39
    %v113 = vunpack.c.l.b16 %v40
    %v114 = vunpack.c.l.b16 %v41
    %v115 = vunpack.c.l.b16 %v42
    %v116 = vunpack.c.l.b16 %v43
    %v117 = vunpack.c.l.b16 %v44
    %v118 = vpack.c.b16 %v103, %v102
    %v119 = vpack.c.b16 %v105, %v104
    %v120 = vpack.c.b16 %v107, %v106
    %v121 = vpack.c.b16 %v109, %v108
    %v122 = vpack.c.b16 %v111, %v110
    %v123 = vpack.c.b16 %v113, %v112
    %v124 = vpack.c.b16 %v115, %v114
    %v125 = vpack.c.b16 %v117, %v116
    %134 = vmatprep.subr.bf16.mxu0 0
    %135 = vmatpush1.bf16.msra.mxu0 %v118
    %136 = vmatprep.subr.bf16.mxu0 0
    %137 = vmatpush1.bf16.msra.mxu0 %v119
    %138 = vmatprep.subr.bf16.mxu0 0
    %139 = vmatpush1.bf16.msra.mxu0 %v120
    %140 = vmatprep.subr.bf16.mxu0 0
    %141 = vmatpush1.bf16.msra.mxu0 %v121
    %142 = vmatprep.subr.bf16.mxu0 0
    %143 = vmatpush1.bf16.msra.mxu0 %v122
    %144 = vmatprep.subr.bf16.mxu0 0
    %145 = vmatpush1.bf16.msra.mxu0 %v123
    %146 = vmatprep.subr.bf16.mxu0 0
    %147 = vmatpush1.bf16.msra.mxu0 %v124
    %148 = vmatprep.subr.bf16.mxu0 0
    %149 = vmatpush1.bf16.msra.mxu0 %v125
    %150 = vmatprep.subr.bf16.mxu0 0
    %151 = vmatpush1.bf16.msra.mxu0 0
    %152 = vmatprep.subr.bf16.mxu0 0
    %153 = vmatpush1.bf16.msra.mxu0 0
    %154 = vmatprep.subr.bf16.mxu0 0
    %155 = vmatpush1.bf16.msra.mxu0 0
    %156 = vmatprep.subr.bf16.mxu0 0
    %157 = vmatpush1.bf16.msra.mxu0 0
    %158 = vmatprep.subr.bf16.mxu0 0
    %159 = vmatpush1.bf16.msra.mxu0 0
    %160 = vmatprep.subr.bf16.mxu0 0
    %161 = vmatpush1.bf16.msra.mxu0 0
    %162 = vmatprep.subr.bf16.mxu0 0
    %163 = vmatpush1.bf16.msra.mxu0 0
    %164 = vmatprep.subr.bf16.mxu0 0
    %165 = vmatpush1.bf16.msra.mxu0 0
    %166 = vmatprep.mubr.bf16.mxu0 0
    %167 = vmatmul.mubr.bf16.gmra.mrb[0].mxu0 %v76
    %v168 = vpop.f32.mrb[0].mxu0
    %v169 = vadd.f32 %v57, %v168
    %v170 = vpop.f32.mrb[0].mxu0
    %v171 = vpop.f32.mrb[0].mxu0
    %v172 = vadd.f32 %v57, %v171
    %v173 = vpop.f32.mrb[0].mxu0
    %174 = vmatprep.mubr.bf16.mxu0 0
    %175 = vmatmul.mubr.bf16.gmra.mrb[0].mxu0 %v77
    %v176 = vpop.f32.mrb[0].mxu0
    %v177 = vadd.f32 %v57, %v176
    %v178 = vpop.f32.mrb[0].mxu0
    %v179 = vpop.f32.mrb[0].mxu0
    %v180 = vadd.f32 %v57, %v179
    %v181 = vpop.f32.mrb[0].mxu0
    %182 = vmatprep.mubr.bf16.mxu0 0
    %183 = vmatmul.mubr.bf16.gmra.mrb[0].mxu0 %v78
    %v184 = vpop.f32.mrb[0].mxu0
    %v185 = vadd.f32 %v57, %v184
    %v186 = vpop.f32.mrb[0].mxu0
    %v187 = vpop.f32.mrb[0].mxu0
    %v188 = vadd.f32 %v57, %v187
    %v189 = vpop.f32.mrb[0].mxu0
    %190 = vmatprep.mubr.bf16.mxu0 0
    %191 = vmatmul.mubr.bf16.gmra.mrb[0].mxu0 %v79
    %v192 = vpop.f32.mrb[0].mxu0
    %v193 = vadd.f32 %v57, %v192
    %v194 = vpop.f32.mrb[0].mxu0
    %v195 = vpop.f32.mrb[0].mxu0
    %v196 = vadd.f32 %v57, %v195
    %v197 = vpop.f32.mrb[0].mxu0
    %198 = vmatprep.mubr.bf16.mxu0 0
    %199 = vmatmul.mubr.bf16.gmra.mrb[0].mxu0 %v80
    %v200 = vpop.f32.mrb[0].mxu0
    %v201 = vadd.f32 %v57, %v200
    %v202 = vpop.f32.mrb[0].mxu0
    %v203 = vpop.f32.mrb[0].mxu0
    %v204 = vpop.f32.mrb[0].mxu0
    %205 = vdwg.mxu0
    %v206 = vmax.f32 %v169, 0.0
    %v207 = vmax.f32 %v172, 0.0
    %v208 = vmax.f32 %v177, 0.0
    %v209 = vmax.f32 %v180, 0.0
    %v210 = vmax.f32 %v185, 0.0
    %v211 = vmax.f32 %v188, 0.0
    %v212 = vmax.f32 %v193, 0.0
    %v213 = vmax.f32 %v196, 0.0
    %v214 = vmax.f32 %v201, 0.0
    %v224 = vcombine.high %v206, %v206
    %v226 = vunpack.c.l.s4 1983009808
    %v227 = vunpack.c.0.s8 %v226
    %v228 = vlaneseq
    %v229 = vshrl.u32 %v228, 7
    %v230 = vsub.s32 %v227, %v229
    %v231 = vrot.slane %v206, %v230
    %v233 = vunpack.c.l.s4 1983009808
    %v234 = vunpack.c.0.s8 %v233
    %v235 = vlaneseq
    %v236 = vshrl.u32 %v235, 7
    %v237 = vsub.s32 %v234, %v236
    %v238 = vrot.slane %v224, %v237
    %v239 = vcombine.high %v231, %v231
    %v240 = vcombine.high %v238, %v238
    %v241 = vcombine.high %v207, %v207
    %v243 = vunpack.c.l.s4 1983009808
    %v244 = vunpack.c.0.s8 %v243
    %v245 = vlaneseq
    %v246 = vshrl.u32 %v245, 7
    %v247 = vsub.s32 %v244, %v246
    %v248 = vrot.slane %v207, %v247
    %v250 = vunpack.c.l.s4 1983009808
    %v251 = vunpack.c.0.s8 %v250
    %v252 = vlaneseq
    %v253 = vshrl.u32 %v252, 7
    %v254 = vsub.s32 %v251, %v253
    %v255 = vrot.slane %v241, %v254
    %v256 = vcombine.high %v248, %v248
    %v257 = vcombine.high %v255, %v255
    %v258 = vcombine.high %v208, %v208
    %v260 = vunpack.c.l.s4 1983009808
    %v261 = vunpack.c.0.s8 %v260
    %v262 = vlaneseq
    %v263 = vshrl.u32 %v262, 7
    %v264 = vsub.s32 %v261, %v263
    %v265 = vrot.slane %v208, %v264
    %v267 = vunpack.c.l.s4 1983009808
    %v268 = vunpack.c.0.s8 %v267
    %v269 = vlaneseq
    %v270 = vshrl.u32 %v269, 7
    %v271 = vsub.s32 %v268, %v270
    %v272 = vrot.slane %v258, %v271
    %v273 = vcombine.high %v265, %v265
    %v274 = vcombine.high %v272, %v272
    %v275 = vcombine.high %v209, %v209
    %v277 = vunpack.c.l.s4 1983009808
    %v278 = vunpack.c.0.s8 %v277
    %v279 = vlaneseq
    %v280 = vshrl.u32 %v279, 7
    %v281 = vsub.s32 %v278, %v280
    %v282 = vrot.slane %v209, %v281
    %v284 = vunpack.c.l.s4 1983009808
    %v285 = vunpack.c.0.s8 %v284
    %v286 = vlaneseq
    %v287 = vshrl.u32 %v286, 7
    %v288 = vsub.s32 %v285, %v287
    %v289 = vrot.slane %v275, %v288
    %v290 = vcombine.high %v282, %v282
    %v291 = vcombine.high %v289, %v289
    %v292 = vcombine.high %v210, %v210
    %v294 = vunpack.c.l.s4 1983009808
    %v295 = vunpack.c.0.s8 %v294
    %v296 = vlaneseq
    %v297 = vshrl.u32 %v296, 7
    %v298 = vsub.s32 %v295, %v297
    %v299 = vrot.slane %v210, %v298
    %v301 = vunpack.c.l.s4 1983009808
    %v302 = vunpack.c.0.s8 %v301
    %v303 = vlaneseq
    %v304 = vshrl.u32 %v303, 7
    %v305 = vsub.s32 %v302, %v304
    %v306 = vrot.slane %v292, %v305
    %v307 = vcombine.high %v299, %v299
    %v308 = vcombine.high %v306, %v306
    %v309 = vcombine.high %v211, %v211
    %v311 = vunpack.c.l.s4 1983009808
    %v312 = vunpack.c.0.s8 %v311
    %v313 = vlaneseq
    %v314 = vshrl.u32 %v313, 7
    %v315 = vsub.s32 %v312, %v314
    %v316 = vrot.slane %v211, %v315
    %v318 = vunpack.c.l.s4 1983009808
    %v319 = vunpack.c.0.s8 %v318
    %v320 = vlaneseq
    %v321 = vshrl.u32 %v320, 7
    %v322 = vsub.s32 %v319, %v321
    %v323 = vrot.slane %v309, %v322
    %v324 = vcombine.high %v316, %v316
    %v325 = vcombine.high %v323, %v323
    %v326 = vcombine.high %v212, %v212
    %v328 = vunpack.c.l.s4 1983009808
    %v329 = vunpack.c.0.s8 %v328
    %v330 = vlaneseq
    %v331 = vshrl.u32 %v330, 7
    %v332 = vsub.s32 %v329, %v331
    %v333 = vrot.slane %v212, %v332
    %v335 = vunpack.c.l.s4 1983009808
    %v336 = vunpack.c.0.s8 %v335
    %v337 = vlaneseq
    %v338 = vshrl.u32 %v337, 7
    %v339 = vsub.s32 %v336, %v338
    %v340 = vrot.slane %v326, %v339
    %v341 = vcombine.high %v333, %v333
    %v342 = vcombine.high %v340, %v340
    %v343 = vcombine.high %v213, %v213
    %v345 = vunpack.c.l.s4 1983009808
    %v346 = vunpack.c.0.s8 %v345
    %v347 = vlaneseq
    %v348 = vshrl.u32 %v347, 7
    %v349 = vsub.s32 %v346, %v348
    %v350 = vrot.slane %v213, %v349
    %v352 = vunpack.c.l.s4 1983009808
    %v353 = vunpack.c.0.s8 %v352
    %v354 = vlaneseq
    %v355 = vshrl.u32 %v354, 7
    %v356 = vsub.s32 %v353, %v355
    %v357 = vrot.slane %v343, %v356
    %v358 = vcombine.high %v350, %v350
    %v359 = vcombine.high %v357, %v357
    %v360 = vcombine.high %v214, %v214
    %v362 = vunpack.c.l.s4 1983009808
    %v363 = vunpack.c.0.s8 %v362
    %v364 = vlaneseq
    %v365 = vshrl.u32 %v364, 7
    %v366 = vsub.s32 %v363, %v365
    %v367 = vrot.slane %v214, %v366
    %v369 = vunpack.c.l.s4 1983009808
    %v370 = vunpack.c.0.s8 %v369
    %v371 = vlaneseq
    %v372 = vshrl.u32 %v371, 7
    %v373 = vsub.s32 %v370, %v372
    %v374 = vrot.slane %v360, %v373
    %v375 = vcombine.high %v367, %v367
    %v376 = vcombine.high %v374, %v374
    %v377 = vld [vmem:[%s1 + $0x40] sm:$0xf]
    %v378 = vld [vmem:[%s1 + $0x44] sm:$0xf]
    %v379 = vld [vmem:[%s1 + $0x48] sm:$0xf]
    %v380 = vld [vmem:[%s1 + $0x4c] sm:$0xf]
    %v381 = vld [vmem:[%s1 + $0x50] sm:$0xf]
    %v382 = vld [vmem:[%s1 + $0x54] sm:$0xf]
    %v383 = vld [vmem:[%s1 + $0x58] sm:$0xf]
    %v384 = vld [vmem:[%s1 + $0x5c] sm:$0xf]
    %v385 = vld [vmem:[%s1 + $0x60] sm:$0xf]
    %v386 = vld [vmem:[%s1 + $0x64] sm:$0xf]
    %v387 = vld [vmem:[%s1 + $0x68] sm:$0xf]
    %v388 = vld [vmem:[%s1 + $0x6c] sm:$0xf]
    %v389 = vld [vmem:[%s1 + $0x70] sm:$0xf]
    %v390 = vld [vmem:[%s1 + $0x74] sm:$0xf]
    %v391 = vld [vmem:[%s1 + $0x78] sm:$0xf]
    %v392 = vld [vmem:[%s1 + $0x7c] sm:$0xf]
    %v393 = vld [vmem:[%s1 + $0x80] sm:$0xf]
    %v394 = vld [vmem:[%s1 + $0x84] sm:$0xf]
    %v395 = vld [vmem:[%s1 + $0x88] sm:$0xf]
    %v396 = vld [vmem:[%s1 + $0x8c] sm:$0xf]
    %v397 = vld [vmem:[%s1 + $0x90] sm:$0xf]
    %v398 = vld [vmem:[%s1 + $0x94] sm:$0xf]
    %v399 = vld [vmem:[%s1 + $0x98] sm:$0xf]
    %v400 = vld [vmem:[%s1 + $0x9c] sm:$0xf]
    %v401 = vld [vmem:[%s1 + $0xa0] sm:$0xf]
    %v402 = vld [vmem:[%s1 + $0xa4] sm:$0xf]
    %v403 = vld [vmem:[%s1 + $0xa8] sm:$0xf]
    %v404 = vld [vmem:[%s1 + $0xac] sm:$0xf]
    %v405 = vld [vmem:[%s1 + $0xb0] sm:$0xf]
    %v406 = vld [vmem:[%s1 + $0xb4] sm:$0xf]
    %v407 = vld [vmem:[%s1 + $0xb8] sm:$0xf]
    %v408 = vld [vmem:[%s1 + $0xbc] sm:$0xf]
    %v409 = vld [vmem:[%s1 + $0xc0] sm:$0xf]
    %v410 = vld [vmem:[%s1 + $0xc4] sm:$0xf]
    %v411 = vld [vmem:[%s1 + $0xc8] sm:$0xf]
    %v412 = vld [vmem:[%s1 + $0xcc] sm:$0xf]
    %v413 = vld [vmem:[%s1 + $0xd0] sm:$0xf]
    %v414 = vld [vmem:[%s1 + $0xd4] sm:$0xf]
    %v415 = vld [vmem:[%s1 + $0xd8] sm:$0xf]
    %v416 = vld [vmem:[%s1 + $0xdc] sm:$0xf]
    %v417 = vld [vmem:[%s1 + $0xe0] sm:$0xf]
    %v418 = vld [vmem:[%s1 + $0xe4] sm:$0xf]
    %v419 = vld [vmem:[%s1 + $0xe8] sm:$0xf]
    %v420 = vld [vmem:[%s1 + $0xec] sm:$0xf]
    %v421 = vld [vmem:[%s1 + $0xf0] sm:$0xf]
    %v422 = vld [vmem:[%s1 + $0xf4] sm:$0xf]
    %v423 = vld [vmem:[%s1 + $0xf8] sm:$0xf]
    %v424 = vld [vmem:[%s1 + $0xfc] sm:$0xf]
    %v425 = vld [vmem:[%s1 + $0x100] sm:$0xf]
    %v426 = vld [vmem:[%s1 + $0x104] sm:$0xf]
    %v427 = vld [vmem:[%s1 + $0x108] sm:$0xf]
    %v428 = vld [vmem:[%s1 + $0x10c] sm:$0xf]
    %v429 = vld [vmem:[%s1 + $0x110] sm:$0xf]
    %v430 = vld [vmem:[%s1 + $0x114] sm:$0xf]
    %v431 = vld [vmem:[%s1 + $0x118] sm:$0xf]
    %v432 = vld [vmem:[%s1 + $0x11c] sm:$0xf]
    %v433 = vld [vmem:[%s1 + $0x120] sm:$0xf]
    %v434 = vld [vmem:[%s1 + $0x124] sm:$0xf]
    %v435 = vld [vmem:[%s1 + $0x128] sm:$0xf]
    %v436 = vld [vmem:[%s1 + $0x12c] sm:$0xf]
    %v437 = vld [vmem:[%s1 + $0x130] sm:$0xf]
    %v438 = vld [vmem:[%s1 + $0x134] sm:$0xf]
    %v439 = vld [vmem:[%s1 + $0x138] sm:$0xf]
    %v440 = vld [vmem:[%s1 + $0x13c] sm:$0xf]
    %v441 = vld [vmem:[%s1 + $0x140] sm:$0xf]
    %v442 = vld [vmem:[%s1 + $0x144] sm:$0xf]
    %v443 = vld [vmem:[%s1 + $0x148] sm:$0xf]
    %v444 = vld [vmem:[%s1 + $0x14c] sm:$0xf]
    %v445 = vld [vmem:[%s1 + $0x150] sm:$0xf]
    %v446 = vld [vmem:[%s1 + $0x154] sm:$0xf]
    %v447 = vld [vmem:[%s1 + $0x158] sm:$0xf]
    %v448 = vld [vmem:[%s1 + $0x15c] sm:$0xf]
    %v449 = vld [vmem:[%s1 + $0x160] sm:$0xf]
    %v450 = vld [vmem:[%s1 + $0x164] sm:$0xf]
    %v451 = vld [vmem:[%s1 + $0x168] sm:$0xf]
    %v452 = vld [vmem:[%s1 + $0x16c] sm:$0xf]
    %v453 = vld [vmem:[%s1 + $0x170] sm:$0xf]
    %v454 = vld [vmem:[%s1 + $0x174] sm:$0xf]
    %v455 = vld [vmem:[%s1 + $0x178] sm:$0xf]
    %v456 = vld [vmem:[%s1 + $0x17c] sm:$0xf]
    %v457 = vld [vmem:[%s1 + $0x180] sm:$0xf]
    %v458 = vld [vmem:[%s1 + $0x184] sm:$0xf]
    %v459 = vld [vmem:[%s1 + $0x188] sm:$0xf]
    %v460 = vld [vmem:[%s1 + $0x18c] sm:$0xf]
    %v461 = vld [vmem:[%s1 + $0x190] sm:$0xf]
    %v462 = vld [vmem:[%s1 + $0x194] sm:$0xf]
    %v463 = vld [vmem:[%s1 + $0x198] sm:$0xf]
    %v464 = vld [vmem:[%s1 + $0x19c] sm:$0xf]
    %v465 = vld [vmem:[%s1 + $0x1a0] sm:$0xf]
    %v466 = vld [vmem:[%s1 + $0x1a4] sm:$0xf]
    %v467 = vld [vmem:[%s1 + $0x1a8] sm:$0xf]
    %v468 = vld [vmem:[%s1 + $0x1ac] sm:$0xf]
    %v469 = vld [vmem:[%s1 + $0x1b0] sm:$0xf]
    %v470 = vld [vmem:[%s1 + $0x1b4] sm:$0xf]
    %v471 = vld [vmem:[%s1 + $0x1b8] sm:$0xf]
    %v472 = vld [vmem:[%s1 + $0x1bc] sm:$0xf]
    %v473 = vld [vmem:[%s1 + $0x1c0] sm:$0xf]
    %v474 = vld [vmem:[%s1 + $0x1c4] sm:$0xf]
    %v475 = vld [vmem:[%s1 + $0x1c8] sm:$0xf]
    %v476 = vld [vmem:[%s1 + $0x1cc] sm:$0xf]
    %v477 = vld [vmem:[%s1 + $0x1d0] sm:$0xf]
    %v478 = vld [vmem:[%s1 + $0x1d4] sm:$0xf]
    %v479 = vld [vmem:[%s1 + $0x1d8] sm:$0xf]
    %v480 = vld [vmem:[%s1 + $0x1dc] sm:$0xf]
    %v481 = vld [vmem:[%s1 + $0x1e0] sm:$0xf]
    %v482 = vld [vmem:[%s1 + $0x1e4] sm:$0xf]
    %v483 = vld [vmem:[%s1 + $0x1e8] sm:$0xf]
    %v484 = vld [vmem:[%s1 + $0x1ec] sm:$0xf]
    %v485 = vld [vmem:[%s1 + $0x1f0] sm:$0xf]
    %v486 = vld [vmem:[%s1 + $0x1f4] sm:$0xf]
    %v487 = vld [vmem:[%s1 + $0x1f8] sm:$0xf]
    %v488 = vld [vmem:[%s1 + $0x1fc] sm:$0xf]
    %v489 = vld [vmem:[%s1 + $0x200] sm:$0xf]
    %v490 = vld [vmem:[%s1 + $0x204] sm:$0xf]
    %v491 = vld [vmem:[%s1 + $0x208] sm:$0xf]
    %v492 = vld [vmem:[%s1 + $0x20c] sm:$0xf]
    %v493 = vld [vmem:[%s1 + $0x210] sm:$0xf]
    %v494 = vld [vmem:[%s1 + $0x214] sm:$0xf]
    %v495 = vld [vmem:[%s1 + $0x218] sm:$0xf]
    %v496 = vld [vmem:[%s1 + $0x21c] sm:$0xf]
    %v497 = vld [vmem:[%s1 + $0x220] sm:$0xf]
    %v498 = vld [vmem:[%s1 + $0x224] sm:$0xf]
    %v499 = vld [vmem:[%s1 + $0x228] sm:$0xf]
    %v500 = vld [vmem:[%s1 + $0x22c] sm:$0xf]
    %v501 = vld [vmem:[%s1 + $0x230] sm:$0xf]
    %v502 = vld [vmem:[%s1 + $0x234] sm:$0xf]
    %v503 = vld [vmem:[%s1 + $0x238] sm:$0xf]
    %v504 = vld [vmem:[%s1 + $0x23c] sm:$0xf]
    %v505 = vld [vmem:[%s1 + $0x240] sm:$0xf]
    %v506 = vld [vmem:[%s1 + $0x244] sm:$0xf]
    %v507 = vld [vmem:[%s1 + $0x248] sm:$0xf]
    %v508 = vld [vmem:[%s1 + $0x24c] sm:$0xf]
    %v509 = vld [vmem:[%s1 + $0x250] sm:$0xf]
    %v510 = vld [vmem:[%s1 + $0x254] sm:$0xf]
    %v511 = vld [vmem:[%s1 + $0x258] sm:$0xf]
    %v512 = vld [vmem:[%s1 + $0x25c] sm:$0xf]
    %v513 = vld [vmem:[%s1 + $0x260] sm:$0xf]
    %v514 = vld [vmem:[%s1 + $0x264] sm:$0xf]
    %v515 = vld [vmem:[%s1 + $0x268] sm:$0xf]
    %v516 = vld [vmem:[%s1 + $0x26c] sm:$0xf]
    %v517 = vld [vmem:[%s1 + $0x270] sm:$0xf]
    %v518 = vld [vmem:[%s1 + $0x274] sm:$0xf]
    %v519 = vld [vmem:[%s1 + $0x278] sm:$0xf]
    %v520 = vld [vmem:[%s1 + $0x27c] sm:$0xf]
    %v521 = vcombine.low %v231, %v239
    %v523 = vunpack.c.l.s4 1983009808
    %v524 = vunpack.c.0.s8 %v523
    %v525 = vlaneseq
    %v526 = vshrl.u32 %v525, 7
    %v527 = vsub.s32 %v524, %v526
    %v528 = vrot.slane %v521, %v527
    %v530 = vunpack.c.l.s4 1983009808
    %v531 = vunpack.c.0.s8 %v530
    %v532 = vlaneseq
    %v533 = vshrl.u32 %v532, 7
    %v534 = vsub.s32 %v531, %v533
    %v535 = vrot.slane %v238, %v534
    %v536 = vcombine.low %v528, %v535
    %v537 = vcombine.low %v240, %v248
    %v539 = vunpack.c.l.s4 1983009808
    %v540 = vunpack.c.0.s8 %v539
    %v541 = vlaneseq
    %v542 = vshrl.u32 %v541, 7
    %v543 = vsub.s32 %v540, %v542
    %v544 = vrot.slane %v537, %v543
    %v546 = vunpack.c.l.s4 1983009808
    %v547 = vunpack.c.0.s8 %v546
    %v548 = vlaneseq
    %v549 = vshrl.u32 %v548, 7
    %v550 = vsub.s32 %v547, %v549
    %v551 = vrot.slane %v256, %v550
    %v552 = vcombine.low %v544, %v551
    %v553 = vcombine.low %v255, %v257
    %v555 = vunpack.c.l.s4 1983009808
    %v556 = vunpack.c.0.s8 %v555
    %v557 = vlaneseq
    %v558 = vshrl.u32 %v557, 7
    %v559 = vsub.s32 %v556, %v558
    %v560 = vrot.slane %v553, %v559
    %v562 = vunpack.c.l.s4 1983009808
    %v563 = vunpack.c.0.s8 %v562
    %v564 = vlaneseq
    %v565 = vshrl.u32 %v564, 7
    %v566 = vsub.s32 %v563, %v565
    %v567 = vrot.slane %v265, %v566
    %v568 = vcombine.low %v560, %v567
    %v569 = vcombine.low %v273, %v272
    %v571 = vunpack.c.l.s4 1983009808
    %v572 = vunpack.c.0.s8 %v571
    %v573 = vlaneseq
    %v574 = vshrl.u32 %v573, 7
    %v575 = vsub.s32 %v572, %v574
    %v576 = vrot.slane %v569, %v575
    %v578 = vunpack.c.l.s4 1983009808
    %v579 = vunpack.c.0.s8 %v578
    %v580 = vlaneseq
    %v581 = vshrl.u32 %v580, 7
    %v582 = vsub.s32 %v579, %v581
    %v583 = vrot.slane %v274, %v582
    %v584 = vcombine.low %v576, %v583
    %v585 = vcombine.low %v282, %v290
    %v587 = vunpack.c.l.s4 1983009808
    %v588 = vunpack.c.0.s8 %v587
    %v589 = vlaneseq
    %v590 = vshrl.u32 %v589, 7
    %v591 = vsub.s32 %v588, %v590
    %v592 = vrot.slane %v585, %v591
    %v594 = vunpack.c.l.s4 1983009808
    %v595 = vunpack.c.0.s8 %v594
    %v596 = vlaneseq
    %v597 = vshrl.u32 %v596, 7
    %v598 = vsub.s32 %v595, %v597
    %v599 = vrot.slane %v289, %v598
    %v600 = vcombine.low %v592, %v599
    %v601 = vcombine.low %v306, %v308
    %v603 = vunpack.c.l.s4 1983009808
    %v604 = vunpack.c.0.s8 %v603
    %v605 = vlaneseq
    %v606 = vshrl.u32 %v605, 7
    %v607 = vsub.s32 %v604, %v606
    %v608 = vrot.slane %v601, %v607
    %v610 = vunpack.c.l.s4 1983009808
    %v611 = vunpack.c.0.s8 %v610
    %v612 = vlaneseq
    %v613 = vshrl.u32 %v612, 7
    %v614 = vsub.s32 %v611, %v613
    %v615 = vrot.slane %v316, %v614
    %v616 = vcombine.low %v608, %v615
    %v617 = vcombine.low %v324, %v323
    %v619 = vunpack.c.l.s4 1983009808
    %v620 = vunpack.c.0.s8 %v619
    %v621 = vlaneseq
    %v622 = vshrl.u32 %v621, 7
    %v623 = vsub.s32 %v620, %v622
    %v624 = vrot.slane %v617, %v623
    %v626 = vunpack.c.l.s4 1983009808
    %v627 = vunpack.c.0.s8 %v626
    %v628 = vlaneseq
    %v629 = vshrl.u32 %v628, 7
    %v630 = vsub.s32 %v627, %v629
    %v631 = vrot.slane %v325, %v630
    %v632 = vcombine.low %v624, %v631
    %v633 = vcombine.low %v333, %v341
    %v635 = vunpack.c.l.s4 1983009808
    %v636 = vunpack.c.0.s8 %v635
    %v637 = vlaneseq
    %v638 = vshrl.u32 %v637, 7
    %v639 = vsub.s32 %v636, %v638
    %v640 = vrot.slane %v633, %v639
    %v642 = vunpack.c.l.s4 1983009808
    %v643 = vunpack.c.0.s8 %v642
    %v644 = vlaneseq
    %v645 = vshrl.u32 %v644, 7
    %v646 = vsub.s32 %v643, %v645
    %v647 = vrot.slane %v340, %v646
    %v648 = vcombine.low %v640, %v647
    %v649 = vcombine.low %v342, %v350
    %v651 = vunpack.c.l.s4 1983009808
    %v652 = vunpack.c.0.s8 %v651
    %v653 = vlaneseq
    %v654 = vshrl.u32 %v653, 7
    %v655 = vsub.s32 %v652, %v654
    %v656 = vrot.slane %v649, %v655
    %v658 = vunpack.c.l.s4 1983009808
    %v659 = vunpack.c.0.s8 %v658
    %v660 = vlaneseq
    %v661 = vshrl.u32 %v660, 7
    %v662 = vsub.s32 %v659, %v661
    %v663 = vrot.slane %v358, %v662
    %v664 = vcombine.low %v656, %v663
    %v665 = vcombine.low %v357, %v359
    %v667 = vunpack.c.l.s4 1983009808
    %v668 = vunpack.c.0.s8 %v667
    %v669 = vlaneseq
    %v670 = vshrl.u32 %v669, 7
    %v671 = vsub.s32 %v668, %v670
    %v672 = vrot.slane %v665, %v671
    %v674 = vunpack.c.l.s4 1983009808
    %v675 = vunpack.c.0.s8 %v674
    %v676 = vlaneseq
    %v677 = vshrl.u32 %v676, 7
    %v678 = vsub.s32 %v675, %v677
    %v679 = vrot.slane %v367, %v678
    %v680 = vcombine.low %v672, %v679
    %v681 = vrot.slane %v536, 1
    %v682 = vrot.slane %v552, 1
    %v683 = vrot.slane %v568, 1
    %v684 = vrot.slane %v584, 1
    %v685 = vrot.slane %v600, 1
    %v686 = vrot.slane %v616, 1
    %v687 = vrot.slane %v632, 1
    %v688 = vrot.slane %v648, 1
    %v689 = vrot.slane %v664, 1
    %v690 = vrot.slane %v680, 1
    %v691 = vcombine.low %v291, %v299
    %v693 = vunpack.c.l.s4 1983009808
    %v694 = vunpack.c.0.s8 %v693
    %v695 = vlaneseq
    %v696 = vshrl.u32 %v695, 7
    %v697 = vsub.s32 %v694, %v696
    %v698 = vrot.slane %v691, %v697
    %v700 = vunpack.c.l.s4 1983009808
    %v701 = vunpack.c.0.s8 %v700
    %v702 = vlaneseq
    %v703 = vshrl.u32 %v702, 7
    %v704 = vsub.s32 %v701, %v703
    %v705 = vrot.slane %v307, %v704
    %v706 = vcombine.low %v698, %v705
    %v707 = vcombine.low %v375, %v374
    %v709 = vunpack.c.l.s4 1983009808
    %v710 = vunpack.c.0.s8 %v709
    %v711 = vlaneseq
    %v712 = vshrl.u32 %v711, 7
    %v713 = vsub.s32 %v710, %v712
    %v714 = vrot.slane %v707, %v713
    %v716 = vunpack.c.l.s4 1983009808
    %v717 = vunpack.c.0.s8 %v716
    %v718 = vlaneseq
    %v719 = vshrl.u32 %v718, 7
    %v720 = vsub.s32 %v717, %v719
    %v721 = vrot.slane %v376, %v720
    %v722 = vcombine.low %v714, %v721
    %v723 = vrot.slane %v706, 1
    %v724 = vrot.slane %v722, 1
    %v725 = vcombine.low %v536, %v681
    %v726 = vcombine.high %v536, %v681
    %v727 = vcombine.low %v552, %v682
    %v728 = vcombine.high %v552, %v682
    %v730 = vunpack.c.l.s4 1966171168
    %v731 = vunpack.c.0.s8 %v730
    %v732 = vlaneseq
    %v733 = vshrl.u32 %v732, 7
    %v734 = vsub.s32 %v731, %v733
    %v735 = vrot.slane %v725, %v734
    %v737 = vunpack.c.l.s4 1966171168
    %v738 = vunpack.c.0.s8 %v737
    %v739 = vlaneseq
    %v740 = vshrl.u32 %v739, 7
    %v741 = vsub.s32 %v738, %v740
    %v742 = vrot.slane %v726, %v741
    %v744 = vunpack.c.l.s4 1966171168
    %v745 = vunpack.c.0.s8 %v744
    %v746 = vlaneseq
    %v747 = vshrl.u32 %v746, 7
    %v748 = vsub.s32 %v745, %v747
    %v749 = vrot.slane %v727, %v748
    %v751 = vunpack.c.l.s4 1966171168
    %v752 = vunpack.c.0.s8 %v751
    %v753 = vlaneseq
    %v754 = vshrl.u32 %v753, 7
    %v755 = vsub.s32 %v752, %v754
    %v756 = vrot.slane %v728, %v755
    %v757 = vcombine.low %v735, %v749
    %v758 = vcombine.high %v735, %v749
    %v759 = vcombine.low %v742, %v756
    %v761 = vunpack.c.l.s4 1966171168
    %v762 = vunpack.c.0.s8 %v761
    %v763 = vlaneseq
    %v764 = vshrl.u32 %v763, 7
    %v765 = vsub.s32 %v762, %v764
    %v766 = vrot.slane %v757, %v765
    %v768 = vunpack.c.l.s4 1966171168
    %v769 = vunpack.c.0.s8 %v768
    %v770 = vlaneseq
    %v771 = vshrl.u32 %v770, 7
    %v772 = vsub.s32 %v769, %v771
    %v773 = vrot.slane %v759, %v772
    %v775 = vunpack.c.l.s4 1966171168
    %v776 = vunpack.c.0.s8 %v775
    %v777 = vlaneseq
    %v778 = vshrl.u32 %v777, 7
    %v779 = vsub.s32 %v776, %v778
    %v780 = vrot.slane %v758, %v779
    %v781 = vcombine.high %v766, %v766
    %v782 = vcombine.high %v780, %v780
    %v783 = vcombine.low %v568, %v683
    %v784 = vcombine.high %v568, %v683
    %v786 = vunpack.c.l.s4 1966171168
    %v787 = vunpack.c.0.s8 %v786
    %v788 = vlaneseq
    %v789 = vshrl.u32 %v788, 7
    %v790 = vsub.s32 %v787, %v789
    %v791 = vrot.slane %v783, %v790
    %v793 = vunpack.c.l.s4 1966171168
    %v794 = vunpack.c.0.s8 %v793
    %v795 = vlaneseq
    %v796 = vshrl.u32 %v795, 7
    %v797 = vsub.s32 %v794, %v796
    %v798 = vrot.slane %v784, %v797
    %v799 = vcombine.low %v749, %v791
    %v800 = vcombine.high %v749, %v791
    %v801 = vcombine.low %v756, %v798
    %v803 = vunpack.c.l.s4 1966171168
    %v804 = vunpack.c.0.s8 %v803
    %v805 = vlaneseq
    %v806 = vshrl.u32 %v805, 7
    %v807 = vsub.s32 %v804, %v806
    %v808 = vrot.slane %v799, %v807
    %v810 = vunpack.c.l.s4 1966171168
    %v811 = vunpack.c.0.s8 %v810
    %v812 = vlaneseq
    %v813 = vshrl.u32 %v812, 7
    %v814 = vsub.s32 %v811, %v813
    %v815 = vrot.slane %v801, %v814
    %v817 = vunpack.c.l.s4 1966171168
    %v818 = vunpack.c.0.s8 %v817
    %v819 = vlaneseq
    %v820 = vshrl.u32 %v819, 7
    %v821 = vsub.s32 %v818, %v820
    %v822 = vrot.slane %v800, %v821
    %v823 = vcombine.high %v808, %v808
    %v824 = vcombine.high %v822, %v822
    %v825 = vcombine.low %v584, %v684
    %v826 = vcombine.high %v584, %v684
    %v828 = vunpack.c.l.s4 1966171168
    %v829 = vunpack.c.0.s8 %v828
    %v830 = vlaneseq
    %v831 = vshrl.u32 %v830, 7
    %v832 = vsub.s32 %v829, %v831
    %v833 = vrot.slane %v825, %v832
    %v835 = vunpack.c.l.s4 1966171168
    %v836 = vunpack.c.0.s8 %v835
    %v837 = vlaneseq
    %v838 = vshrl.u32 %v837, 7
    %v839 = vsub.s32 %v836, %v838
    %v840 = vrot.slane %v826, %v839
    %v841 = vcombine.low %v791, %v833
    %v842 = vcombine.high %v791, %v833
    %v843 = vcombine.low %v798, %v840
    %v845 = vunpack.c.l.s4 1966171168
    %v846 = vunpack.c.0.s8 %v845
    %v847 = vlaneseq
    %v848 = vshrl.u32 %v847, 7
    %v849 = vsub.s32 %v846, %v848
    %v850 = vrot.slane %v841, %v849
    %v852 = vunpack.c.l.s4 1966171168
    %v853 = vunpack.c.0.s8 %v852
    %v854 = vlaneseq
    %v855 = vshrl.u32 %v854, 7
    %v856 = vsub.s32 %v853, %v855
    %v857 = vrot.slane %v843, %v856
    %v859 = vunpack.c.l.s4 1966171168
    %v860 = vunpack.c.0.s8 %v859
    %v861 = vlaneseq
    %v862 = vshrl.u32 %v861, 7
    %v863 = vsub.s32 %v860, %v862
    %v864 = vrot.slane %v842, %v863
    %v865 = vcombine.high %v850, %v850
    %v866 = vcombine.high %v864, %v864
    %v867 = vcombine.low %v600, %v685
    %v868 = vcombine.high %v600, %v685
    %v870 = vunpack.c.l.s4 1966171168
    %v871 = vunpack.c.0.s8 %v870
    %v872 = vlaneseq
    %v873 = vshrl.u32 %v872, 7
    %v874 = vsub.s32 %v871, %v873
    %v875 = vrot.slane %v867, %v874
    %v877 = vunpack.c.l.s4 1966171168
    %v878 = vunpack.c.0.s8 %v877
    %v879 = vlaneseq
    %v880 = vshrl.u32 %v879, 7
    %v881 = vsub.s32 %v878, %v880
    %v882 = vrot.slane %v868, %v881
    %v883 = vcombine.low %v833, %v875
    %v884 = vcombine.high %v833, %v875
    %v885 = vcombine.low %v840, %v882
    %v887 = vunpack.c.l.s4 1966171168
    %v888 = vunpack.c.0.s8 %v887
    %v889 = vlaneseq
    %v890 = vshrl.u32 %v889, 7
    %v891 = vsub.s32 %v888, %v890
    %v892 = vrot.slane %v883, %v891
    %v894 = vunpack.c.l.s4 1966171168
    %v895 = vunpack.c.0.s8 %v894
    %v896 = vlaneseq
    %v897 = vshrl.u32 %v896, 7
    %v898 = vsub.s32 %v895, %v897
    %v899 = vrot.slane %v885, %v898
    %v901 = vunpack.c.l.s4 1966171168
    %v902 = vunpack.c.0.s8 %v901
    %v903 = vlaneseq
    %v904 = vshrl.u32 %v903, 7
    %v905 = vsub.s32 %v902, %v904
    %v906 = vrot.slane %v884, %v905
    %v907 = vcombine.high %v892, %v892
    %v908 = vcombine.high %v906, %v906
    %v909 = vcombine.low %v706, %v723
    %v910 = vcombine.high %v706, %v723
    %v912 = vunpack.c.l.s4 1966171168
    %v913 = vunpack.c.0.s8 %v912
    %v914 = vlaneseq
    %v915 = vshrl.u32 %v914, 7
    %v916 = vsub.s32 %v913, %v915
    %v917 = vrot.slane %v909, %v916
    %v919 = vunpack.c.l.s4 1966171168
    %v920 = vunpack.c.0.s8 %v919
    %v921 = vlaneseq
    %v922 = vshrl.u32 %v921, 7
    %v923 = vsub.s32 %v920, %v922
    %v924 = vrot.slane %v910, %v923
    %v925 = vcombine.low %v875, %v917
    %v926 = vcombine.high %v875, %v917
    %v927 = vcombine.low %v882, %v924
    %v929 = vunpack.c.l.s4 1966171168
    %v930 = vunpack.c.0.s8 %v929
    %v931 = vlaneseq
    %v932 = vshrl.u32 %v931, 7
    %v933 = vsub.s32 %v930, %v932
    %v934 = vrot.slane %v925, %v933
    %v936 = vunpack.c.l.s4 1966171168
    %v937 = vunpack.c.0.s8 %v936
    %v938 = vlaneseq
    %v939 = vshrl.u32 %v938, 7
    %v940 = vsub.s32 %v937, %v939
    %v941 = vrot.slane %v927, %v940
    %v943 = vunpack.c.l.s4 1966171168
    %v944 = vunpack.c.0.s8 %v943
    %v945 = vlaneseq
    %v946 = vshrl.u32 %v945, 7
    %v947 = vsub.s32 %v944, %v946
    %v948 = vrot.slane %v926, %v947
    %v949 = vcombine.high %v934, %v934
    %v950 = vcombine.high %v948, %v948
    %v951 = vcombine.low %v616, %v686
    %v952 = vcombine.high %v616, %v686
    %v953 = vcombine.low %v632, %v687
    %v954 = vcombine.high %v632, %v687
    %v956 = vunpack.c.l.s4 1966171168
    %v957 = vunpack.c.0.s8 %v956
    %v958 = vlaneseq
    %v959 = vshrl.u32 %v958, 7
    %v960 = vsub.s32 %v957, %v959
    %v961 = vrot.slane %v951, %v960
    %v963 = vunpack.c.l.s4 1966171168
    %v964 = vunpack.c.0.s8 %v963
    %v965 = vlaneseq
    %v966 = vshrl.u32 %v965, 7
    %v967 = vsub.s32 %v964, %v966
    %v968 = vrot.slane %v952, %v967
    %v970 = vunpack.c.l.s4 1966171168
    %v971 = vunpack.c.0.s8 %v970
    %v972 = vlaneseq
    %v973 = vshrl.u32 %v972, 7
    %v974 = vsub.s32 %v971, %v973
    %v975 = vrot.slane %v953, %v974
    %v977 = vunpack.c.l.s4 1966171168
    %v978 = vunpack.c.0.s8 %v977
    %v979 = vlaneseq
    %v980 = vshrl.u32 %v979, 7
    %v981 = vsub.s32 %v978, %v980
    %v982 = vrot.slane %v954, %v981
    %v983 = vcombine.low %v961, %v975
    %v984 = vcombine.high %v961, %v975
    %v985 = vcombine.low %v968, %v982
    %v987 = vunpack.c.l.s4 1966171168
    %v988 = vunpack.c.0.s8 %v987
    %v989 = vlaneseq
    %v990 = vshrl.u32 %v989, 7
    %v991 = vsub.s32 %v988, %v990
    %v992 = vrot.slane %v983, %v991
    %v994 = vunpack.c.l.s4 1966171168
    %v995 = vunpack.c.0.s8 %v994
    %v996 = vlaneseq
    %v997 = vshrl.u32 %v996, 7
    %v998 = vsub.s32 %v995, %v997
    %v999 = vrot.slane %v985, %v998
    %v1001 = vunpack.c.l.s4 1966171168
    %v1002 = vunpack.c.0.s8 %v1001
    %v1003 = vlaneseq
    %v1004 = vshrl.u32 %v1003, 7
    %v1005 = vsub.s32 %v1002, %v1004
    %v1006 = vrot.slane %v984, %v1005
    %v1007 = vcombine.high %v992, %v992
    %v1008 = vcombine.high %v1006, %v1006
    %v1009 = vcombine.low %v648, %v688
    %v1010 = vcombine.high %v648, %v688
    %v1012 = vunpack.c.l.s4 1966171168
    %v1013 = vunpack.c.0.s8 %v1012
    %v1014 = vlaneseq
    %v1015 = vshrl.u32 %v1014, 7
    %v1016 = vsub.s32 %v1013, %v1015
    %v1017 = vrot.slane %v1009, %v1016
    %v1019 = vunpack.c.l.s4 1966171168
    %v1020 = vunpack.c.0.s8 %v1019
    %v1021 = vlaneseq
    %v1022 = vshrl.u32 %v1021, 7
    %v1023 = vsub.s32 %v1020, %v1022
    %v1024 = vrot.slane %v1010, %v1023
    %v1025 = vcombine.low %v975, %v1017
    %v1026 = vcombine.high %v975, %v1017
    %v1027 = vcombine.low %v982, %v1024
    %v1029 = vunpack.c.l.s4 1966171168
    %v1030 = vunpack.c.0.s8 %v1029
    %v1031 = vlaneseq
    %v1032 = vshrl.u32 %v1031, 7
    %v1033 = vsub.s32 %v1030, %v1032
    %v1034 = vrot.slane %v1025, %v1033
    %v1036 = vunpack.c.l.s4 1966171168
    %v1037 = vunpack.c.0.s8 %v1036
    %v1038 = vlaneseq
    %v1039 = vshrl.u32 %v1038, 7
    %v1040 = vsub.s32 %v1037, %v1039
    %v1041 = vrot.slane %v1027, %v1040
    %v1043 = vunpack.c.l.s4 1966171168
    %v1044 = vunpack.c.0.s8 %v1043
    %v1045 = vlaneseq
    %v1046 = vshrl.u32 %v1045, 7
    %v1047 = vsub.s32 %v1044, %v1046
    %v1048 = vrot.slane %v1026, %v1047
    %v1049 = vcombine.high %v1034, %v1034
    %v1050 = vcombine.high %v1048, %v1048
    %v1051 = vcombine.low %v664, %v689
    %v1052 = vcombine.high %v664, %v689
    %v1054 = vunpack.c.l.s4 1966171168
    %v1055 = vunpack.c.0.s8 %v1054
    %v1056 = vlaneseq
    %v1057 = vshrl.u32 %v1056, 7
    %v1058 = vsub.s32 %v1055, %v1057
    %v1059 = vrot.slane %v1051, %v1058
    %v1061 = vunpack.c.l.s4 1966171168
    %v1062 = vunpack.c.0.s8 %v1061
    %v1063 = vlaneseq
    %v1064 = vshrl.u32 %v1063, 7
    %v1065 = vsub.s32 %v1062, %v1064
    %v1066 = vrot.slane %v1052, %v1065
    %v1067 = vcombine.low %v1017, %v1059
    %v1068 = vcombine.high %v1017, %v1059
    %v1069 = vcombine.low %v1024, %v1066
    %v1071 = vunpack.c.l.s4 1966171168
    %v1072 = vunpack.c.0.s8 %v1071
    %v1073 = vlaneseq
    %v1074 = vshrl.u32 %v1073, 7
    %v1075 = vsub.s32 %v1072, %v1074
    %v1076 = vrot.slane %v1067, %v1075
    %v1078 = vunpack.c.l.s4 1966171168
    %v1079 = vunpack.c.0.s8 %v1078
    %v1080 = vlaneseq
    %v1081 = vshrl.u32 %v1080, 7
    %v1082 = vsub.s32 %v1079, %v1081
    %v1083 = vrot.slane %v1069, %v1082
    %v1085 = vunpack.c.l.s4 1966171168
    %v1086 = vunpack.c.0.s8 %v1085
    %v1087 = vlaneseq
    %v1088 = vshrl.u32 %v1087, 7
    %v1089 = vsub.s32 %v1086, %v1088
    %v1090 = vrot.slane %v1068, %v1089
    %v1091 = vcombine.high %v1076, %v1076
    %v1092 = vcombine.high %v1090, %v1090
    %v1093 = vcombine.low %v680, %v690
    %v1094 = vcombine.high %v680, %v690
    %v1096 = vunpack.c.l.s4 1966171168
    %v1097 = vunpack.c.0.s8 %v1096
    %v1098 = vlaneseq
    %v1099 = vshrl.u32 %v1098, 7
    %v1100 = vsub.s32 %v1097, %v1099
    %v1101 = vrot.slane %v1093, %v1100
    %v1103 = vunpack.c.l.s4 1966171168
    %v1104 = vunpack.c.0.s8 %v1103
    %v1105 = vlaneseq
    %v1106 = vshrl.u32 %v1105, 7
    %v1107 = vsub.s32 %v1104, %v1106
    %v1108 = vrot.slane %v1094, %v1107
    %v1109 = vcombine.low %v1059, %v1101
    %v1110 = vcombine.high %v1059, %v1101
    %v1111 = vcombine.low %v1066, %v1108
    %v1113 = vunpack.c.l.s4 1966171168
    %v1114 = vunpack.c.0.s8 %v1113
    %v1115 = vlaneseq
    %v1116 = vshrl.u32 %v1115, 7
    %v1117 = vsub.s32 %v1114, %v1116
    %v1118 = vrot.slane %v1109, %v1117
    %v1120 = vunpack.c.l.s4 1966171168
    %v1121 = vunpack.c.0.s8 %v1120
    %v1122 = vlaneseq
    %v1123 = vshrl.u32 %v1122, 7
    %v1124 = vsub.s32 %v1121, %v1123
    %v1125 = vrot.slane %v1111, %v1124
    %v1127 = vunpack.c.l.s4 1966171168
    %v1128 = vunpack.c.0.s8 %v1127
    %v1129 = vlaneseq
    %v1130 = vshrl.u32 %v1129, 7
    %v1131 = vsub.s32 %v1128, %v1130
    %v1132 = vrot.slane %v1110, %v1131
    %v1133 = vcombine.high %v1118, %v1118
    %v1134 = vcombine.high %v1132, %v1132
    %v1135 = vcombine.low %v722, %v724
    %v1136 = vcombine.high %v722, %v724
    %v1138 = vunpack.c.l.s4 1966171168
    %v1139 = vunpack.c.0.s8 %v1138
    %v1140 = vlaneseq
    %v1141 = vshrl.u32 %v1140, 7
    %v1142 = vsub.s32 %v1139, %v1141
    %v1143 = vrot.slane %v1135, %v1142
    %v1145 = vunpack.c.l.s4 1966171168
    %v1146 = vunpack.c.0.s8 %v1145
    %v1147 = vlaneseq
    %v1148 = vshrl.u32 %v1147, 7
    %v1149 = vsub.s32 %v1146, %v1148
    %v1150 = vrot.slane %v1136, %v1149
    %v1151 = vcombine.low %v1101, %v1143
    %v1152 = vcombine.high %v1101, %v1143
    %v1153 = vcombine.low %v1108, %v1150
    %v1155 = vunpack.c.l.s4 1966171168
    %v1156 = vunpack.c.0.s8 %v1155
    %v1157 = vlaneseq
    %v1158 = vshrl.u32 %v1157, 7
    %v1159 = vsub.s32 %v1156, %v1158
    %v1160 = vrot.slane %v1151, %v1159
    %v1162 = vunpack.c.l.s4 1966171168
    %v1163 = vunpack.c.0.s8 %v1162
    %v1164 = vlaneseq
    %v1165 = vshrl.u32 %v1164, 7
    %v1166 = vsub.s32 %v1163, %v1165
    %v1167 = vrot.slane %v1153, %v1166
    %v1169 = vunpack.c.l.s4 1966171168
    %v1170 = vunpack.c.0.s8 %v1169
    %v1171 = vlaneseq
    %v1172 = vshrl.u32 %v1171, 7
    %v1173 = vsub.s32 %v1170, %v1172
    %v1174 = vrot.slane %v1152, %v1173
    %v1175 = vcombine.high %v1160, %v1160
    %v1176 = vcombine.high %v1174, %v1174
    %v1177 = vcombine.low %v766, %v780
    %v1178 = vcombine.low %v781, %v782
    %v1179 = vcombine.low %v773, %v808
    %v1180 = vcombine.low %v822, %v823
    %v1182 = vunpack.c.l.s4 1966171168
    %v1183 = vunpack.c.0.s8 %v1182
    %v1184 = vlaneseq
    %v1185 = vshrl.u32 %v1184, 7
    %v1186 = vsub.s32 %v1183, %v1185
    %v1187 = vrot.slane %v1177, %v1186
    %v1189 = vunpack.c.l.s4 1966171168
    %v1190 = vunpack.c.0.s8 %v1189
    %v1191 = vlaneseq
    %v1192 = vshrl.u32 %v1191, 7
    %v1193 = vsub.s32 %v1190, %v1192
    %v1194 = vrot.slane %v1178, %v1193
    %v1196 = vunpack.c.l.s4 1966171168
    %v1197 = vunpack.c.0.s8 %v1196
    %v1198 = vlaneseq
    %v1199 = vshrl.u32 %v1198, 7
    %v1200 = vsub.s32 %v1197, %v1199
    %v1201 = vrot.slane %v1179, %v1200
    %v1203 = vunpack.c.l.s4 1966171168
    %v1204 = vunpack.c.0.s8 %v1203
    %v1205 = vlaneseq
    %v1206 = vshrl.u32 %v1205, 7
    %v1207 = vsub.s32 %v1204, %v1206
    %v1208 = vrot.slane %v1180, %v1207
    %v1209 = vcombine.low %v1187, %v1194
    %v1210 = vcombine.high %v1187, %v1194
    %v1211 = vcombine.low %v1201, %v1208
    %v1212 = vcombine.high %v1201, %v1208
    %v1214 = vunpack.c.l.s4 1966171168
    %v1215 = vunpack.c.0.s8 %v1214
    %v1216 = vlaneseq
    %v1217 = vshrl.u32 %v1216, 7
    %v1218 = vsub.s32 %v1215, %v1217
    %v1219 = vrot.slane %v1209, %v1218
    %v1221 = vunpack.c.l.s4 1966171168
    %v1222 = vunpack.c.0.s8 %v1221
    %v1223 = vlaneseq
    %v1224 = vshrl.u32 %v1223, 7
    %v1225 = vsub.s32 %v1222, %v1224
    %v1226 = vrot.slane %v1210, %v1225
    %v1228 = vunpack.c.l.s4 1966171168
    %v1229 = vunpack.c.0.s8 %v1228
    %v1230 = vlaneseq
    %v1231 = vshrl.u32 %v1230, 7
    %v1232 = vsub.s32 %v1229, %v1231
    %v1233 = vrot.slane %v1211, %v1232
    %v1235 = vunpack.c.l.s4 1966171168
    %v1236 = vunpack.c.0.s8 %v1235
    %v1237 = vlaneseq
    %v1238 = vshrl.u32 %v1237, 7
    %v1239 = vsub.s32 %v1236, %v1238
    %v1240 = vrot.slane %v1212, %v1239
    %v1241 = vcombine.low %v1219, %v1233
    %v1242 = vcombine.high %v1219, %v1233
    %v1243 = vcombine.low %v1226, %v1240
    %v1244 = vcombine.high %v1226, %v1240
    %v1245 = vcombine.low %v824, %v815
    %v1246 = vcombine.low %v850, %v864
    %v1247 = vcombine.low %v865, %v866
    %v1248 = vcombine.low %v857, %v892
    %v1250 = vunpack.c.l.s4 1966171168
    %v1251 = vunpack.c.0.s8 %v1250
    %v1252 = vlaneseq
    %v1253 = vshrl.u32 %v1252, 7
    %v1254 = vsub.s32 %v1251, %v1253
    %v1255 = vrot.slane %v1245, %v1254
    %v1257 = vunpack.c.l.s4 1966171168
    %v1258 = vunpack.c.0.s8 %v1257
    %v1259 = vlaneseq
    %v1260 = vshrl.u32 %v1259, 7
    %v1261 = vsub.s32 %v1258, %v1260
    %v1262 = vrot.slane %v1246, %v1261
    %v1264 = vunpack.c.l.s4 1966171168
    %v1265 = vunpack.c.0.s8 %v1264
    %v1266 = vlaneseq
    %v1267 = vshrl.u32 %v1266, 7
    %v1268 = vsub.s32 %v1265, %v1267
    %v1269 = vrot.slane %v1247, %v1268
    %v1271 = vunpack.c.l.s4 1966171168
    %v1272 = vunpack.c.0.s8 %v1271
    %v1273 = vlaneseq
    %v1274 = vshrl.u32 %v1273, 7
    %v1275 = vsub.s32 %v1272, %v1274
    %v1276 = vrot.slane %v1248, %v1275
    %v1277 = vcombine.low %v1255, %v1262
    %v1278 = vcombine.high %v1255, %v1262
    %v1279 = vcombine.low %v1269, %v1276
    %v1280 = vcombine.high %v1269, %v1276
    %v1282 = vunpack.c.l.s4 1966171168
    %v1283 = vunpack.c.0.s8 %v1282
    %v1284 = vlaneseq
    %v1285 = vshrl.u32 %v1284, 7
    %v1286 = vsub.s32 %v1283, %v1285
    %v1287 = vrot.slane %v1277, %v1286
    %v1289 = vunpack.c.l.s4 1966171168
    %v1290 = vunpack.c.0.s8 %v1289
    %v1291 = vlaneseq
    %v1292 = vshrl.u32 %v1291, 7
    %v1293 = vsub.s32 %v1290, %v1292
    %v1294 = vrot.slane %v1278, %v1293
    %v1296 = vunpack.c.l.s4 1966171168
    %v1297 = vunpack.c.0.s8 %v1296
    %v1298 = vlaneseq
    %v1299 = vshrl.u32 %v1298, 7
    %v1300 = vsub.s32 %v1297, %v1299
    %v1301 = vrot.slane %v1279, %v1300
    %v1303 = vunpack.c.l.s4 1966171168
    %v1304 = vunpack.c.0.s8 %v1303
    %v1305 = vlaneseq
    %v1306 = vshrl.u32 %v1305, 7
    %v1307 = vsub.s32 %v1304, %v1306
    %v1308 = vrot.slane %v1280, %v1307
    %v1309 = vcombine.low %v1287, %v1301
    %v1310 = vcombine.high %v1287, %v1301
    %v1311 = vcombine.low %v1294, %v1308
    %v1312 = vcombine.high %v1294, %v1308
    %v1313 = vcombine.low %v906, %v907
    %v1314 = vcombine.low %v908, %v899
    %v1315 = vcombine.low %v934, %v948
    %v1316 = vcombine.low %v949, %v950
    %v1318 = vunpack.c.l.s4 1966171168
    %v1319 = vunpack.c.0.s8 %v1318
    %v1320 = vlaneseq
    %v1321 = vshrl.u32 %v1320, 7
    %v1322 = vsub.s32 %v1319, %v1321
    %v1323 = vrot.slane %v1313, %v1322
    %v1325 = vunpack.c.l.s4 1966171168
    %v1326 = vunpack.c.0.s8 %v1325
    %v1327 = vlaneseq
    %v1328 = vshrl.u32 %v1327, 7
    %v1329 = vsub.s32 %v1326, %v1328
    %v1330 = vrot.slane %v1314, %v1329
    %v1332 = vunpack.c.l.s4 1966171168
    %v1333 = vunpack.c.0.s8 %v1332
    %v1334 = vlaneseq
    %v1335 = vshrl.u32 %v1334, 7
    %v1336 = vsub.s32 %v1333, %v1335
    %v1337 = vrot.slane %v1315, %v1336
    %v1339 = vunpack.c.l.s4 1966171168
    %v1340 = vunpack.c.0.s8 %v1339
    %v1341 = vlaneseq
    %v1342 = vshrl.u32 %v1341, 7
    %v1343 = vsub.s32 %v1340, %v1342
    %v1344 = vrot.slane %v1316, %v1343
    %v1345 = vcombine.low %v1323, %v1330
    %v1346 = vcombine.high %v1323, %v1330
    %v1347 = vcombine.low %v1337, %v1344
    %v1348 = vcombine.high %v1337, %v1344
    %v1350 = vunpack.c.l.s4 1966171168
    %v1351 = vunpack.c.0.s8 %v1350
    %v1352 = vlaneseq
    %v1353 = vshrl.u32 %v1352, 7
    %v1354 = vsub.s32 %v1351, %v1353
    %v1355 = vrot.slane %v1345, %v1354
    %v1357 = vunpack.c.l.s4 1966171168
    %v1358 = vunpack.c.0.s8 %v1357
    %v1359 = vlaneseq
    %v1360 = vshrl.u32 %v1359, 7
    %v1361 = vsub.s32 %v1358, %v1360
    %v1362 = vrot.slane %v1346, %v1361
    %v1364 = vunpack.c.l.s4 1966171168
    %v1365 = vunpack.c.0.s8 %v1364
    %v1366 = vlaneseq
    %v1367 = vshrl.u32 %v1366, 7
    %v1368 = vsub.s32 %v1365, %v1367
    %v1369 = vrot.slane %v1347, %v1368
    %v1371 = vunpack.c.l.s4 1966171168
    %v1372 = vunpack.c.0.s8 %v1371
    %v1373 = vlaneseq
    %v1374 = vshrl.u32 %v1373, 7
    %v1375 = vsub.s32 %v1372, %v1374
    %v1376 = vrot.slane %v1348, %v1375
    %v1377 = vcombine.low %v1355, %v1369
    %v1378 = vcombine.high %v1355, %v1369
    %v1379 = vcombine.low %v1362, %v1376
    %v1380 = vcombine.high %v1362, %v1376
    %v1381 = vcombine.low %v941, %v992
    %v1382 = vcombine.low %v1006, %v1007
    %v1383 = vcombine.low %v1008, %v999
    %v1384 = vcombine.low %v1034, %v1048
    %v1386 = vunpack.c.l.s4 1966171168
    %v1387 = vunpack.c.0.s8 %v1386
    %v1388 = vlaneseq
    %v1389 = vshrl.u32 %v1388, 7
    %v1390 = vsub.s32 %v1387, %v1389
    %v1391 = vrot.slane %v1381, %v1390
    %v1393 = vunpack.c.l.s4 1966171168
    %v1394 = vunpack.c.0.s8 %v1393
    %v1395 = vlaneseq
    %v1396 = vshrl.u32 %v1395, 7
    %v1397 = vsub.s32 %v1394, %v1396
    %v1398 = vrot.slane %v1382, %v1397
    %v1400 = vunpack.c.l.s4 1966171168
    %v1401 = vunpack.c.0.s8 %v1400
    %v1402 = vlaneseq
    %v1403 = vshrl.u32 %v1402, 7
    %v1404 = vsub.s32 %v1401, %v1403
    %v1405 = vrot.slane %v1383, %v1404
    %v1407 = vunpack.c.l.s4 1966171168
    %v1408 = vunpack.c.0.s8 %v1407
    %v1409 = vlaneseq
    %v1410 = vshrl.u32 %v1409, 7
    %v1411 = vsub.s32 %v1408, %v1410
    %v1412 = vrot.slane %v1384, %v1411
    %v1413 = vcombine.low %v1391, %v1398
    %v1414 = vcombine.high %v1391, %v1398
    %v1415 = vcombine.low %v1405, %v1412
    %v1416 = vcombine.high %v1405, %v1412
    %v1418 = vunpack.c.l.s4 1966171168
    %v1419 = vunpack.c.0.s8 %v1418
    %v1420 = vlaneseq
    %v1421 = vshrl.u32 %v1420, 7
    %v1422 = vsub.s32 %v1419, %v1421
    %v1423 = vrot.slane %v1413, %v1422
    %v1425 = vunpack.c.l.s4 1966171168
    %v1426 = vunpack.c.0.s8 %v1425
    %v1427 = vlaneseq
    %v1428 = vshrl.u32 %v1427, 7
    %v1429 = vsub.s32 %v1426, %v1428
    %v1430 = vrot.slane %v1414, %v1429
    %v1432 = vunpack.c.l.s4 1966171168
    %v1433 = vunpack.c.0.s8 %v1432
    %v1434 = vlaneseq
    %v1435 = vshrl.u32 %v1434, 7
    %v1436 = vsub.s32 %v1433, %v1435
    %v1437 = vrot.slane %v1415, %v1436
    %v1439 = vunpack.c.l.s4 1966171168
    %v1440 = vunpack.c.0.s8 %v1439
    %v1441 = vlaneseq
    %v1442 = vshrl.u32 %v1441, 7
    %v1443 = vsub.s32 %v1440, %v1442
    %v1444 = vrot.slane %v1416, %v1443
    %v1445 = vcombine.low %v1423, %v1437
    %v1446 = vcombine.high %v1423, %v1437
    %v1447 = vcombine.low %v1430, %v1444
    %v1448 = vcombine.high %v1430, %v1444
    %v1449 = vcombine.low %v1049, %v1050
    %v1450 = vcombine.low %v1041, %v1076
    %v1451 = vcombine.low %v1090, %v1091
    %v1452 = vcombine.low %v1092, %v1083
    %v1454 = vunpack.c.l.s4 1966171168
    %v1455 = vunpack.c.0.s8 %v1454
    %v1456 = vlaneseq
    %v1457 = vshrl.u32 %v1456, 7
    %v1458 = vsub.s32 %v1455, %v1457
    %v1459 = vrot.slane %v1449, %v1458
    %v1461 = vunpack.c.l.s4 1966171168
    %v1462 = vunpack.c.0.s8 %v1461
    %v1463 = vlaneseq
    %v1464 = vshrl.u32 %v1463, 7
    %v1465 = vsub.s32 %v1462, %v1464
    %v1466 = vrot.slane %v1450, %v1465
    %v1468 = vunpack.c.l.s4 1966171168
    %v1469 = vunpack.c.0.s8 %v1468
    %v1470 = vlaneseq
    %v1471 = vshrl.u32 %v1470, 7
    %v1472 = vsub.s32 %v1469, %v1471
    %v1473 = vrot.slane %v1451, %v1472
    %v1475 = vunpack.c.l.s4 1966171168
    %v1476 = vunpack.c.0.s8 %v1475
    %v1477 = vlaneseq
    %v1478 = vshrl.u32 %v1477, 7
    %v1479 = vsub.s32 %v1476, %v1478
    %v1480 = vrot.slane %v1452, %v1479
    %v1481 = vcombine.low %v1459, %v1466
    %v1482 = vcombine.high %v1459, %v1466
    %v1483 = vcombine.low %v1473, %v1480
    %v1484 = vcombine.high %v1473, %v1480
    %v1486 = vunpack.c.l.s4 1966171168
    %v1487 = vunpack.c.0.s8 %v1486
    %v1488 = vlaneseq
    %v1489 = vshrl.u32 %v1488, 7
    %v1490 = vsub.s32 %v1487, %v1489
    %v1491 = vrot.slane %v1481, %v1490
    %v1493 = vunpack.c.l.s4 1966171168
    %v1494 = vunpack.c.0.s8 %v1493
    %v1495 = vlaneseq
    %v1496 = vshrl.u32 %v1495, 7
    %v1497 = vsub.s32 %v1494, %v1496
    %v1498 = vrot.slane %v1482, %v1497
    %v1500 = vunpack.c.l.s4 1966171168
    %v1501 = vunpack.c.0.s8 %v1500
    %v1502 = vlaneseq
    %v1503 = vshrl.u32 %v1502, 7
    %v1504 = vsub.s32 %v1501, %v1503
    %v1505 = vrot.slane %v1483, %v1504
    %v1507 = vunpack.c.l.s4 1966171168
    %v1508 = vunpack.c.0.s8 %v1507
    %v1509 = vlaneseq
    %v1510 = vshrl.u32 %v1509, 7
    %v1511 = vsub.s32 %v1508, %v1510
    %v1512 = vrot.slane %v1484, %v1511
    %v1513 = vcombine.low %v1491, %v1505
    %v1514 = vcombine.high %v1491, %v1505
    %v1515 = vcombine.low %v1498, %v1512
    %v1516 = vcombine.high %v1498, %v1512
    %v1517 = vcombine.low %v1118, %v1132
    %v1518 = vcombine.low %v1133, %v1134
    %v1519 = vcombine.low %v1125, %v1160
    %v1520 = vcombine.low %v1174, %v1175
    %v1522 = vunpack.c.l.s4 1966171168
    %v1523 = vunpack.c.0.s8 %v1522
    %v1524 = vlaneseq
    %v1525 = vshrl.u32 %v1524, 7
    %v1526 = vsub.s32 %v1523, %v1525
    %v1527 = vrot.slane %v1517, %v1526
    %v1529 = vunpack.c.l.s4 1966171168
    %v1530 = vunpack.c.0.s8 %v1529
    %v1531 = vlaneseq
    %v1532 = vshrl.u32 %v1531, 7
    %v1533 = vsub.s32 %v1530, %v1532
    %v1534 = vrot.slane %v1518, %v1533
    %v1536 = vunpack.c.l.s4 1966171168
    %v1537 = vunpack.c.0.s8 %v1536
    %v1538 = vlaneseq
    %v1539 = vshrl.u32 %v1538, 7
    %v1540 = vsub.s32 %v1537, %v1539
    %v1541 = vrot.slane %v1519, %v1540
    %v1543 = vunpack.c.l.s4 1966171168
    %v1544 = vunpack.c.0.s8 %v1543
    %v1545 = vlaneseq
    %v1546 = vshrl.u32 %v1545, 7
    %v1547 = vsub.s32 %v1544, %v1546
    %v1548 = vrot.slane %v1520, %v1547
    %v1549 = vcombine.low %v1527, %v1534
    %v1550 = vcombine.high %v1527, %v1534
    %v1551 = vcombine.low %v1541, %v1548
    %v1552 = vcombine.high %v1541, %v1548
    %v1554 = vunpack.c.l.s4 1966171168
    %v1555 = vunpack.c.0.s8 %v1554
    %v1556 = vlaneseq
    %v1557 = vshrl.u32 %v1556, 7
    %v1558 = vsub.s32 %v1555, %v1557
    %v1559 = vrot.slane %v1549, %v1558
    %v1561 = vunpack.c.l.s4 1966171168
    %v1562 = vunpack.c.0.s8 %v1561
    %v1563 = vlaneseq
    %v1564 = vshrl.u32 %v1563, 7
    %v1565 = vsub.s32 %v1562, %v1564
    %v1566 = vrot.slane %v1550, %v1565
    %v1568 = vunpack.c.l.s4 1966171168
    %v1569 = vunpack.c.0.s8 %v1568
    %v1570 = vlaneseq
    %v1571 = vshrl.u32 %v1570, 7
    %v1572 = vsub.s32 %v1569, %v1571
    %v1573 = vrot.slane %v1551, %v1572
    %v1575 = vunpack.c.l.s4 1966171168
    %v1576 = vunpack.c.0.s8 %v1575
    %v1577 = vlaneseq
    %v1578 = vshrl.u32 %v1577, 7
    %v1579 = vsub.s32 %v1576, %v1578
    %v1580 = vrot.slane %v1552, %v1579
    %v1581 = vcombine.low %v1559, %v1573
    %v1582 = vcombine.high %v1559, %v1573
    %v1583 = vcombine.low %v1566, %v1580
    %v1584 = vcombine.high %v1566, %v1580
    %v1585 = vcombine.low %v1176, %v1167
    %v1587 = vunpack.c.l.s4 1966171168
    %v1588 = vunpack.c.0.s8 %v1587
    %v1589 = vlaneseq
    %v1590 = vshrl.u32 %v1589, 7
    %v1591 = vsub.s32 %v1588, %v1590
    %v1592 = vrot.slane %v1585, %v1591
    %v1593 = vcombine.high %v1592, %v1592
    %v1595 = vunpack.c.l.s4 1966171168
    %v1596 = vunpack.c.0.s8 %v1595
    %v1597 = vlaneseq
    %v1598 = vshrl.u32 %v1597, 7
    %v1599 = vsub.s32 %v1596, %v1598
    %v1600 = vrot.slane %v1592, %v1599
    %v1602 = vunpack.c.l.s4 1966171168
    %v1603 = vunpack.c.0.s8 %v1602
    %v1604 = vlaneseq
    %v1605 = vshrl.u32 %v1604, 7
    %v1606 = vsub.s32 %v1603, %v1605
    %v1607 = vrot.slane %v1593, %v1606
    %v1608 = vcombine.high %v1600, %v1600
    %v1609 = vcombine.high %v1607, %v1607
    %v1638 = vpack.c.bf16 %v1309, %v1241
    %v1639 = vpack.c.bf16 %v1311, %v1243
    %v1640 = vpack.c.bf16 %v1310, %v1242
    %v1641 = vpack.c.bf16 %v1312, %v1244
    %v1642 = vpack.c.bf16 %v1445, %v1377
    %v1643 = vpack.c.bf16 %v1447, %v1379
    %v1644 = vpack.c.bf16 %v1446, %v1378
    %v1645 = vpack.c.bf16 %v1448, %v1380
    %v1646 = vpack.c.bf16 %v1581, %v1513
    %v1647 = vpack.c.bf16 %v1583, %v1515
    %v1648 = vpack.c.bf16 %v1582, %v1514
    %v1649 = vpack.c.bf16 %v1584, %v1516
    %v1650 = vpack.c.bf16 %v1600, %v1600
    %v1651 = vpack.c.bf16 %v1607, %v1607
    %v1652 = vpack.c.bf16 %v1608, %v1608
    %v1653 = vpack.c.bf16 %v1609, %v1609
    %v1654 = vlaneseq
    %v1655 = vshrl.u32 %v1654, 7
    %v1656 = vsub.s32 1, %v1655
    %v1657 = vrot.slane %v28, %v1656
    %v1722 = vunpack.c.l.b16 %v377
    %v1723 = vunpack.c.l.b16 %v378
    %v1724 = vunpack.c.l.b16 %v379
    %v1725 = vunpack.c.l.b16 %v380
    %v1726 = vunpack.c.l.b16 %v381
    %v1727 = vunpack.c.l.b16 %v382
    %v1728 = vunpack.c.l.b16 %v383
    %v1729 = vunpack.c.l.b16 %v384
    %v1730 = vunpack.c.l.b16 %v385
    %v1731 = vunpack.c.l.b16 %v386
    %v1732 = vunpack.c.l.b16 %v387
    %v1733 = vunpack.c.l.b16 %v388
    %v1734 = vunpack.c.l.b16 %v389
    %v1735 = vunpack.c.l.b16 %v390
    %v1736 = vunpack.c.l.b16 %v391
    %v1737 = vunpack.c.l.b16 %v392
    %v1738 = vunpack.c.l.b16 %v393
    %v1739 = vunpack.c.l.b16 %v394
    %v1740 = vunpack.c.l.b16 %v395
    %v1741 = vunpack.c.l.b16 %v396
    %v1742 = vunpack.c.l.b16 %v397
    %v1743 = vunpack.c.l.b16 %v398
    %v1744 = vunpack.c.l.b16 %v399
    %v1745 = vunpack.c.l.b16 %v400
    %v1746 = vunpack.c.l.b16 %v401
    %v1747 = vunpack.c.l.b16 %v402
    %v1748 = vunpack.c.l.b16 %v403
    %v1749 = vunpack.c.l.b16 %v404
    %v1750 = vunpack.c.l.b16 %v405
    %v1751 = vunpack.c.l.b16 %v406
    %v1752 = vunpack.c.l.b16 %v407
    %v1753 = vunpack.c.l.b16 %v408
    %v1754 = vunpack.c.l.b16 %v409
    %v1755 = vunpack.c.l.b16 %v410
    %v1756 = vunpack.c.l.b16 %v411
    %v1757 = vunpack.c.l.b16 %v412
    %v1758 = vunpack.c.l.b16 %v413
    %v1759 = vunpack.c.l.b16 %v414
    %v1760 = vunpack.c.l.b16 %v415
    %v1761 = vunpack.c.l.b16 %v416
    %v1762 = vunpack.c.l.b16 %v417
    %v1763 = vunpack.c.l.b16 %v418
    %v1764 = vunpack.c.l.b16 %v419
    %v1765 = vunpack.c.l.b16 %v420
    %v1766 = vunpack.c.l.b16 %v421
    %v1767 = vunpack.c.l.b16 %v422
    %v1768 = vunpack.c.l.b16 %v423
    %v1769 = vunpack.c.l.b16 %v424
    %v1770 = vunpack.c.l.b16 %v425
    %v1771 = vunpack.c.l.b16 %v426
    %v1772 = vunpack.c.l.b16 %v427
    %v1773 = vunpack.c.l.b16 %v428
    %v1774 = vunpack.c.l.b16 %v429
    %v1775 = vunpack.c.l.b16 %v430
    %v1776 = vunpack.c.l.b16 %v431
    %v1777 = vunpack.c.l.b16 %v432
    %v1778 = vunpack.c.l.b16 %v433
    %v1779 = vunpack.c.l.b16 %v434
    %v1780 = vunpack.c.l.b16 %v435
    %v1781 = vunpack.c.l.b16 %v436
    %v1782 = vunpack.c.l.b16 %v437
    %v1783 = vunpack.c.l.b16 %v438
    %v1784 = vunpack.c.l.b16 %v439
    %v1785 = vunpack.c.l.b16 %v440
    %v1786 = vpack.c.b16 %v1723, %v1722
    %v1787 = vpack.c.b16 %v1725, %v1724
    %v1788 = vpack.c.b16 %v1727, %v1726
    %v1789 = vpack.c.b16 %v1729, %v1728
    %v1790 = vpack.c.b16 %v1731, %v1730
    %v1791 = vpack.c.b16 %v1733, %v1732
    %v1792 = vpack.c.b16 %v1735, %v1734
    %v1793 = vpack.c.b16 %v1737, %v1736
    %v1794 = vpack.c.b16 %v1739, %v1738
    %v1795 = vpack.c.b16 %v1741, %v1740
    %v1796 = vpack.c.b16 %v1743, %v1742
    %v1797 = vpack.c.b16 %v1745, %v1744
    %v1798 = vpack.c.b16 %v1747, %v1746
    %v1799 = vpack.c.b16 %v1749, %v1748
    %v1800 = vpack.c.b16 %v1751, %v1750
    %v1801 = vpack.c.b16 %v1753, %v1752
    %v1802 = vpack.c.b16 %v1755, %v1754
    %v1803 = vpack.c.b16 %v1757, %v1756
    %v1804 = vpack.c.b16 %v1759, %v1758
    %v1805 = vpack.c.b16 %v1761, %v1760
    %v1806 = vpack.c.b16 %v1763, %v1762
    %v1807 = vpack.c.b16 %v1765, %v1764
    %v1808 = vpack.c.b16 %v1767, %v1766
    %v1809 = vpack.c.b16 %v1769, %v1768
    %v1810 = vpack.c.b16 %v1771, %v1770
    %v1811 = vpack.c.b16 %v1773, %v1772
    %v1812 = vpack.c.b16 %v1775, %v1774
    %v1813 = vpack.c.b16 %v1777, %v1776
    %v1814 = vpack.c.b16 %v1779, %v1778
    %v1815 = vpack.c.b16 %v1781, %v1780
    %v1816 = vpack.c.b16 %v1783, %v1782
    %v1817 = vpack.c.b16 %v1785, %v1784
    %1850 = vmatprep.subr.bf16.mxu0 0
    %1851 = vmatpush1.bf16.msra.mxu0 %v1786
    %1852 = vmatprep.subr.bf16.mxu0 0
    %1853 = vmatpush1.bf16.msra.mxu0 %v1787
    %1854 = vmatprep.subr.bf16.mxu0 0
    %1855 = vmatpush1.bf16.msra.mxu0 %v1788
    %1856 = vmatprep.subr.bf16.mxu0 0
    %1857 = vmatpush1.bf16.msra.mxu0 %v1789
    %1858 = vmatprep.subr.bf16.mxu0 0
    %1859 = vmatpush1.bf16.msra.mxu0 %v1790
    %1860 = vmatprep.subr.bf16.mxu0 0
    %1861 = vmatpush1.bf16.msra.mxu0 %v1791
    %1862 = vmatprep.subr.bf16.mxu0 0
    %1863 = vmatpush1.bf16.msra.mxu0 %v1792
    %1864 = vmatprep.subr.bf16.mxu0 0
    %1865 = vmatpush1.bf16.msra.mxu0 %v1793
    %1866 = vmatprep.subr.bf16.mxu0 0
    %1867 = vmatpush1.bf16.msra.mxu0 %v1794
    %1868 = vmatprep.subr.bf16.mxu0 0
    %1869 = vmatpush1.bf16.msra.mxu0 %v1795
    %1870 = vmatprep.subr.bf16.mxu0 0
    %1871 = vmatpush1.bf16.msra.mxu0 %v1796
    %1872 = vmatprep.subr.bf16.mxu0 0
    %1873 = vmatpush1.bf16.msra.mxu0 %v1797
    %1874 = vmatprep.subr.bf16.mxu0 0
    %1875 = vmatpush1.bf16.msra.mxu0 %v1798
    %1876 = vmatprep.subr.bf16.mxu0 0
    %1877 = vmatpush1.bf16.msra.mxu0 %v1799
    %1878 = vmatprep.subr.bf16.mxu0 0
    %1879 = vmatpush1.bf16.msra.mxu0 %v1800
    %1880 = vmatprep.subr.bf16.mxu0 0
    %1881 = vmatpush1.bf16.msra.mxu0 %v1801
    %1882 = vmatprep.mubr.bf16.mxu0 %v1639
    %1883 = vmatmul.mubr.bf16.gmra.mrb[0].mxu0 %v1638
    %v1884 = vpop.f32.mrb[0].mxu0
    %v1885 = vadd.f32 %v1657, %v1884
    %v1886 = vpop.f32.mrb[0].mxu0
    %v1887 = vpop.f32.mrb[0].mxu0
    %v1888 = vadd.f32 %v1657, %v1887
    %v1889 = vpop.f32.mrb[0].mxu0
    %1890 = vmatprep.mubr.bf16.mxu0 %v1643
    %1891 = vmatmul.mubr.bf16.gmra.mrb[0].mxu0 %v1642
    %v1892 = vpop.f32.mrb[0].mxu0
    %v1893 = vadd.f32 %v1657, %v1892
    %v1894 = vpop.f32.mrb[0].mxu0
    %v1895 = vpop.f32.mrb[0].mxu0
    %v1896 = vadd.f32 %v1657, %v1895
    %v1897 = vpop.f32.mrb[0].mxu0
    %1898 = vmatprep.mubr.bf16.mxu0 %v1647
    %1899 = vmatmul.mubr.bf16.gmra.mrb[0].mxu0 %v1646
    %v1900 = vpop.f32.mrb[0].mxu0
    %v1901 = vadd.f32 %v1657, %v1900
    %v1902 = vpop.f32.mrb[0].mxu0
    %v1903 = vpop.f32.mrb[0].mxu0
    %v1904 = vadd.f32 %v1657, %v1903
    %v1905 = vpop.f32.mrb[0].mxu0
    %1906 = vmatprep.mubr.bf16.mxu0 %v1651
    %1907 = vmatmul.mubr.bf16.gmra.mrb[0].mxu0 %v1650
    %v1908 = vpop.f32.mrb[0].mxu0
    %v1909 = vadd.f32 %v1657, %v1908
    %v1910 = vpop.f32.mrb[0].mxu0
    %v1911 = vpop.f32.mrb[0].mxu0
    %v1912 = vpop.f32.mrb[0].mxu0
    %1913 = vdwg.mxu0
    %1914 = vmatprep.subr.bf16.mxu0 0
    %1915 = vmatpush1.bf16.msra.mxu0 %v1802
    %1916 = vmatprep.subr.bf16.mxu0 0
    %1917 = vmatpush1.bf16.msra.mxu0 %v1803
    %1918 = vmatprep.subr.bf16.mxu0 0
    %1919 = vmatpush1.bf16.msra.mxu0 %v1804
    %1920 = vmatprep.subr.bf16.mxu0 0
    %1921 = vmatpush1.bf16.msra.mxu0 %v1805
    %1922 = vmatprep.subr.bf16.mxu0 0
    %1923 = vmatpush1.bf16.msra.mxu0 %v1806
    %1924 = vmatprep.subr.bf16.mxu0 0
    %1925 = vmatpush1.bf16.msra.mxu0 %v1807
    %1926 = vmatprep.subr.bf16.mxu0 0
    %1927 = vmatpush1.bf16.msra.mxu0 %v1808
    %1928 = vmatprep.subr.bf16.mxu0 0
    %1929 = vmatpush1.bf16.msra.mxu0 %v1809
    %1930 = vmatprep.subr.bf16.mxu0 0
    %1931 = vmatpush1.bf16.msra.mxu0 %v1810
    %1932 = vmatprep.subr.bf16.mxu0 0
    %1933 = vmatpush1.bf16.msra.mxu0 %v1811
    %1934 = vmatprep.subr.bf16.mxu0 0
    %1935 = vmatpush1.bf16.msra.mxu0 %v1812
    %1936 = vmatprep.subr.bf16.mxu0 0
    %1937 = vmatpush1.bf16.msra.mxu0 %v1813
    %1938 = vmatprep.subr.bf16.mxu0 0
    %1939 = vmatpush1.bf16.msra.mxu0 %v1814
    %1940 = vmatprep.subr.bf16.mxu0 0
    %1941 = vmatpush1.bf16.msra.mxu0 %v1815
    %1942 = vmatprep.subr.bf16.mxu0 0
    %1943 = vmatpush1.bf16.msra.mxu0 %v1816
    %1944 = vmatprep.subr.bf16.mxu0 0
    %1945 = vmatpush1.bf16.msra.mxu0 %v1817
    %1946 = vmatprep.mubr.bf16.mxu0 %v1641
    %1947 = vmatmul.mubr.bf16.gmra.mrb[0].mxu0 %v1640
    %v1948 = vpop.f32.mrb[0].mxu0
    %v1949 = vadd.f32 %v1885, %v1948
    %v1950 = vpop.f32.mrb[0].mxu0
    %v1951 = vpop.f32.mrb[0].mxu0
    %v1952 = vadd.f32 %v1888, %v1951
    %v1953 = vpop.f32.mrb[0].mxu0
    %1954 = vmatprep.mubr.bf16.mxu0 %v1645
    %1955 = vmatmul.mubr.bf16.gmra.mrb[0].mxu0 %v1644
    %v1956 = vpop.f32.mrb[0].mxu0
    %v1957 = vadd.f32 %v1893, %v1956
    %v1958 = vpop.f32.mrb[0].mxu0
    %v1959 = vpop.f32.mrb[0].mxu0
    %v1960 = vadd.f32 %v1896, %v1959
    %v1961 = vpop.f32.mrb[0].mxu0
    %1962 = vmatprep.mubr.bf16.mxu0 %v1649
    %1963 = vmatmul.mubr.bf16.gmra.mrb[0].mxu0 %v1648
    %v1964 = vpop.f32.mrb[0].mxu0
    %v1965 = vadd.f32 %v1901, %v1964
    %v1966 = vpop.f32.mrb[0].mxu0
    %v1967 = vpop.f32.mrb[0].mxu0
    %v1968 = vadd.f32 %v1904, %v1967
    %v1969 = vpop.f32.mrb[0].mxu0
    %1970 = vmatprep.mubr.bf16.mxu0 %v1653
    %1971 = vmatmul.mubr.bf16.gmra.mrb[0].mxu0 %v1652
    %v1972 = vpop.f32.mrb[0].mxu0
    %v1973 = vadd.f32 %v1909, %v1972
    %v1974 = vpop.f32.mrb[0].mxu0
    %v1975 = vpop.f32.mrb[0].mxu0
    %v1976 = vpop.f32.mrb[0].mxu0
    %1977 = vdwg.mxu0
    %v1978 = vmax.f32 %v1949, 0.0
    %v1979 = vmax.f32 %v1952, 0.0
    %v1980 = vmax.f32 %v1957, 0.0
    %v1981 = vmax.f32 %v1960, 0.0
    %v1982 = vmax.f32 %v1965, 0.0
    %v1983 = vmax.f32 %v1968, 0.0
    %v1984 = vmax.f32 %v1973, 0.0
    %v1992 = vcombine.high %v1978, %v1978
    %v1994 = vunpack.c.l.s4 1966171168
    %v1995 = vunpack.c.0.s8 %v1994
    %v1996 = vlaneseq
    %v1997 = vshrl.u32 %v1996, 7
    %v1998 = vsub.s32 %v1995, %v1997
    %v1999 = vrot.slane %v1978, %v1998
    %v2001 = vunpack.c.l.s4 1966171168
    %v2002 = vunpack.c.0.s8 %v2001
    %v2003 = vlaneseq
    %v2004 = vshrl.u32 %v2003, 7
    %v2005 = vsub.s32 %v2002, %v2004
    %v2006 = vrot.slane %v1992, %v2005
    %v2007 = vcombine.high %v1999, %v1999
    %v2008 = vcombine.high %v2006, %v2006
    %v2010 = vunpack.c.l.s4 1966171168
    %v2011 = vunpack.c.0.s8 %v2010
    %v2012 = vlaneseq
    %v2013 = vshrl.u32 %v2012, 7
    %v2014 = vsub.s32 %v2011, %v2013
    %v2015 = vrot.slane %v1999, %v2014
    %v2017 = vunpack.c.l.s4 1966171168
    %v2018 = vunpack.c.0.s8 %v2017
    %v2019 = vlaneseq
    %v2020 = vshrl.u32 %v2019, 7
    %v2021 = vsub.s32 %v2018, %v2020
    %v2022 = vrot.slane %v2006, %v2021
    %v2024 = vunpack.c.l.s4 1966171168
    %v2025 = vunpack.c.0.s8 %v2024
    %v2026 = vlaneseq
    %v2027 = vshrl.u32 %v2026, 7
    %v2028 = vsub.s32 %v2025, %v2027
    %v2029 = vrot.slane %v2007, %v2028
    %v2031 = vunpack.c.l.s4 1966171168
    %v2032 = vunpack.c.0.s8 %v2031
    %v2033 = vlaneseq
    %v2034 = vshrl.u32 %v2033, 7
    %v2035 = vsub.s32 %v2032, %v2034
    %v2036 = vrot.slane %v2008, %v2035
    %v2037 = vcombine.high %v2015, %v2015
    %v2038 = vcombine.high %v2022, %v2022
    %v2039 = vcombine.high %v2029, %v2029
    %v2040 = vcombine.high %v2036, %v2036
    %v2041 = vcombine.high %v1979, %v1979
    %v2043 = vunpack.c.l.s4 1966171168
    %v2044 = vunpack.c.0.s8 %v2043
    %v2045 = vlaneseq
    %v2046 = vshrl.u32 %v2045, 7
    %v2047 = vsub.s32 %v2044, %v2046
    %v2048 = vrot.slane %v1979, %v2047
    %v2050 = vunpack.c.l.s4 1966171168
    %v2051 = vunpack.c.0.s8 %v2050
    %v2052 = vlaneseq
    %v2053 = vshrl.u32 %v2052, 7
    %v2054 = vsub.s32 %v2051, %v2053
    %v2055 = vrot.slane %v2041, %v2054
    %v2056 = vcombine.high %v2048, %v2048
    %v2057 = vcombine.high %v2055, %v2055
    %v2059 = vunpack.c.l.s4 1966171168
    %v2060 = vunpack.c.0.s8 %v2059
    %v2061 = vlaneseq
    %v2062 = vshrl.u32 %v2061, 7
    %v2063 = vsub.s32 %v2060, %v2062
    %v2064 = vrot.slane %v2048, %v2063
    %v2066 = vunpack.c.l.s4 1966171168
    %v2067 = vunpack.c.0.s8 %v2066
    %v2068 = vlaneseq
    %v2069 = vshrl.u32 %v2068, 7
    %v2070 = vsub.s32 %v2067, %v2069
    %v2071 = vrot.slane %v2055, %v2070
    %v2073 = vunpack.c.l.s4 1966171168
    %v2074 = vunpack.c.0.s8 %v2073
    %v2075 = vlaneseq
    %v2076 = vshrl.u32 %v2075, 7
    %v2077 = vsub.s32 %v2074, %v2076
    %v2078 = vrot.slane %v2056, %v2077
    %v2080 = vunpack.c.l.s4 1966171168
    %v2081 = vunpack.c.0.s8 %v2080
    %v2082 = vlaneseq
    %v2083 = vshrl.u32 %v2082, 7
    %v2084 = vsub.s32 %v2081, %v2083
    %v2085 = vrot.slane %v2057, %v2084
    %v2086 = vcombine.high %v2064, %v2064
    %v2087 = vcombine.high %v2071, %v2071
    %v2088 = vcombine.high %v2078, %v2078
    %v2089 = vcombine.high %v2085, %v2085
    %v2090 = vcombine.high %v1980, %v1980
    %v2092 = vunpack.c.l.s4 1966171168
    %v2093 = vunpack.c.0.s8 %v2092
    %v2094 = vlaneseq
    %v2095 = vshrl.u32 %v2094, 7
    %v2096 = vsub.s32 %v2093, %v2095
    %v2097 = vrot.slane %v1980, %v2096
    %v2099 = vunpack.c.l.s4 1966171168
    %v2100 = vunpack.c.0.s8 %v2099
    %v2101 = vlaneseq
    %v2102 = vshrl.u32 %v2101, 7
    %v2103 = vsub.s32 %v2100, %v2102
    %v2104 = vrot.slane %v2090, %v2103
    %v2105 = vcombine.high %v2097, %v2097
    %v2106 = vcombine.high %v2104, %v2104
    %v2108 = vunpack.c.l.s4 1966171168
    %v2109 = vunpack.c.0.s8 %v2108
    %v2110 = vlaneseq
    %v2111 = vshrl.u32 %v2110, 7
    %v2112 = vsub.s32 %v2109, %v2111
    %v2113 = vrot.slane %v2097, %v2112
    %v2115 = vunpack.c.l.s4 1966171168
    %v2116 = vunpack.c.0.s8 %v2115
    %v2117 = vlaneseq
    %v2118 = vshrl.u32 %v2117, 7
    %v2119 = vsub.s32 %v2116, %v2118
    %v2120 = vrot.slane %v2104, %v2119
    %v2122 = vunpack.c.l.s4 1966171168
    %v2123 = vunpack.c.0.s8 %v2122
    %v2124 = vlaneseq
    %v2125 = vshrl.u32 %v2124, 7
    %v2126 = vsub.s32 %v2123, %v2125
    %v2127 = vrot.slane %v2105, %v2126
    %v2129 = vunpack.c.l.s4 1966171168
    %v2130 = vunpack.c.0.s8 %v2129
    %v2131 = vlaneseq
    %v2132 = vshrl.u32 %v2131, 7
    %v2133 = vsub.s32 %v2130, %v2132
    %v2134 = vrot.slane %v2106, %v2133
    %v2135 = vcombine.high %v2113, %v2113
    %v2136 = vcombine.high %v2120, %v2120
    %v2137 = vcombine.high %v2127, %v2127
    %v2138 = vcombine.high %v2134, %v2134
    %v2139 = vcombine.high %v1981, %v1981
    %v2141 = vunpack.c.l.s4 1966171168
    %v2142 = vunpack.c.0.s8 %v2141
    %v2143 = vlaneseq
    %v2144 = vshrl.u32 %v2143, 7
    %v2145 = vsub.s32 %v2142, %v2144
    %v2146 = vrot.slane %v1981, %v2145
    %v2148 = vunpack.c.l.s4 1966171168
    %v2149 = vunpack.c.0.s8 %v2148
    %v2150 = vlaneseq
    %v2151 = vshrl.u32 %v2150, 7
    %v2152 = vsub.s32 %v2149, %v2151
    %v2153 = vrot.slane %v2139, %v2152
    %v2154 = vcombine.high %v2146, %v2146
    %v2155 = vcombine.high %v2153, %v2153
    %v2157 = vunpack.c.l.s4 1966171168
    %v2158 = vunpack.c.0.s8 %v2157
    %v2159 = vlaneseq
    %v2160 = vshrl.u32 %v2159, 7
    %v2161 = vsub.s32 %v2158, %v2160
    %v2162 = vrot.slane %v2146, %v2161
    %v2164 = vunpack.c.l.s4 1966171168
    %v2165 = vunpack.c.0.s8 %v2164
    %v2166 = vlaneseq
    %v2167 = vshrl.u32 %v2166, 7
    %v2168 = vsub.s32 %v2165, %v2167
    %v2169 = vrot.slane %v2153, %v2168
    %v2171 = vunpack.c.l.s4 1966171168
    %v2172 = vunpack.c.0.s8 %v2171
    %v2173 = vlaneseq
    %v2174 = vshrl.u32 %v2173, 7
    %v2175 = vsub.s32 %v2172, %v2174
    %v2176 = vrot.slane %v2154, %v2175
    %v2178 = vunpack.c.l.s4 1966171168
    %v2179 = vunpack.c.0.s8 %v2178
    %v2180 = vlaneseq
    %v2181 = vshrl.u32 %v2180, 7
    %v2182 = vsub.s32 %v2179, %v2181
    %v2183 = vrot.slane %v2155, %v2182
    %v2184 = vcombine.high %v2162, %v2162
    %v2185 = vcombine.high %v2169, %v2169
    %v2186 = vcombine.high %v2176, %v2176
    %v2187 = vcombine.high %v2183, %v2183
    %v2188 = vcombine.high %v1982, %v1982
    %v2190 = vunpack.c.l.s4 1966171168
    %v2191 = vunpack.c.0.s8 %v2190
    %v2192 = vlaneseq
    %v2193 = vshrl.u32 %v2192, 7
    %v2194 = vsub.s32 %v2191, %v2193
    %v2195 = vrot.slane %v1982, %v2194
    %v2197 = vunpack.c.l.s4 1966171168
    %v2198 = vunpack.c.0.s8 %v2197
    %v2199 = vlaneseq
    %v2200 = vshrl.u32 %v2199, 7
    %v2201 = vsub.s32 %v2198, %v2200
    %v2202 = vrot.slane %v2188, %v2201
    %v2203 = vcombine.high %v2195, %v2195
    %v2204 = vcombine.high %v2202, %v2202
    %v2206 = vunpack.c.l.s4 1966171168
    %v2207 = vunpack.c.0.s8 %v2206
    %v2208 = vlaneseq
    %v2209 = vshrl.u32 %v2208, 7
    %v2210 = vsub.s32 %v2207, %v2209
    %v2211 = vrot.slane %v2195, %v2210
    %v2213 = vunpack.c.l.s4 1966171168
    %v2214 = vunpack.c.0.s8 %v2213
    %v2215 = vlaneseq
    %v2216 = vshrl.u32 %v2215, 7
    %v2217 = vsub.s32 %v2214, %v2216
    %v2218 = vrot.slane %v2202, %v2217
    %v2220 = vunpack.c.l.s4 1966171168
    %v2221 = vunpack.c.0.s8 %v2220
    %v2222 = vlaneseq
    %v2223 = vshrl.u32 %v2222, 7
    %v2224 = vsub.s32 %v2221, %v2223
    %v2225 = vrot.slane %v2203, %v2224
    %v2227 = vunpack.c.l.s4 1966171168
    %v2228 = vunpack.c.0.s8 %v2227
    %v2229 = vlaneseq
    %v2230 = vshrl.u32 %v2229, 7
    %v2231 = vsub.s32 %v2228, %v2230
    %v2232 = vrot.slane %v2204, %v2231
    %v2233 = vcombine.high %v2211, %v2211
    %v2234 = vcombine.high %v2218, %v2218
    %v2235 = vcombine.high %v2225, %v2225
    %v2236 = vcombine.high %v2232, %v2232
    %v2237 = vcombine.high %v1983, %v1983
    %v2239 = vunpack.c.l.s4 1966171168
    %v2240 = vunpack.c.0.s8 %v2239
    %v2241 = vlaneseq
    %v2242 = vshrl.u32 %v2241, 7
    %v2243 = vsub.s32 %v2240, %v2242
    %v2244 = vrot.slane %v1983, %v2243
    %v2246 = vunpack.c.l.s4 1966171168
    %v2247 = vunpack.c.0.s8 %v2246
    %v2248 = vlaneseq
    %v2249 = vshrl.u32 %v2248, 7
    %v2250 = vsub.s32 %v2247, %v2249
    %v2251 = vrot.slane %v2237, %v2250
    %v2252 = vcombine.high %v2244, %v2244
    %v2253 = vcombine.high %v2251, %v2251
    %v2255 = vunpack.c.l.s4 1966171168
    %v2256 = vunpack.c.0.s8 %v2255
    %v2257 = vlaneseq
    %v2258 = vshrl.u32 %v2257, 7
    %v2259 = vsub.s32 %v2256, %v2258
    %v2260 = vrot.slane %v2244, %v2259
    %v2262 = vunpack.c.l.s4 1966171168
    %v2263 = vunpack.c.0.s8 %v2262
    %v2264 = vlaneseq
    %v2265 = vshrl.u32 %v2264, 7
    %v2266 = vsub.s32 %v2263, %v2265
    %v2267 = vrot.slane %v2251, %v2266
    %v2269 = vunpack.c.l.s4 1966171168
    %v2270 = vunpack.c.0.s8 %v2269
    %v2271 = vlaneseq
    %v2272 = vshrl.u32 %v2271, 7
    %v2273 = vsub.s32 %v2270, %v2272
    %v2274 = vrot.slane %v2252, %v2273
    %v2276 = vunpack.c.l.s4 1966171168
    %v2277 = vunpack.c.0.s8 %v2276
    %v2278 = vlaneseq
    %v2279 = vshrl.u32 %v2278, 7
    %v2280 = vsub.s32 %v2277, %v2279
    %v2281 = vrot.slane %v2253, %v2280
    %v2282 = vcombine.high %v2260, %v2260
    %v2283 = vcombine.high %v2267, %v2267
    %v2284 = vcombine.high %v2274, %v2274
    %v2285 = vcombine.high %v2281, %v2281
    %v2287 = vunpack.c.l.s4 1966171168
    %v2288 = vunpack.c.0.s8 %v2287
    %v2289 = vlaneseq
    %v2290 = vshrl.u32 %v2289, 7
    %v2291 = vsub.s32 %v2288, %v2290
    %v2292 = vrot.slane %v1984, %v2291
    %v2293 = vcombine.high %v2292, %v2292
    %v2295 = vunpack.c.l.s4 1966171168
    %v2296 = vunpack.c.0.s8 %v2295
    %v2297 = vlaneseq
    %v2298 = vshrl.u32 %v2297, 7
    %v2299 = vsub.s32 %v2296, %v2298
    %v2300 = vrot.slane %v2292, %v2299
    %v2302 = vunpack.c.l.s4 1966171168
    %v2303 = vunpack.c.0.s8 %v2302
    %v2304 = vlaneseq
    %v2305 = vshrl.u32 %v2304, 7
    %v2306 = vsub.s32 %v2303, %v2305
    %v2307 = vrot.slane %v2293, %v2306
    %v2308 = vcombine.low %v2015, %v2029
    %v2309 = vcombine.low %v2037, %v2039
    %v2311 = vunpack.c.l.s4 1966171168
    %v2312 = vunpack.c.0.s8 %v2311
    %v2313 = vlaneseq
    %v2314 = vshrl.u32 %v2313, 7
    %v2315 = vsub.s32 %v2312, %v2314
    %v2316 = vrot.slane %v2308, %v2315
    %v2318 = vunpack.c.l.s4 1966171168
    %v2319 = vunpack.c.0.s8 %v2318
    %v2320 = vlaneseq
    %v2321 = vshrl.u32 %v2320, 7
    %v2322 = vsub.s32 %v2319, %v2321
    %v2323 = vrot.slane %v2309, %v2322
    %v2324 = vcombine.low %v2316, %v2323
    %v2326 = vunpack.c.l.s4 1966171168
    %v2327 = vunpack.c.0.s8 %v2326
    %v2328 = vlaneseq
    %v2329 = vshrl.u32 %v2328, 7
    %v2330 = vsub.s32 %v2327, %v2329
    %v2331 = vrot.slane %v2324, %v2330
    %v2332 = vcombine.low %v2036, %v2038
    %v2333 = vcombine.low %v2040, %v2064
    %v2335 = vunpack.c.l.s4 1966171168
    %v2336 = vunpack.c.0.s8 %v2335
    %v2337 = vlaneseq
    %v2338 = vshrl.u32 %v2337, 7
    %v2339 = vsub.s32 %v2336, %v2338
    %v2340 = vrot.slane %v2332, %v2339
    %v2342 = vunpack.c.l.s4 1966171168
    %v2343 = vunpack.c.0.s8 %v2342
    %v2344 = vlaneseq
    %v2345 = vshrl.u32 %v2344, 7
    %v2346 = vsub.s32 %v2343, %v2345
    %v2347 = vrot.slane %v2333, %v2346
    %v2348 = vcombine.low %v2340, %v2347
    %v2350 = vunpack.c.l.s4 1966171168
    %v2351 = vunpack.c.0.s8 %v2350
    %v2352 = vlaneseq
    %v2353 = vshrl.u32 %v2352, 7
    %v2354 = vsub.s32 %v2351, %v2353
    %v2355 = vrot.slane %v2348, %v2354
    %v2356 = vcombine.low %v2086, %v2088
    %v2357 = vcombine.low %v2071, %v2085
    %v2359 = vunpack.c.l.s4 1966171168
    %v2360 = vunpack.c.0.s8 %v2359
    %v2361 = vlaneseq
    %v2362 = vshrl.u32 %v2361, 7
    %v2363 = vsub.s32 %v2360, %v2362
    %v2364 = vrot.slane %v2356, %v2363
    %v2366 = vunpack.c.l.s4 1966171168
    %v2367 = vunpack.c.0.s8 %v2366
    %v2368 = vlaneseq
    %v2369 = vshrl.u32 %v2368, 7
    %v2370 = vsub.s32 %v2367, %v2369
    %v2371 = vrot.slane %v2357, %v2370
    %v2372 = vcombine.low %v2364, %v2371
    %v2374 = vunpack.c.l.s4 1966171168
    %v2375 = vunpack.c.0.s8 %v2374
    %v2376 = vlaneseq
    %v2377 = vshrl.u32 %v2376, 7
    %v2378 = vsub.s32 %v2375, %v2377
    %v2379 = vrot.slane %v2372, %v2378
    %v2380 = vcombine.low %v2089, %v2113
    %v2381 = vcombine.low %v2127, %v2135
    %v2383 = vunpack.c.l.s4 1966171168
    %v2384 = vunpack.c.0.s8 %v2383
    %v2385 = vlaneseq
    %v2386 = vshrl.u32 %v2385, 7
    %v2387 = vsub.s32 %v2384, %v2386
    %v2388 = vrot.slane %v2380, %v2387
    %v2390 = vunpack.c.l.s4 1966171168
    %v2391 = vunpack.c.0.s8 %v2390
    %v2392 = vlaneseq
    %v2393 = vshrl.u32 %v2392, 7
    %v2394 = vsub.s32 %v2391, %v2393
    %v2395 = vrot.slane %v2381, %v2394
    %v2396 = vcombine.low %v2388, %v2395
    %v2398 = vunpack.c.l.s4 1966171168
    %v2399 = vunpack.c.0.s8 %v2398
    %v2400 = vlaneseq
    %v2401 = vshrl.u32 %v2400, 7
    %v2402 = vsub.s32 %v2399, %v2401
    %v2403 = vrot.slane %v2396, %v2402
    %v2404 = vcombine.low %v2176, %v2184
    %v2405 = vcombine.low %v2186, %v2169
    %v2407 = vunpack.c.l.s4 1966171168
    %v2408 = vunpack.c.0.s8 %v2407
    %v2409 = vlaneseq
    %v2410 = vshrl.u32 %v2409, 7
    %v2411 = vsub.s32 %v2408, %v2410
    %v2412 = vrot.slane %v2404, %v2411
    %v2414 = vunpack.c.l.s4 1966171168
    %v2415 = vunpack.c.0.s8 %v2414
    %v2416 = vlaneseq
    %v2417 = vshrl.u32 %v2416, 7
    %v2418 = vsub.s32 %v2415, %v2417
    %v2419 = vrot.slane %v2405, %v2418
    %v2420 = vcombine.low %v2412, %v2419
    %v2422 = vunpack.c.l.s4 1966171168
    %v2423 = vunpack.c.0.s8 %v2422
    %v2424 = vlaneseq
    %v2425 = vshrl.u32 %v2424, 7
    %v2426 = vsub.s32 %v2423, %v2425
    %v2427 = vrot.slane %v2420, %v2426
    %v2428 = vcombine.low %v2185, %v2187
    %v2429 = vcombine.low %v2211, %v2225
    %v2431 = vunpack.c.l.s4 1966171168
    %v2432 = vunpack.c.0.s8 %v2431
    %v2433 = vlaneseq
    %v2434 = vshrl.u32 %v2433, 7
    %v2435 = vsub.s32 %v2432, %v2434
    %v2436 = vrot.slane %v2428, %v2435
    %v2438 = vunpack.c.l.s4 1966171168
    %v2439 = vunpack.c.0.s8 %v2438
    %v2440 = vlaneseq
    %v2441 = vshrl.u32 %v2440, 7
    %v2442 = vsub.s32 %v2439, %v2441
    %v2443 = vrot.slane %v2429, %v2442
    %v2444 = vcombine.low %v2436, %v2443
    %v2446 = vunpack.c.l.s4 1966171168
    %v2447 = vunpack.c.0.s8 %v2446
    %v2448 = vlaneseq
    %v2449 = vshrl.u32 %v2448, 7
    %v2450 = vsub.s32 %v2447, %v2449
    %v2451 = vrot.slane %v2444, %v2450
    %v2452 = vcombine.low %v2235, %v2218
    %v2453 = vcombine.low %v2232, %v2234
    %v2455 = vunpack.c.l.s4 1966171168
    %v2456 = vunpack.c.0.s8 %v2455
    %v2457 = vlaneseq
    %v2458 = vshrl.u32 %v2457, 7
    %v2459 = vsub.s32 %v2456, %v2458
    %v2460 = vrot.slane %v2452, %v2459
    %v2462 = vunpack.c.l.s4 1966171168
    %v2463 = vunpack.c.0.s8 %v2462
    %v2464 = vlaneseq
    %v2465 = vshrl.u32 %v2464, 7
    %v2466 = vsub.s32 %v2463, %v2465
    %v2467 = vrot.slane %v2453, %v2466
    %v2468 = vcombine.low %v2460, %v2467
    %v2470 = vunpack.c.l.s4 1966171168
    %v2471 = vunpack.c.0.s8 %v2470
    %v2472 = vlaneseq
    %v2473 = vshrl.u32 %v2472, 7
    %v2474 = vsub.s32 %v2471, %v2473
    %v2475 = vrot.slane %v2468, %v2474
    %v2476 = vcombine.low %v2260, %v2274
    %v2477 = vcombine.low %v2282, %v2284
    %v2479 = vunpack.c.l.s4 1966171168
    %v2480 = vunpack.c.0.s8 %v2479
    %v2481 = vlaneseq
    %v2482 = vshrl.u32 %v2481, 7
    %v2483 = vsub.s32 %v2480, %v2482
    %v2484 = vrot.slane %v2476, %v2483
    %v2486 = vunpack.c.l.s4 1966171168
    %v2487 = vunpack.c.0.s8 %v2486
    %v2488 = vlaneseq
    %v2489 = vshrl.u32 %v2488, 7
    %v2490 = vsub.s32 %v2487, %v2489
    %v2491 = vrot.slane %v2477, %v2490
    %v2492 = vcombine.low %v2484, %v2491
    %v2494 = vunpack.c.l.s4 1966171168
    %v2495 = vunpack.c.0.s8 %v2494
    %v2496 = vlaneseq
    %v2497 = vshrl.u32 %v2496, 7
    %v2498 = vsub.s32 %v2495, %v2497
    %v2499 = vrot.slane %v2492, %v2498
    %v2500 = vcombine.low %v2029, %v2037
    %v2501 = vcombine.low %v2039, %v2022
    %v2503 = vunpack.c.l.s4 1966171168
    %v2504 = vunpack.c.0.s8 %v2503
    %v2505 = vlaneseq
    %v2506 = vshrl.u32 %v2505, 7
    %v2507 = vsub.s32 %v2504, %v2506
    %v2508 = vrot.slane %v2500, %v2507
    %v2510 = vunpack.c.l.s4 1966171168
    %v2511 = vunpack.c.0.s8 %v2510
    %v2512 = vlaneseq
    %v2513 = vshrl.u32 %v2512, 7
    %v2514 = vsub.s32 %v2511, %v2513
    %v2515 = vrot.slane %v2501, %v2514
    %v2516 = vcombine.low %v2508, %v2515
    %v2518 = vunpack.c.l.s4 1966171168
    %v2519 = vunpack.c.0.s8 %v2518
    %v2520 = vlaneseq
    %v2521 = vshrl.u32 %v2520, 7
    %v2522 = vsub.s32 %v2519, %v2521
    %v2523 = vrot.slane %v2516, %v2522
    %v2524 = vcombine.low %v2038, %v2040
    %v2525 = vcombine.low %v2064, %v2078
    %v2527 = vunpack.c.l.s4 1966171168
    %v2528 = vunpack.c.0.s8 %v2527
    %v2529 = vlaneseq
    %v2530 = vshrl.u32 %v2529, 7
    %v2531 = vsub.s32 %v2528, %v2530
    %v2532 = vrot.slane %v2524, %v2531
    %v2534 = vunpack.c.l.s4 1966171168
    %v2535 = vunpack.c.0.s8 %v2534
    %v2536 = vlaneseq
    %v2537 = vshrl.u32 %v2536, 7
    %v2538 = vsub.s32 %v2535, %v2537
    %v2539 = vrot.slane %v2525, %v2538
    %v2540 = vcombine.low %v2532, %v2539
    %v2542 = vunpack.c.l.s4 1966171168
    %v2543 = vunpack.c.0.s8 %v2542
    %v2544 = vlaneseq
    %v2545 = vshrl.u32 %v2544, 7
    %v2546 = vsub.s32 %v2543, %v2545
    %v2547 = vrot.slane %v2540, %v2546
    %v2548 = vcombine.low %v2088, %v2071
    %v2549 = vcombine.low %v2085, %v2087
    %v2551 = vunpack.c.l.s4 1966171168
    %v2552 = vunpack.c.0.s8 %v2551
    %v2553 = vlaneseq
    %v2554 = vshrl.u32 %v2553, 7
    %v2555 = vsub.s32 %v2552, %v2554
    %v2556 = vrot.slane %v2548, %v2555
    %v2558 = vunpack.c.l.s4 1966171168
    %v2559 = vunpack.c.0.s8 %v2558
    %v2560 = vlaneseq
    %v2561 = vshrl.u32 %v2560, 7
    %v2562 = vsub.s32 %v2559, %v2561
    %v2563 = vrot.slane %v2549, %v2562
    %v2564 = vcombine.low %v2556, %v2563
    %v2566 = vunpack.c.l.s4 1966171168
    %v2567 = vunpack.c.0.s8 %v2566
    %v2568 = vlaneseq
    %v2569 = vshrl.u32 %v2568, 7
    %v2570 = vsub.s32 %v2567, %v2569
    %v2571 = vrot.slane %v2564, %v2570
    %v2572 = vcombine.low %v2113, %v2127
    %v2573 = vcombine.low %v2135, %v2137
    %v2575 = vunpack.c.l.s4 1966171168
    %v2576 = vunpack.c.0.s8 %v2575
    %v2577 = vlaneseq
    %v2578 = vshrl.u32 %v2577, 7
    %v2579 = vsub.s32 %v2576, %v2578
    %v2580 = vrot.slane %v2572, %v2579
    %v2582 = vunpack.c.l.s4 1966171168
    %v2583 = vunpack.c.0.s8 %v2582
    %v2584 = vlaneseq
    %v2585 = vshrl.u32 %v2584, 7
    %v2586 = vsub.s32 %v2583, %v2585
    %v2587 = vrot.slane %v2573, %v2586
    %v2588 = vcombine.low %v2580, %v2587
    %v2590 = vunpack.c.l.s4 1966171168
    %v2591 = vunpack.c.0.s8 %v2590
    %v2592 = vlaneseq
    %v2593 = vshrl.u32 %v2592, 7
    %v2594 = vsub.s32 %v2591, %v2593
    %v2595 = vrot.slane %v2588, %v2594
    %v2596 = vcombine.low %v2184, %v2186
    %v2597 = vcombine.low %v2169, %v2183
    %v2599 = vunpack.c.l.s4 1966171168
    %v2600 = vunpack.c.0.s8 %v2599
    %v2601 = vlaneseq
    %v2602 = vshrl.u32 %v2601, 7
    %v2603 = vsub.s32 %v2600, %v2602
    %v2604 = vrot.slane %v2596, %v2603
    %v2606 = vunpack.c.l.s4 1966171168
    %v2607 = vunpack.c.0.s8 %v2606
    %v2608 = vlaneseq
    %v2609 = vshrl.u32 %v2608, 7
    %v2610 = vsub.s32 %v2607, %v2609
    %v2611 = vrot.slane %v2597, %v2610
    %v2612 = vcombine.low %v2604, %v2611
    %v2614 = vunpack.c.l.s4 1966171168
    %v2615 = vunpack.c.0.s8 %v2614
    %v2616 = vlaneseq
    %v2617 = vshrl.u32 %v2616, 7
    %v2618 = vsub.s32 %v2615, %v2617
    %v2619 = vrot.slane %v2612, %v2618
    %v2620 = vcombine.low %v2187, %v2211
    %v2621 = vcombine.low %v2225, %v2233
    %v2623 = vunpack.c.l.s4 1966171168
    %v2624 = vunpack.c.0.s8 %v2623
    %v2625 = vlaneseq
    %v2626 = vshrl.u32 %v2625, 7
    %v2627 = vsub.s32 %v2624, %v2626
    %v2628 = vrot.slane %v2620, %v2627
    %v2630 = vunpack.c.l.s4 1966171168
    %v2631 = vunpack.c.0.s8 %v2630
    %v2632 = vlaneseq
    %v2633 = vshrl.u32 %v2632, 7
    %v2634 = vsub.s32 %v2631, %v2633
    %v2635 = vrot.slane %v2621, %v2634
    %v2636 = vcombine.low %v2628, %v2635
    %v2638 = vunpack.c.l.s4 1966171168
    %v2639 = vunpack.c.0.s8 %v2638
    %v2640 = vlaneseq
    %v2641 = vshrl.u32 %v2640, 7
    %v2642 = vsub.s32 %v2639, %v2641
    %v2643 = vrot.slane %v2636, %v2642
    %v2644 = vcombine.low %v2218, %v2232
    %v2645 = vcombine.low %v2234, %v2236
    %v2647 = vunpack.c.l.s4 1966171168
    %v2648 = vunpack.c.0.s8 %v2647
    %v2649 = vlaneseq
    %v2650 = vshrl.u32 %v2649, 7
    %v2651 = vsub.s32 %v2648, %v2650
    %v2652 = vrot.slane %v2644, %v2651
    %v2654 = vunpack.c.l.s4 1966171168
    %v2655 = vunpack.c.0.s8 %v2654
    %v2656 = vlaneseq
    %v2657 = vshrl.u32 %v2656, 7
    %v2658 = vsub.s32 %v2655, %v2657
    %v2659 = vrot.slane %v2645, %v2658
    %v2660 = vcombine.low %v2652, %v2659
    %v2662 = vunpack.c.l.s4 1966171168
    %v2663 = vunpack.c.0.s8 %v2662
    %v2664 = vlaneseq
    %v2665 = vshrl.u32 %v2664, 7
    %v2666 = vsub.s32 %v2663, %v2665
    %v2667 = vrot.slane %v2660, %v2666
    %v2668 = vcombine.low %v2274, %v2282
    %v2669 = vcombine.low %v2284, %v2267
    %v2671 = vunpack.c.l.s4 1966171168
    %v2672 = vunpack.c.0.s8 %v2671
    %v2673 = vlaneseq
    %v2674 = vshrl.u32 %v2673, 7
    %v2675 = vsub.s32 %v2672, %v2674
    %v2676 = vrot.slane %v2668, %v2675
    %v2678 = vunpack.c.l.s4 1966171168
    %v2679 = vunpack.c.0.s8 %v2678
    %v2680 = vlaneseq
    %v2681 = vshrl.u32 %v2680, 7
    %v2682 = vsub.s32 %v2679, %v2681
    %v2683 = vrot.slane %v2669, %v2682
    %v2684 = vcombine.low %v2676, %v2683
    %v2686 = vunpack.c.l.s4 1966171168
    %v2687 = vunpack.c.0.s8 %v2686
    %v2688 = vlaneseq
    %v2689 = vshrl.u32 %v2688, 7
    %v2690 = vsub.s32 %v2687, %v2689
    %v2691 = vrot.slane %v2684, %v2690
    %v2692 = vcombine.low %v2120, %v2134
    %v2693 = vcombine.low %v2136, %v2138
    %v2695 = vunpack.c.l.s4 1966171168
    %v2696 = vunpack.c.0.s8 %v2695
    %v2697 = vlaneseq
    %v2698 = vshrl.u32 %v2697, 7
    %v2699 = vsub.s32 %v2696, %v2698
    %v2700 = vrot.slane %v2692, %v2699
    %v2702 = vunpack.c.l.s4 1966171168
    %v2703 = vunpack.c.0.s8 %v2702
    %v2704 = vlaneseq
    %v2705 = vshrl.u32 %v2704, 7
    %v2706 = vsub.s32 %v2703, %v2705
    %v2707 = vrot.slane %v2693, %v2706
    %v2708 = vcombine.low %v2700, %v2707
    %v2710 = vunpack.c.l.s4 1966171168
    %v2711 = vunpack.c.0.s8 %v2710
    %v2712 = vlaneseq
    %v2713 = vshrl.u32 %v2712, 7
    %v2714 = vsub.s32 %v2711, %v2713
    %v2715 = vrot.slane %v2708, %v2714
    %v2716 = vcombine.low %v2281, %v2283
    %v2717 = vcombine.low %v2285, %v2300
    %v2719 = vunpack.c.l.s4 1966171168
    %v2720 = vunpack.c.0.s8 %v2719
    %v2721 = vlaneseq
    %v2722 = vshrl.u32 %v2721, 7
    %v2723 = vsub.s32 %v2720, %v2722
    %v2724 = vrot.slane %v2716, %v2723
    %v2726 = vunpack.c.l.s4 1966171168
    %v2727 = vunpack.c.0.s8 %v2726
    %v2728 = vlaneseq
    %v2729 = vshrl.u32 %v2728, 7
    %v2730 = vsub.s32 %v2727, %v2729
    %v2731 = vrot.slane %v2717, %v2730
    %v2732 = vcombine.low %v2724, %v2731
    %v2734 = vunpack.c.l.s4 1966171168
    %v2735 = vunpack.c.0.s8 %v2734
    %v2736 = vlaneseq
    %v2737 = vshrl.u32 %v2736, 7
    %v2738 = vsub.s32 %v2735, %v2737
    %v2739 = vrot.slane %v2732, %v2738
    %v2740 = vcombine.low %v2134, %v2136
    %v2741 = vcombine.low %v2138, %v2162
    %v2743 = vunpack.c.l.s4 1966171168
    %v2744 = vunpack.c.0.s8 %v2743
    %v2745 = vlaneseq
    %v2746 = vshrl.u32 %v2745, 7
    %v2747 = vsub.s32 %v2744, %v2746
    %v2748 = vrot.slane %v2740, %v2747
    %v2750 = vunpack.c.l.s4 1966171168
    %v2751 = vunpack.c.0.s8 %v2750
    %v2752 = vlaneseq
    %v2753 = vshrl.u32 %v2752, 7
    %v2754 = vsub.s32 %v2751, %v2753
    %v2755 = vrot.slane %v2741, %v2754
    %v2756 = vcombine.low %v2748, %v2755
    %v2758 = vunpack.c.l.s4 1966171168
    %v2759 = vunpack.c.0.s8 %v2758
    %v2760 = vlaneseq
    %v2761 = vshrl.u32 %v2760, 7
    %v2762 = vsub.s32 %v2759, %v2761
    %v2763 = vrot.slane %v2756, %v2762
    %v2764 = vcombine.low %v2283, %v2285
    %v2765 = vcombine.low %v2300, %v2307
    %v2767 = vunpack.c.l.s4 1966171168
    %v2768 = vunpack.c.0.s8 %v2767
    %v2769 = vlaneseq
    %v2770 = vshrl.u32 %v2769, 7
    %v2771 = vsub.s32 %v2768, %v2770
    %v2772 = vrot.slane %v2764, %v2771
    %v2774 = vunpack.c.l.s4 1966171168
    %v2775 = vunpack.c.0.s8 %v2774
    %v2776 = vlaneseq
    %v2777 = vshrl.u32 %v2776, 7
    %v2778 = vsub.s32 %v2775, %v2777
    %v2779 = vrot.slane %v2765, %v2778
    %v2780 = vcombine.low %v2772, %v2779
    %v2782 = vunpack.c.l.s4 1966171168
    %v2783 = vunpack.c.0.s8 %v2782
    %v2784 = vlaneseq
    %v2785 = vshrl.u32 %v2784, 7
    %v2786 = vsub.s32 %v2783, %v2785
    %v2787 = vrot.slane %v2780, %v2786
    %v2788 = vcombine.low %v2331, %v2523
    %v2789 = vcombine.low %v2355, %v2547
    %v2790 = vcombine.low %v2379, %v2571
    %v2791 = vcombine.low %v2403, %v2595
    %v2792 = vcombine.low %v2715, %v2763
    %v2793 = vcombine.low %v2427, %v2619
    %v2794 = vcombine.low %v2451, %v2643
    %v2795 = vcombine.low %v2475, %v2667
    %v2796 = vcombine.low %v2499, %v2691
    %v2797 = vcombine.low %v2739, %v2787
    %v2798 = vcombine.low %v2788, %v2789
    %v2799 = vcombine.high %v2788, %v2789
    %v2800 = vcombine.low %v2789, %v2790
    %v2801 = vcombine.high %v2789, %v2790
    %v2802 = vcombine.low %v2790, %v2791
    %v2803 = vcombine.high %v2790, %v2791
    %v2804 = vcombine.low %v2791, %v2792
    %v2805 = vcombine.high %v2791, %v2792
    %v2806 = vcombine.low %v2793, %v2794
    %v2807 = vcombine.high %v2793, %v2794
    %v2808 = vcombine.low %v2794, %v2795
    %v2809 = vcombine.high %v2794, %v2795
    %v2810 = vcombine.low %v2795, %v2796
    %v2811 = vcombine.high %v2795, %v2796
    %v2812 = vcombine.low %v2796, %v2797
    %v2813 = vcombine.high %v2796, %v2797
    %v2830 = vpack.c.bf16 %v2802, %v2798
    %v2831 = vpack.c.bf16 %v2803, %v2799
    %v2832 = vpack.c.bf16 %v2804, %v2800
    %v2833 = vpack.c.bf16 %v2805, %v2801
    %v2834 = vpack.c.bf16 %v2810, %v2806
    %v2835 = vpack.c.bf16 %v2811, %v2807
    %v2836 = vpack.c.bf16 %v2812, %v2808
    %v2837 = vpack.c.bf16 %v2813, %v2809
    %v2838 = vlaneseq
    %v2839 = vshrl.u32 %v2838, 7
    %v2840 = vsub.s32 2, %v2839
    %v2841 = vrot.slane %v28, %v2840
    %v2906 = vunpack.c.l.b16 %v441
    %v2907 = vunpack.c.l.b16 %v442
    %v2908 = vunpack.c.l.b16 %v443
    %v2909 = vunpack.c.l.b16 %v444
    %v2910 = vunpack.c.l.b16 %v445
    %v2911 = vunpack.c.l.b16 %v446
    %v2912 = vunpack.c.l.b16 %v447
    %v2913 = vunpack.c.l.b16 %v448
    %v2914 = vunpack.c.l.b16 %v449
    %v2915 = vunpack.c.l.b16 %v450
    %v2916 = vunpack.c.l.b16 %v451
    %v2917 = vunpack.c.l.b16 %v452
    %v2918 = vunpack.c.l.b16 %v453
    %v2919 = vunpack.c.l.b16 %v454
    %v2920 = vunpack.c.l.b16 %v455
    %v2921 = vunpack.c.l.b16 %v456
    %v2922 = vunpack.c.l.b16 %v457
    %v2923 = vunpack.c.l.b16 %v458
    %v2924 = vunpack.c.l.b16 %v459
    %v2925 = vunpack.c.l.b16 %v460
    %v2926 = vunpack.c.l.b16 %v461
    %v2927 = vunpack.c.l.b16 %v462
    %v2928 = vunpack.c.l.b16 %v463
    %v2929 = vunpack.c.l.b16 %v464
    %v2930 = vunpack.c.l.b16 %v465
    %v2931 = vunpack.c.l.b16 %v466
    %v2932 = vunpack.c.l.b16 %v467
    %v2933 = vunpack.c.l.b16 %v468
    %v2934 = vunpack.c.l.b16 %v469
    %v2935 = vunpack.c.l.b16 %v470
    %v2936 = vunpack.c.l.b16 %v471
    %v2937 = vunpack.c.l.b16 %v472
    %v2938 = vunpack.c.l.b16 %v473
    %v2939 = vunpack.c.l.b16 %v474
    %v2940 = vunpack.c.l.b16 %v475
    %v2941 = vunpack.c.l.b16 %v476
    %v2942 = vunpack.c.l.b16 %v477
    %v2943 = vunpack.c.l.b16 %v478
    %v2944 = vunpack.c.l.b16 %v479
    %v2945 = vunpack.c.l.b16 %v480
    %v2946 = vunpack.c.l.b16 %v481
    %v2947 = vunpack.c.l.b16 %v482
    %v2948 = vunpack.c.l.b16 %v483
    %v2949 = vunpack.c.l.b16 %v484
    %v2950 = vunpack.c.l.b16 %v485
    %v2951 = vunpack.c.l.b16 %v486
    %v2952 = vunpack.c.l.b16 %v487
    %v2953 = vunpack.c.l.b16 %v488
    %v2954 = vunpack.c.l.b16 %v489
    %v2955 = vunpack.c.l.b16 %v490
    %v2956 = vunpack.c.l.b16 %v491
    %v2957 = vunpack.c.l.b16 %v492
    %v2958 = vunpack.c.l.b16 %v493
    %v2959 = vunpack.c.l.b16 %v494
    %v2960 = vunpack.c.l.b16 %v495
    %v2961 = vunpack.c.l.b16 %v496
    %v2962 = vunpack.c.l.b16 %v497
    %v2963 = vunpack.c.l.b16 %v498
    %v2964 = vunpack.c.l.b16 %v499
    %v2965 = vunpack.c.l.b16 %v500
    %v2966 = vunpack.c.l.b16 %v501
    %v2967 = vunpack.c.l.b16 %v502
    %v2968 = vunpack.c.l.b16 %v503
    %v2969 = vunpack.c.l.b16 %v504
    %v2970 = vpack.c.b16 %v2907, %v2906
    %v2971 = vpack.c.b16 %v2909, %v2908
    %v2972 = vpack.c.b16 %v2911, %v2910
    %v2973 = vpack.c.b16 %v2913, %v2912
    %v2974 = vpack.c.b16 %v2915, %v2914
    %v2975 = vpack.c.b16 %v2917, %v2916
    %v2976 = vpack.c.b16 %v2919, %v2918
    %v2977 = vpack.c.b16 %v2921, %v2920
    %v2978 = vpack.c.b16 %v2923, %v2922
    %v2979 = vpack.c.b16 %v2925, %v2924
    %v2980 = vpack.c.b16 %v2927, %v2926
    %v2981 = vpack.c.b16 %v2929, %v2928
    %v2982 = vpack.c.b16 %v2931, %v2930
    %v2983 = vpack.c.b16 %v2933, %v2932
    %v2984 = vpack.c.b16 %v2935, %v2934
    %v2985 = vpack.c.b16 %v2937, %v2936
    %v2986 = vpack.c.b16 %v2939, %v2938
    %v2987 = vpack.c.b16 %v2941, %v2940
    %v2988 = vpack.c.b16 %v2943, %v2942
    %v2989 = vpack.c.b16 %v2945, %v2944
    %v2990 = vpack.c.b16 %v2947, %v2946
    %v2991 = vpack.c.b16 %v2949, %v2948
    %v2992 = vpack.c.b16 %v2951, %v2950
    %v2993 = vpack.c.b16 %v2953, %v2952
    %v2994 = vpack.c.b16 %v2955, %v2954
    %v2995 = vpack.c.b16 %v2957, %v2956
    %v2996 = vpack.c.b16 %v2959, %v2958
    %v2997 = vpack.c.b16 %v2961, %v2960
    %v2998 = vpack.c.b16 %v2963, %v2962
    %v2999 = vpack.c.b16 %v2965, %v2964
    %v3000 = vpack.c.b16 %v2967, %v2966
    %v3001 = vpack.c.b16 %v2969, %v2968
    %3034 = vmatprep.subr.bf16.mxu0 0
    %3035 = vmatpush1.bf16.msra.mxu0 %v2970
    %3036 = vmatprep.subr.bf16.mxu0 0
    %3037 = vmatpush1.bf16.msra.mxu0 %v2971
    %3038 = vmatprep.subr.bf16.mxu0 0
    %3039 = vmatpush1.bf16.msra.mxu0 %v2972
    %3040 = vmatprep.subr.bf16.mxu0 0
    %3041 = vmatpush1.bf16.msra.mxu0 %v2973
    %3042 = vmatprep.subr.bf16.mxu0 0
    %3043 = vmatpush1.bf16.msra.mxu0 %v2974
    %3044 = vmatprep.subr.bf16.mxu0 0
    %3045 = vmatpush1.bf16.msra.mxu0 %v2975
    %3046 = vmatprep.subr.bf16.mxu0 0
    %3047 = vmatpush1.bf16.msra.mxu0 %v2976
    %3048 = vmatprep.subr.bf16.mxu0 0
    %3049 = vmatpush1.bf16.msra.mxu0 %v2977
    %3050 = vmatprep.subr.bf16.mxu0 0
    %3051 = vmatpush1.bf16.msra.mxu0 %v2978
    %3052 = vmatprep.subr.bf16.mxu0 0
    %3053 = vmatpush1.bf16.msra.mxu0 %v2979
    %3054 = vmatprep.subr.bf16.mxu0 0
    %3055 = vmatpush1.bf16.msra.mxu0 %v2980
    %3056 = vmatprep.subr.bf16.mxu0 0
    %3057 = vmatpush1.bf16.msra.mxu0 %v2981
    %3058 = vmatprep.subr.bf16.mxu0 0
    %3059 = vmatpush1.bf16.msra.mxu0 %v2982
    %3060 = vmatprep.subr.bf16.mxu0 0
    %3061 = vmatpush1.bf16.msra.mxu0 %v2983
    %3062 = vmatprep.subr.bf16.mxu0 0
    %3063 = vmatpush1.bf16.msra.mxu0 %v2984
    %3064 = vmatprep.subr.bf16.mxu0 0
    %3065 = vmatpush1.bf16.msra.mxu0 %v2985
    %3066 = vmatprep.mubr.bf16.mxu0 %v2831
    %3067 = vmatmul.mubr.bf16.gmra.mrb[0].mxu0 %v2830
    %v3068 = vpop.f32.mrb[0].mxu0
    %v3069 = vadd.f32 %v2841, %v3068
    %v3070 = vpop.f32.mrb[0].mxu0
    %v3071 = vpop.f32.mrb[0].mxu0
    %v3072 = vadd.f32 %v2841, %v3071
    %v3073 = vpop.f32.mrb[0].mxu0
    %3074 = vmatprep.mubr.bf16.mxu0 %v2835
    %3075 = vmatmul.mubr.bf16.gmra.mrb[0].mxu0 %v2834
    %v3076 = vpop.f32.mrb[0].mxu0
    %v3077 = vadd.f32 %v2841, %v3076
    %v3078 = vpop.f32.mrb[0].mxu0
    %v3079 = vpop.f32.mrb[0].mxu0
    %v3080 = vadd.f32 %v2841, %v3079
    %v3081 = vpop.f32.mrb[0].mxu0
    %3082 = vdwg.mxu0
    %3083 = vmatprep.subr.bf16.mxu0 0
    %3084 = vmatpush1.bf16.msra.mxu0 %v2986
    %3085 = vmatprep.subr.bf16.mxu0 0
    %3086 = vmatpush1.bf16.msra.mxu0 %v2987
    %3087 = vmatprep.subr.bf16.mxu0 0
    %3088 = vmatpush1.bf16.msra.mxu0 %v2988
    %3089 = vmatprep.subr.bf16.mxu0 0
    %3090 = vmatpush1.bf16.msra.mxu0 %v2989
    %3091 = vmatprep.subr.bf16.mxu0 0
    %3092 = vmatpush1.bf16.msra.mxu0 %v2990
    %3093 = vmatprep.subr.bf16.mxu0 0
    %3094 = vmatpush1.bf16.msra.mxu0 %v2991
    %3095 = vmatprep.subr.bf16.mxu0 0
    %3096 = vmatpush1.bf16.msra.mxu0 %v2992
    %3097 = vmatprep.subr.bf16.mxu0 0
    %3098 = vmatpush1.bf16.msra.mxu0 %v2993
    %3099 = vmatprep.subr.bf16.mxu0 0
    %3100 = vmatpush1.bf16.msra.mxu0 %v2994
    %3101 = vmatprep.subr.bf16.mxu0 0
    %3102 = vmatpush1.bf16.msra.mxu0 %v2995
    %3103 = vmatprep.subr.bf16.mxu0 0
    %3104 = vmatpush1.bf16.msra.mxu0 %v2996
    %3105 = vmatprep.subr.bf16.mxu0 0
    %3106 = vmatpush1.bf16.msra.mxu0 %v2997
    %3107 = vmatprep.subr.bf16.mxu0 0
    %3108 = vmatpush1.bf16.msra.mxu0 %v2998
    %3109 = vmatprep.subr.bf16.mxu0 0
    %3110 = vmatpush1.bf16.msra.mxu0 %v2999
    %3111 = vmatprep.subr.bf16.mxu0 0
    %3112 = vmatpush1.bf16.msra.mxu0 %v3000
    %3113 = vmatprep.subr.bf16.mxu0 0
    %3114 = vmatpush1.bf16.msra.mxu0 %v3001
    %3115 = vmatprep.mubr.bf16.mxu0 %v2833
    %3116 = vmatmul.mubr.bf16.gmra.mrb[0].mxu0 %v2832
    %v3117 = vpop.f32.mrb[0].mxu0
    %v3118 = vadd.f32 %v3069, %v3117
    %v3119 = vpop.f32.mrb[0].mxu0
    %v3120 = vpop.f32.mrb[0].mxu0
    %v3121 = vadd.f32 %v3072, %v3120
    %v3122 = vpop.f32.mrb[0].mxu0
    %3123 = vmatprep.mubr.bf16.mxu0 %v2837
    %3124 = vmatmul.mubr.bf16.gmra.mrb[0].mxu0 %v2836
    %v3125 = vpop.f32.mrb[0].mxu0
    %v3126 = vadd.f32 %v3077, %v3125
    %v3127 = vpop.f32.mrb[0].mxu0
    %v3128 = vpop.f32.mrb[0].mxu0
    %v3129 = vadd.f32 %v3080, %v3128
    %v3130 = vpop.f32.mrb[0].mxu0
    %3131 = vdwg.mxu0
    %v3132 = vmax.f32 %v3118, 0.0
    %v3133 = vmax.f32 %v3121, 0.0
    %v3134 = vmax.f32 %v3126, 0.0
    %v3135 = vmax.f32 %v3129, 0.0
    %v3140 = vcombine.low %v3132, %v3134
    %v3141 = vcombine.high %v3132, %v3134
    %v3143 = vunpack.c.l.s4 1966171168
    %v3144 = vunpack.c.0.s8 %v3143
    %v3145 = vlaneseq
    %v3146 = vshrl.u32 %v3145, 7
    %v3147 = vsub.s32 %v3144, %v3146
    %v3148 = vrot.slane %v3140, %v3147
    %v3150 = vunpack.c.l.s4 1966171168
    %v3151 = vunpack.c.0.s8 %v3150
    %v3152 = vlaneseq
    %v3153 = vshrl.u32 %v3152, 7
    %v3154 = vsub.s32 %v3151, %v3153
    %v3155 = vrot.slane %v3141, %v3154
    %v3156 = vcombine.high %v3148, %v3148
    %v3157 = vcombine.high %v3155, %v3155
    %v3159 = vunpack.c.l.s4 1966171168
    %v3160 = vunpack.c.0.s8 %v3159
    %v3161 = vlaneseq
    %v3162 = vshrl.u32 %v3161, 7
    %v3163 = vsub.s32 %v3160, %v3162
    %v3164 = vrot.slane %v3148, %v3163
    %v3166 = vunpack.c.l.s4 1966171168
    %v3167 = vunpack.c.0.s8 %v3166
    %v3168 = vlaneseq
    %v3169 = vshrl.u32 %v3168, 7
    %v3170 = vsub.s32 %v3167, %v3169
    %v3171 = vrot.slane %v3155, %v3170
    %v3173 = vunpack.c.l.s4 1966171168
    %v3174 = vunpack.c.0.s8 %v3173
    %v3175 = vlaneseq
    %v3176 = vshrl.u32 %v3175, 7
    %v3177 = vsub.s32 %v3174, %v3176
    %v3178 = vrot.slane %v3156, %v3177
    %v3180 = vunpack.c.l.s4 1966171168
    %v3181 = vunpack.c.0.s8 %v3180
    %v3182 = vlaneseq
    %v3183 = vshrl.u32 %v3182, 7
    %v3184 = vsub.s32 %v3181, %v3183
    %v3185 = vrot.slane %v3157, %v3184
    %v3186 = vcombine.high %v3164, %v3164
    %v3187 = vcombine.high %v3171, %v3171
    %v3188 = vcombine.high %v3178, %v3178
    %v3189 = vcombine.high %v3185, %v3185
    %v3190 = vcombine.low %v3133, %v3135
    %v3191 = vcombine.high %v3133, %v3135
    %v3193 = vunpack.c.l.s4 1966171168
    %v3194 = vunpack.c.0.s8 %v3193
    %v3195 = vlaneseq
    %v3196 = vshrl.u32 %v3195, 7
    %v3197 = vsub.s32 %v3194, %v3196
    %v3198 = vrot.slane %v3190, %v3197
    %v3200 = vunpack.c.l.s4 1966171168
    %v3201 = vunpack.c.0.s8 %v3200
    %v3202 = vlaneseq
    %v3203 = vshrl.u32 %v3202, 7
    %v3204 = vsub.s32 %v3201, %v3203
    %v3205 = vrot.slane %v3191, %v3204
    %v3206 = vcombine.high %v3198, %v3198
    %v3207 = vcombine.high %v3205, %v3205
    %v3209 = vunpack.c.l.s4 1966171168
    %v3210 = vunpack.c.0.s8 %v3209
    %v3211 = vlaneseq
    %v3212 = vshrl.u32 %v3211, 7
    %v3213 = vsub.s32 %v3210, %v3212
    %v3214 = vrot.slane %v3198, %v3213
    %v3216 = vunpack.c.l.s4 1966171168
    %v3217 = vunpack.c.0.s8 %v3216
    %v3218 = vlaneseq
    %v3219 = vshrl.u32 %v3218, 7
    %v3220 = vsub.s32 %v3217, %v3219
    %v3221 = vrot.slane %v3205, %v3220
    %v3223 = vunpack.c.l.s4 1966171168
    %v3224 = vunpack.c.0.s8 %v3223
    %v3225 = vlaneseq
    %v3226 = vshrl.u32 %v3225, 7
    %v3227 = vsub.s32 %v3224, %v3226
    %v3228 = vrot.slane %v3206, %v3227
    %v3230 = vunpack.c.l.s4 1966171168
    %v3231 = vunpack.c.0.s8 %v3230
    %v3232 = vlaneseq
    %v3233 = vshrl.u32 %v3232, 7
    %v3234 = vsub.s32 %v3231, %v3233
    %v3235 = vrot.slane %v3207, %v3234
    %v3236 = vcombine.high %v3214, %v3214
    %v3237 = vcombine.high %v3221, %v3221
    %v3238 = vcombine.high %v3228, %v3228
    %v3239 = vcombine.high %v3235, %v3235
    %v3256 = vpack.c.bf16 %v3164, %v3164
    %v3257 = vpack.c.bf16 %v3178, %v3178
    %v3258 = vpack.c.bf16 %v3186, %v3186
    %v3259 = vpack.c.bf16 %v3188, %v3188
    %v3260 = vpack.c.bf16 %v3171, %v3171
    %v3261 = vpack.c.bf16 %v3185, %v3185
    %v3262 = vpack.c.bf16 %v3187, %v3187
    %v3263 = vpack.c.bf16 %v3189, %v3189
    %v3264 = vpack.c.bf16 %v3214, %v3214
    %v3265 = vpack.c.bf16 %v3228, %v3228
    %v3266 = vpack.c.bf16 %v3236, %v3236
    %v3267 = vpack.c.bf16 %v3238, %v3238
    %v3268 = vpack.c.bf16 %v3221, %v3221
    %v3269 = vpack.c.bf16 %v3235, %v3235
    %v3270 = vpack.c.bf16 %v3237, %v3237
    %v3271 = vpack.c.bf16 %v3239, %v3239
    %s3272 = smul.u32 4, 256
    %s3273 = smul.u32 %s3272, 1
    %s3274 = sshll.u32 %s3273, 4
    %3275 = dma.done [#allocation3], %s3274
    %v3276 = vld [vmem:[#allocation2] sm:$0xff]
    %v3277 = vld [vmem:[#allocation2 + $0x8] sm:$0xff]
    %v3278 = vld [vmem:[#allocation2 + $0x10] sm:$0xff]
    %v3279 = vld [vmem:[#allocation2 + $0x18] sm:$0xff]
    %v3280 = vld [vmem:[#allocation2 + $0x20] sm:$0xff]
    %v3281 = vld [vmem:[#allocation2 + $0x28] sm:$0xff]
    %v3282 = vld [vmem:[#allocation2 + $0x30] sm:$0xff]
    %v3283 = vld [vmem:[#allocation2 + $0x38] sm:$0xff]
    %v3284 = vld [vmem:[#allocation2 + $0x40] sm:$0xff]
    %v3285 = vld [vmem:[#allocation2 + $0x48] sm:$0xff]
    %v3286 = vld [vmem:[#allocation2 + $0x50] sm:$0xff]
    %v3287 = vld [vmem:[#allocation2 + $0x58] sm:$0xff]
    %v3288 = vld [vmem:[#allocation2 + $0x60] sm:$0xff]
    %v3289 = vld [vmem:[#allocation2 + $0x68] sm:$0xff]
    %v3290 = vld [vmem:[#allocation2 + $0x70] sm:$0xff]
    %v3291 = vld [vmem:[#allocation2 + $0x78] sm:$0xff]
    %v3292 = vld [vmem:[#allocation2 + $0x80] sm:$0xff]
    %v3293 = vld [vmem:[#allocation2 + $0x88] sm:$0xff]
    %v3294 = vld [vmem:[#allocation2 + $0x90] sm:$0xff]
    %v3295 = vld [vmem:[#allocation2 + $0x98] sm:$0xff]
    %v3296 = vld [vmem:[#allocation2 + $0xa0] sm:$0xff]
    %v3297 = vld [vmem:[#allocation2 + $0xa8] sm:$0xff]
    %v3298 = vld [vmem:[#allocation2 + $0xb0] sm:$0xff]
    %v3299 = vld [vmem:[#allocation2 + $0xb8] sm:$0xff]
    %v3300 = vld [vmem:[#allocation2 + $0xc0] sm:$0xff]
    %v3301 = vld [vmem:[#allocation2 + $0xc8] sm:$0xff]
    %v3302 = vld [vmem:[#allocation2 + $0xd0] sm:$0xff]
    %v3303 = vld [vmem:[#allocation2 + $0xd8] sm:$0xff]
    %v3304 = vld [vmem:[#allocation2 + $0xe0] sm:$0xff]
    %v3305 = vld [vmem:[#allocation2 + $0xe8] sm:$0xff]
    %v3306 = vld [vmem:[#allocation2 + $0xf0] sm:$0xff]
    %v3307 = vld [vmem:[#allocation2 + $0xf8] sm:$0xff]
    %v3308 = vld [vmem:[#allocation2 + $0x100] sm:$0xff]
    %v3309 = vld [vmem:[#allocation2 + $0x108] sm:$0xff]
    %v3310 = vld [vmem:[#allocation2 + $0x110] sm:$0xff]
    %v3311 = vld [vmem:[#allocation2 + $0x118] sm:$0xff]
    %v3312 = vld [vmem:[#allocation2 + $0x120] sm:$0xff]
    %v3313 = vld [vmem:[#allocation2 + $0x128] sm:$0xff]
    %v3314 = vld [vmem:[#allocation2 + $0x130] sm:$0xff]
    %v3315 = vld [vmem:[#allocation2 + $0x138] sm:$0xff]
    %v3316 = vld [vmem:[#allocation2 + $0x140] sm:$0xff]
    %v3317 = vld [vmem:[#allocation2 + $0x148] sm:$0xff]
    %v3318 = vld [vmem:[#allocation2 + $0x150] sm:$0xff]
    %v3319 = vld [vmem:[#allocation2 + $0x158] sm:$0xff]
    %v3320 = vld [vmem:[#allocation2 + $0x160] sm:$0xff]
    %v3321 = vld [vmem:[#allocation2 + $0x168] sm:$0xff]
    %v3322 = vld [vmem:[#allocation2 + $0x170] sm:$0xff]
    %v3323 = vld [vmem:[#allocation2 + $0x178] sm:$0xff]
    %v3324 = vld [vmem:[#allocation2 + $0x180] sm:$0xff]
    %v3325 = vld [vmem:[#allocation2 + $0x188] sm:$0xff]
    %v3326 = vld [vmem:[#allocation2 + $0x190] sm:$0xff]
    %v3327 = vld [vmem:[#allocation2 + $0x198] sm:$0xff]
    %v3328 = vld [vmem:[#allocation2 + $0x1a0] sm:$0xff]
    %v3329 = vld [vmem:[#allocation2 + $0x1a8] sm:$0xff]
    %v3330 = vld [vmem:[#allocation2 + $0x1b0] sm:$0xff]
    %v3331 = vld [vmem:[#allocation2 + $0x1b8] sm:$0xff]
    %v3332 = vld [vmem:[#allocation2 + $0x1c0] sm:$0xff]
    %v3333 = vld [vmem:[#allocation2 + $0x1c8] sm:$0xff]
    %v3334 = vld [vmem:[#allocation2 + $0x1d0] sm:$0xff]
    %v3335 = vld [vmem:[#allocation2 + $0x1d8] sm:$0xff]
    %v3336 = vld [vmem:[#allocation2 + $0x1e0] sm:$0xff]
    %v3337 = vld [vmem:[#allocation2 + $0x1e8] sm:$0xff]
    %v3338 = vld [vmem:[#allocation2 + $0x1f0] sm:$0xff]
    %v3339 = vld [vmem:[#allocation2 + $0x1f8] sm:$0xff]
    %v3340 = vld [vmem:[#allocation2 + $0x200] sm:$0xff]
    %v3341 = vld [vmem:[#allocation2 + $0x208] sm:$0xff]
    %v3342 = vld [vmem:[#allocation2 + $0x210] sm:$0xff]
    %v3343 = vld [vmem:[#allocation2 + $0x218] sm:$0xff]
    %v3344 = vld [vmem:[#allocation2 + $0x220] sm:$0xff]
    %v3345 = vld [vmem:[#allocation2 + $0x228] sm:$0xff]
    %v3346 = vld [vmem:[#allocation2 + $0x230] sm:$0xff]
    %v3347 = vld [vmem:[#allocation2 + $0x238] sm:$0xff]
    %v3348 = vld [vmem:[#allocation2 + $0x240] sm:$0xff]
    %v3349 = vld [vmem:[#allocation2 + $0x248] sm:$0xff]
    %v3350 = vld [vmem:[#allocation2 + $0x250] sm:$0xff]
    %v3351 = vld [vmem:[#allocation2 + $0x258] sm:$0xff]
    %v3352 = vld [vmem:[#allocation2 + $0x260] sm:$0xff]
    %v3353 = vld [vmem:[#allocation2 + $0x268] sm:$0xff]
    %v3354 = vld [vmem:[#allocation2 + $0x270] sm:$0xff]
    %v3355 = vld [vmem:[#allocation2 + $0x278] sm:$0xff]
    %v3356 = vld [vmem:[#allocation2 + $0x280] sm:$0xff]
    %v3357 = vld [vmem:[#allocation2 + $0x288] sm:$0xff]
    %v3358 = vld [vmem:[#allocation2 + $0x290] sm:$0xff]
    %v3359 = vld [vmem:[#allocation2 + $0x298] sm:$0xff]
    %v3360 = vld [vmem:[#allocation2 + $0x2a0] sm:$0xff]
    %v3361 = vld [vmem:[#allocation2 + $0x2a8] sm:$0xff]
    %v3362 = vld [vmem:[#allocation2 + $0x2b0] sm:$0xff]
    %v3363 = vld [vmem:[#allocation2 + $0x2b8] sm:$0xff]
    %v3364 = vld [vmem:[#allocation2 + $0x2c0] sm:$0xff]
    %v3365 = vld [vmem:[#allocation2 + $0x2c8] sm:$0xff]
    %v3366 = vld [vmem:[#allocation2 + $0x2d0] sm:$0xff]
    %v3367 = vld [vmem:[#allocation2 + $0x2d8] sm:$0xff]
    %v3368 = vld [vmem:[#allocation2 + $0x2e0] sm:$0xff]
    %v3369 = vld [vmem:[#allocation2 + $0x2e8] sm:$0xff]
    %v3370 = vld [vmem:[#allocation2 + $0x2f0] sm:$0xff]
    %v3371 = vld [vmem:[#allocation2 + $0x2f8] sm:$0xff]
    %v3372 = vld [vmem:[#allocation2 + $0x300] sm:$0xff]
    %v3373 = vld [vmem:[#allocation2 + $0x308] sm:$0xff]
    %v3374 = vld [vmem:[#allocation2 + $0x310] sm:$0xff]
    %v3375 = vld [vmem:[#allocation2 + $0x318] sm:$0xff]
    %v3376 = vld [vmem:[#allocation2 + $0x320] sm:$0xff]
    %v3377 = vld [vmem:[#allocation2 + $0x328] sm:$0xff]
    %v3378 = vld [vmem:[#allocation2 + $0x330] sm:$0xff]
    %v3379 = vld [vmem:[#allocation2 + $0x338] sm:$0xff]
    %v3380 = vld [vmem:[#allocation2 + $0x340] sm:$0xff]
    %v3381 = vld [vmem:[#allocation2 + $0x348] sm:$0xff]
    %v3382 = vld [vmem:[#allocation2 + $0x350] sm:$0xff]
    %v3383 = vld [vmem:[#allocation2 + $0x358] sm:$0xff]
    %v3384 = vld [vmem:[#allocation2 + $0x360] sm:$0xff]
    %v3385 = vld [vmem:[#allocation2 + $0x368] sm:$0xff]
    %v3386 = vld [vmem:[#allocation2 + $0x370] sm:$0xff]
    %v3387 = vld [vmem:[#allocation2 + $0x378] sm:$0xff]
    %v3388 = vld [vmem:[#allocation2 + $0x380] sm:$0xff]
    %v3389 = vld [vmem:[#allocation2 + $0x388] sm:$0xff]
    %v3390 = vld [vmem:[#allocation2 + $0x390] sm:$0xff]
    %v3391 = vld [vmem:[#allocation2 + $0x398] sm:$0xff]
    %v3392 = vld [vmem:[#allocation2 + $0x3a0] sm:$0xff]
    %v3393 = vld [vmem:[#allocation2 + $0x3a8] sm:$0xff]
    %v3394 = vld [vmem:[#allocation2 + $0x3b0] sm:$0xff]
    %v3395 = vld [vmem:[#allocation2 + $0x3b8] sm:$0xff]
    %v3396 = vld [vmem:[#allocation2 + $0x3c0] sm:$0xff]
    %v3397 = vld [vmem:[#allocation2 + $0x3c8] sm:$0xff]
    %v3398 = vld [vmem:[#allocation2 + $0x3d0] sm:$0xff]
    %v3399 = vld [vmem:[#allocation2 + $0x3d8] sm:$0xff]
    %v3400 = vld [vmem:[#allocation2 + $0x3e0] sm:$0xff]
    %v3401 = vld [vmem:[#allocation2 + $0x3e8] sm:$0xff]
    %v3402 = vld [vmem:[#allocation2 + $0x3f0] sm:$0xff]
    %v3403 = vld [vmem:[#allocation2 + $0x3f8] sm:$0xff]
    %v3404 = vlaneseq
    %v3405 = vshrl.u32 %v3404, 7
    %v3406 = vsub.s32 3, %v3405
    %v3407 = vrot.slane %v28, %v3406
    %3408 = vmatprep.subr.bf16.mxu0 0
    %3409 = vmatpush1.bf16.msra.mxu0 %v3276
    %3410 = vmatprep.subr.bf16.mxu0 0
    %3411 = vmatpush1.bf16.msra.mxu0 %v3277
    %3412 = vmatprep.subr.bf16.mxu0 0
    %3413 = vmatpush1.bf16.msra.mxu0 %v3278
    %3414 = vmatprep.subr.bf16.mxu0 0
    %3415 = vmatpush1.bf16.msra.mxu0 %v3279
    %3416 = vmatprep.subr.bf16.mxu0 0
    %3417 = vmatpush1.bf16.msra.mxu0 %v3280
    %3418 = vmatprep.subr.bf16.mxu0 0
    %3419 = vmatpush1.bf16.msra.mxu0 %v3281
    %3420 = vmatprep.subr.bf16.mxu0 0
    %3421 = vmatpush1.bf16.msra.mxu0 %v3282
    %3422 = vmatprep.subr.bf16.mxu0 0
    %3423 = vmatpush1.bf16.msra.mxu0 %v3283
    %3424 = vmatprep.subr.bf16.mxu0 0
    %3425 = vmatpush1.bf16.msra.mxu0 %v3284
    %3426 = vmatprep.subr.bf16.mxu0 0
    %3427 = vmatpush1.bf16.msra.mxu0 %v3285
    %3428 = vmatprep.subr.bf16.mxu0 0
    %3429 = vmatpush1.bf16.msra.mxu0 %v3286
    %3430 = vmatprep.subr.bf16.mxu0 0
    %3431 = vmatpush1.bf16.msra.mxu0 %v3287
    %3432 = vmatprep.subr.bf16.mxu0 0
    %3433 = vmatpush1.bf16.msra.mxu0 %v3288
    %3434 = vmatprep.subr.bf16.mxu0 0
    %3435 = vmatpush1.bf16.msra.mxu0 %v3289
    %3436 = vmatprep.subr.bf16.mxu0 0
    %3437 = vmatpush1.bf16.msra.mxu0 %v3290
    %3438 = vmatprep.subr.bf16.mxu0 0
    %3439 = vmatpush1.bf16.msra.mxu0 %v3291
    %3440 = vmatprep.mubr.bf16.mxu0 %v3257
    %3441 = vmatmul.mubr.bf16.gmra.mrb[0].mxu0 %v3256
    %v3442 = vpop.f32.mrb[0].mxu0
    %v3443 = vadd.f32 %v3407, %v3442
    %v3444 = vpop.f32.mrb[0].mxu0
    %v3445 = vpop.f32.mrb[0].mxu0
    %v3446 = vpop.f32.mrb[0].mxu0
    %3447 = vdwg.mxu0
    %3448 = vmatprep.subr.bf16.mxu0 0
    %3449 = vmatpush1.bf16.msra.mxu0 %v3292
    %3450 = vmatprep.subr.bf16.mxu0 0
    %3451 = vmatpush1.bf16.msra.mxu0 %v3293
    %3452 = vmatprep.subr.bf16.mxu0 0
    %3453 = vmatpush1.bf16.msra.mxu0 %v3294
    %3454 = vmatprep.subr.bf16.mxu0 0
    %3455 = vmatpush1.bf16.msra.mxu0 %v3295
    %3456 = vmatprep.subr.bf16.mxu0 0
    %3457 = vmatpush1.bf16.msra.mxu0 %v3296
    %3458 = vmatprep.subr.bf16.mxu0 0
    %3459 = vmatpush1.bf16.msra.mxu0 %v3297
    %3460 = vmatprep.subr.bf16.mxu0 0
    %3461 = vmatpush1.bf16.msra.mxu0 %v3298
    %3462 = vmatprep.subr.bf16.mxu0 0
    %3463 = vmatpush1.bf16.msra.mxu0 %v3299
    %3464 = vmatprep.subr.bf16.mxu0 0
    %3465 = vmatpush1.bf16.msra.mxu0 %v3300
    %3466 = vmatprep.subr.bf16.mxu0 0
    %3467 = vmatpush1.bf16.msra.mxu0 %v3301
    %3468 = vmatprep.subr.bf16.mxu0 0
    %3469 = vmatpush1.bf16.msra.mxu0 %v3302
    %3470 = vmatprep.subr.bf16.mxu0 0
    %3471 = vmatpush1.bf16.msra.mxu0 %v3303
    %3472 = vmatprep.subr.bf16.mxu0 0
    %3473 = vmatpush1.bf16.msra.mxu0 %v3304
    %3474 = vmatprep.subr.bf16.mxu0 0
    %3475 = vmatpush1.bf16.msra.mxu0 %v3305
    %3476 = vmatprep.subr.bf16.mxu0 0
    %3477 = vmatpush1.bf16.msra.mxu0 %v3306
    %3478 = vmatprep.subr.bf16.mxu0 0
    %3479 = vmatpush1.bf16.msra.mxu0 %v3307
    %3480 = vmatprep.mubr.bf16.mxu0 %v3259
    %3481 = vmatmul.mubr.bf16.gmra.mrb[0].mxu0 %v3258
    %v3482 = vpop.f32.mrb[0].mxu0
    %v3483 = vadd.f32 %v3443, %v3482
    %v3484 = vpop.f32.mrb[0].mxu0
    %v3485 = vpop.f32.mrb[0].mxu0
    %v3486 = vpop.f32.mrb[0].mxu0
    %3487 = vdwg.mxu0
    %3488 = vmatprep.subr.bf16.mxu0 0
    %3489 = vmatpush1.bf16.msra.mxu0 %v3308
    %3490 = vmatprep.subr.bf16.mxu0 0
    %3491 = vmatpush1.bf16.msra.mxu0 %v3309
    %3492 = vmatprep.subr.bf16.mxu0 0
    %3493 = vmatpush1.bf16.msra.mxu0 %v3310
    %3494 = vmatprep.subr.bf16.mxu0 0
    %3495 = vmatpush1.bf16.msra.mxu0 %v3311
    %3496 = vmatprep.subr.bf16.mxu0 0
    %3497 = vmatpush1.bf16.msra.mxu0 %v3312
    %3498 = vmatprep.subr.bf16.mxu0 0
    %3499 = vmatpush1.bf16.msra.mxu0 %v3313
    %3500 = vmatprep.subr.bf16.mxu0 0
    %3501 = vmatpush1.bf16.msra.mxu0 %v3314
    %3502 = vmatprep.subr.bf16.mxu0 0
    %3503 = vmatpush1.bf16.msra.mxu0 %v3315
    %3504 = vmatprep.subr.bf16.mxu0 0
    %3505 = vmatpush1.bf16.msra.mxu0 %v3316
    %3506 = vmatprep.subr.bf16.mxu0 0
    %3507 = vmatpush1.bf16.msra.mxu0 %v3317
    %3508 = vmatprep.subr.bf16.mxu0 0
    %3509 = vmatpush1.bf16.msra.mxu0 %v3318
    %3510 = vmatprep.subr.bf16.mxu0 0
    %3511 = vmatpush1.bf16.msra.mxu0 %v3319
    %3512 = vmatprep.subr.bf16.mxu0 0
    %3513 = vmatpush1.bf16.msra.mxu0 %v3320
    %3514 = vmatprep.subr.bf16.mxu0 0
    %3515 = vmatpush1.bf16.msra.mxu0 %v3321
    %3516 = vmatprep.subr.bf16.mxu0 0
    %3517 = vmatpush1.bf16.msra.mxu0 %v3322
    %3518 = vmatprep.subr.bf16.mxu0 0
    %3519 = vmatpush1.bf16.msra.mxu0 %v3323
    %3520 = vmatprep.mubr.bf16.mxu0 %v3261
    %3521 = vmatmul.mubr.bf16.gmra.mrb[0].mxu0 %v3260
    %v3522 = vpop.f32.mrb[0].mxu0
    %v3523 = vadd.f32 %v3483, %v3522
    %v3524 = vpop.f32.mrb[0].mxu0
    %v3525 = vpop.f32.mrb[0].mxu0
    %v3526 = vpop.f32.mrb[0].mxu0
    %3527 = vdwg.mxu0
    %3528 = vmatprep.subr.bf16.mxu0 0
    %3529 = vmatpush1.bf16.msra.mxu0 %v3324
    %3530 = vmatprep.subr.bf16.mxu0 0
    %3531 = vmatpush1.bf16.msra.mxu0 %v3325
    %3532 = vmatprep.subr.bf16.mxu0 0
    %3533 = vmatpush1.bf16.msra.mxu0 %v3326
    %3534 = vmatprep.subr.bf16.mxu0 0
    %3535 = vmatpush1.bf16.msra.mxu0 %v3327
    %3536 = vmatprep.subr.bf16.mxu0 0
    %3537 = vmatpush1.bf16.msra.mxu0 %v3328
    %3538 = vmatprep.subr.bf16.mxu0 0
    %3539 = vmatpush1.bf16.msra.mxu0 %v3329
    %3540 = vmatprep.subr.bf16.mxu0 0
    %3541 = vmatpush1.bf16.msra.mxu0 %v3330
    %3542 = vmatprep.subr.bf16.mxu0 0
    %3543 = vmatpush1.bf16.msra.mxu0 %v3331
    %3544 = vmatprep.subr.bf16.mxu0 0
    %3545 = vmatpush1.bf16.msra.mxu0 %v3332
    %3546 = vmatprep.subr.bf16.mxu0 0
    %3547 = vmatpush1.bf16.msra.mxu0 %v3333
    %3548 = vmatprep.subr.bf16.mxu0 0
    %3549 = vmatpush1.bf16.msra.mxu0 %v3334
    %3550 = vmatprep.subr.bf16.mxu0 0
    %3551 = vmatpush1.bf16.msra.mxu0 %v3335
    %3552 = vmatprep.subr.bf16.mxu0 0
    %3553 = vmatpush1.bf16.msra.mxu0 %v3336
    %3554 = vmatprep.subr.bf16.mxu0 0
    %3555 = vmatpush1.bf16.msra.mxu0 %v3337
    %3556 = vmatprep.subr.bf16.mxu0 0
    %3557 = vmatpush1.bf16.msra.mxu0 %v3338
    %3558 = vmatprep.subr.bf16.mxu0 0
    %3559 = vmatpush1.bf16.msra.mxu0 %v3339
    %3560 = vmatprep.mubr.bf16.mxu0 %v3263
    %3561 = vmatmul.mubr.bf16.gmra.mrb[0].mxu0 %v3262
    %v3562 = vpop.f32.mrb[0].mxu0
    %v3563 = vadd.f32 %v3523, %v3562
    %v3564 = vpop.f32.mrb[0].mxu0
    %v3565 = vpop.f32.mrb[0].mxu0
    %v3566 = vpop.f32.mrb[0].mxu0
    %3567 = vdwg.mxu0
    %3568 = vmatprep.subr.bf16.mxu0 0
    %3569 = vmatpush1.bf16.msra.mxu0 %v3340
    %3570 = vmatprep.subr.bf16.mxu0 0
    %3571 = vmatpush1.bf16.msra.mxu0 %v3341
    %3572 = vmatprep.subr.bf16.mxu0 0
    %3573 = vmatpush1.bf16.msra.mxu0 %v3342
    %3574 = vmatprep.subr.bf16.mxu0 0
    %3575 = vmatpush1.bf16.msra.mxu0 %v3343
    %3576 = vmatprep.subr.bf16.mxu0 0
    %3577 = vmatpush1.bf16.msra.mxu0 %v3344
    %3578 = vmatprep.subr.bf16.mxu0 0
    %3579 = vmatpush1.bf16.msra.mxu0 %v3345
    %3580 = vmatprep.subr.bf16.mxu0 0
    %3581 = vmatpush1.bf16.msra.mxu0 %v3346
    %3582 = vmatprep.subr.bf16.mxu0 0
    %3583 = vmatpush1.bf16.msra.mxu0 %v3347
    %3584 = vmatprep.subr.bf16.mxu0 0
    %3585 = vmatpush1.bf16.msra.mxu0 %v3348
    %3586 = vmatprep.subr.bf16.mxu0 0
    %3587 = vmatpush1.bf16.msra.mxu0 %v3349
    %3588 = vmatprep.subr.bf16.mxu0 0
    %3589 = vmatpush1.bf16.msra.mxu0 %v3350
    %3590 = vmatprep.subr.bf16.mxu0 0
    %3591 = vmatpush1.bf16.msra.mxu0 %v3351
    %3592 = vmatprep.subr.bf16.mxu0 0
    %3593 = vmatpush1.bf16.msra.mxu0 %v3352
    %3594 = vmatprep.subr.bf16.mxu0 0
    %3595 = vmatpush1.bf16.msra.mxu0 %v3353
    %3596 = vmatprep.subr.bf16.mxu0 0
    %3597 = vmatpush1.bf16.msra.mxu0 %v3354
    %3598 = vmatprep.subr.bf16.mxu0 0
    %3599 = vmatpush1.bf16.msra.mxu0 %v3355
    %3600 = vmatprep.mubr.bf16.mxu0 %v3265
    %3601 = vmatmul.mubr.bf16.gmra.mrb[0].mxu0 %v3264
    %v3602 = vpop.f32.mrb[0].mxu0
    %v3603 = vadd.f32 %v3563, %v3602
    %v3604 = vpop.f32.mrb[0].mxu0
    %v3605 = vpop.f32.mrb[0].mxu0
    %v3606 = vpop.f32.mrb[0].mxu0
    %3607 = vdwg.mxu0
    %3608 = vmatprep.subr.bf16.mxu0 0
    %3609 = vmatpush1.bf16.msra.mxu0 %v3356
    %3610 = vmatprep.subr.bf16.mxu0 0
    %3611 = vmatpush1.bf16.msra.mxu0 %v3357
    %3612 = vmatprep.subr.bf16.mxu0 0
    %3613 = vmatpush1.bf16.msra.mxu0 %v3358
    %3614 = vmatprep.subr.bf16.mxu0 0
    %3615 = vmatpush1.bf16.msra.mxu0 %v3359
    %3616 = vmatprep.subr.bf16.mxu0 0
    %3617 = vmatpush1.bf16.msra.mxu0 %v3360
    %3618 = vmatprep.subr.bf16.mxu0 0
    %3619 = vmatpush1.bf16.msra.mxu0 %v3361
    %3620 = vmatprep.subr.bf16.mxu0 0
    %3621 = vmatpush1.bf16.msra.mxu0 %v3362
    %3622 = vmatprep.subr.bf16.mxu0 0
    %3623 = vmatpush1.bf16.msra.mxu0 %v3363
    %3624 = vmatprep.subr.bf16.mxu0 0
    %3625 = vmatpush1.bf16.msra.mxu0 %v3364
    %3626 = vmatprep.subr.bf16.mxu0 0
    %3627 = vmatpush1.bf16.msra.mxu0 %v3365
    %3628 = vmatprep.subr.bf16.mxu0 0
    %3629 = vmatpush1.bf16.msra.mxu0 %v3366
    %3630 = vmatprep.subr.bf16.mxu0 0
    %3631 = vmatpush1.bf16.msra.mxu0 %v3367
    %3632 = vmatprep.subr.bf16.mxu0 0
    %3633 = vmatpush1.bf16.msra.mxu0 %v3368
    %3634 = vmatprep.subr.bf16.mxu0 0
    %3635 = vmatpush1.bf16.msra.mxu0 %v3369
    %3636 = vmatprep.subr.bf16.mxu0 0
    %3637 = vmatpush1.bf16.msra.mxu0 %v3370
    %3638 = vmatprep.subr.bf16.mxu0 0
    %3639 = vmatpush1.bf16.msra.mxu0 %v3371
    %3640 = vmatprep.mubr.bf16.mxu0 %v3267
    %3641 = vmatmul.mubr.bf16.gmra.mrb[0].mxu0 %v3266
    %v3642 = vpop.f32.mrb[0].mxu0
    %v3643 = vadd.f32 %v3603, %v3642
    %v3644 = vpop.f32.mrb[0].mxu0
    %v3645 = vpop.f32.mrb[0].mxu0
    %v3646 = vpop.f32.mrb[0].mxu0
    %3647 = vdwg.mxu0
    %3648 = vmatprep.subr.bf16.mxu0 0
    %3649 = vmatpush1.bf16.msra.mxu0 %v3372
    %3650 = vmatprep.subr.bf16.mxu0 0
    %3651 = vmatpush1.bf16.msra.mxu0 %v3373
    %3652 = vmatprep.subr.bf16.mxu0 0
    %3653 = vmatpush1.bf16.msra.mxu0 %v3374
    %3654 = vmatprep.subr.bf16.mxu0 0
    %3655 = vmatpush1.bf16.msra.mxu0 %v3375
    %3656 = vmatprep.subr.bf16.mxu0 0
    %3657 = vmatpush1.bf16.msra.mxu0 %v3376
    %3658 = vmatprep.subr.bf16.mxu0 0
    %3659 = vmatpush1.bf16.msra.mxu0 %v3377
    %3660 = vmatprep.subr.bf16.mxu0 0
    %3661 = vmatpush1.bf16.msra.mxu0 %v3378
    %3662 = vmatprep.subr.bf16.mxu0 0
    %3663 = vmatpush1.bf16.msra.mxu0 %v3379
    %3664 = vmatprep.subr.bf16.mxu0 0
    %3665 = vmatpush1.bf16.msra.mxu0 %v3380
    %3666 = vmatprep.subr.bf16.mxu0 0
    %3667 = vmatpush1.bf16.msra.mxu0 %v3381
    %3668 = vmatprep.subr.bf16.mxu0 0
    %3669 = vmatpush1.bf16.msra.mxu0 %v3382
    %3670 = vmatprep.subr.bf16.mxu0 0
    %3671 = vmatpush1.bf16.msra.mxu0 %v3383
    %3672 = vmatprep.subr.bf16.mxu0 0
    %3673 = vmatpush1.bf16.msra.mxu0 %v3384
    %3674 = vmatprep.subr.bf16.mxu0 0
    %3675 = vmatpush1.bf16.msra.mxu0 %v3385
    %3676 = vmatprep.subr.bf16.mxu0 0
    %3677 = vmatpush1.bf16.msra.mxu0 %v3386
    %3678 = vmatprep.subr.bf16.mxu0 0
    %3679 = vmatpush1.bf16.msra.mxu0 %v3387
    %3680 = vmatprep.mubr.bf16.mxu0 %v3269
    %3681 = vmatmul.mubr.bf16.gmra.mrb[0].mxu0 %v3268
    %v3682 = vpop.f32.mrb[0].mxu0
    %v3683 = vadd.f32 %v3643, %v3682
    %v3684 = vpop.f32.mrb[0].mxu0
    %v3685 = vpop.f32.mrb[0].mxu0
    %v3686 = vpop.f32.mrb[0].mxu0
    %3687 = vdwg.mxu0
    %3688 = vmatprep.subr.bf16.mxu0 0
    %3689 = vmatpush1.bf16.msra.mxu0 %v3388
    %3690 = vmatprep.subr.bf16.mxu0 0
    %3691 = vmatpush1.bf16.msra.mxu0 %v3389
    %3692 = vmatprep.subr.bf16.mxu0 0
    %3693 = vmatpush1.bf16.msra.mxu0 %v3390
    %3694 = vmatprep.subr.bf16.mxu0 0
    %3695 = vmatpush1.bf16.msra.mxu0 %v3391
    %3696 = vmatprep.subr.bf16.mxu0 0
    %3697 = vmatpush1.bf16.msra.mxu0 %v3392
    %3698 = vmatprep.subr.bf16.mxu0 0
    %3699 = vmatpush1.bf16.msra.mxu0 %v3393
    %3700 = vmatprep.subr.bf16.mxu0 0
    %3701 = vmatpush1.bf16.msra.mxu0 %v3394
    %3702 = vmatprep.subr.bf16.mxu0 0
    %3703 = vmatpush1.bf16.msra.mxu0 %v3395
    %3704 = vmatprep.subr.bf16.mxu0 0
    %3705 = vmatpush1.bf16.msra.mxu0 %v3396
    %3706 = vmatprep.subr.bf16.mxu0 0
    %3707 = vmatpush1.bf16.msra.mxu0 %v3397
    %3708 = vmatprep.subr.bf16.mxu0 0
    %3709 = vmatpush1.bf16.msra.mxu0 %v3398
    %3710 = vmatprep.subr.bf16.mxu0 0
    %3711 = vmatpush1.bf16.msra.mxu0 %v3399
    %3712 = vmatprep.subr.bf16.mxu0 0
    %3713 = vmatpush1.bf16.msra.mxu0 %v3400
    %3714 = vmatprep.subr.bf16.mxu0 0
    %3715 = vmatpush1.bf16.msra.mxu0 %v3401
    %3716 = vmatprep.subr.bf16.mxu0 0
    %3717 = vmatpush1.bf16.msra.mxu0 %v3402
    %3718 = vmatprep.subr.bf16.mxu0 0
    %3719 = vmatpush1.bf16.msra.mxu0 %v3403
    %3720 = vmatprep.mubr.bf16.mxu0 %v3271
    %3721 = vmatmul.mubr.bf16.gmra.mrb[0].mxu0 %v3270
    %v3722 = vpop.f32.mrb[0].mxu0
    %v3723 = vadd.f32 %v3683, %v3722
    %v3724 = vpop.f32.mrb[0].mxu0
    %v3725 = vpop.f32.mrb[0].mxu0
    %v3726 = vpop.f32.mrb[0].mxu0
    %3727 = vdwg.mxu0
    %v3728 = vmax.f32 %v3723, 0.0
    %v3729 = vpack.c.bf16 %v3728, %v3728
    %v3730 = vlaneseq
    %v3731 = vshrl.u32 %v3730, 7
    %v3732 = vsub.s32 4, %v3731
    %v3733 = vrot.slane %v28, %v3732
    %v3750 = vunpack.c.l.b16 %v505
    %v3751 = vunpack.c.l.b16 %v506
    %v3752 = vunpack.c.l.b16 %v507
    %v3753 = vunpack.c.l.b16 %v508
    %v3754 = vunpack.c.l.b16 %v509
    %v3755 = vunpack.c.l.b16 %v510
    %v3756 = vunpack.c.l.b16 %v511
    %v3757 = vunpack.c.l.b16 %v512
    %v3758 = vunpack.c.l.b16 %v513
    %v3759 = vunpack.c.l.b16 %v514
    %v3760 = vunpack.c.l.b16 %v515
    %v3761 = vunpack.c.l.b16 %v516
    %v3762 = vunpack.c.l.b16 %v517
    %v3763 = vunpack.c.l.b16 %v518
    %v3764 = vunpack.c.l.b16 %v519
    %v3765 = vunpack.c.l.b16 %v520
    %v3766 = vpack.c.b16 %v3751, %v3750
    %v3767 = vpack.c.b16 %v3753, %v3752
    %v3768 = vpack.c.b16 %v3755, %v3754
    %v3769 = vpack.c.b16 %v3757, %v3756
    %v3770 = vpack.c.b16 %v3759, %v3758
    %v3771 = vpack.c.b16 %v3761, %v3760
    %v3772 = vpack.c.b16 %v3763, %v3762
    %v3773 = vpack.c.b16 %v3765, %v3764
    %3782 = vmatprep.subr.bf16.mxu0 0
    %3783 = vmatpush1.bf16.msra.mxu0 %v3766
    %3784 = vmatprep.subr.bf16.mxu0 0
    %3785 = vmatpush1.bf16.msra.mxu0 %v3767
    %3786 = vmatprep.subr.bf16.mxu0 0
    %3787 = vmatpush1.bf16.msra.mxu0 %v3768
    %3788 = vmatprep.subr.bf16.mxu0 0
    %3789 = vmatpush1.bf16.msra.mxu0 %v3769
    %3790 = vmatprep.subr.bf16.mxu0 0
    %3791 = vmatpush1.bf16.msra.mxu0 %v3770
    %3792 = vmatprep.subr.bf16.mxu0 0
    %3793 = vmatpush1.bf16.msra.mxu0 %v3771
    %3794 = vmatprep.subr.bf16.mxu0 0
    %3795 = vmatpush1.bf16.msra.mxu0 %v3772
    %3796 = vmatprep.subr.bf16.mxu0 0
    %3797 = vmatpush1.bf16.msra.mxu0 %v3773
    %3798 = vmatprep.subr.bf16.mxu0 0
    %3799 = vmatpush1.bf16.msra.mxu0 0
    %3800 = vmatprep.subr.bf16.mxu0 0
    %3801 = vmatpush1.bf16.msra.mxu0 0
    %3802 = vmatprep.subr.bf16.mxu0 0
    %3803 = vmatpush1.bf16.msra.mxu0 0
    %3804 = vmatprep.subr.bf16.mxu0 0
    %3805 = vmatpush1.bf16.msra.mxu0 0
    %3806 = vmatprep.subr.bf16.mxu0 0
    %3807 = vmatpush1.bf16.msra.mxu0 0
    %3808 = vmatprep.subr.bf16.mxu0 0
    %3809 = vmatpush1.bf16.msra.mxu0 0
    %3810 = vmatprep.subr.bf16.mxu0 0
    %3811 = vmatpush1.bf16.msra.mxu0 0
    %3812 = vmatprep.subr.bf16.mxu0 0
    %3813 = vmatpush1.bf16.msra.mxu0 0
    %3814 = vmatprep.mubr.bf16.mxu0 0
    %3815 = vmatmul.mubr.bf16.gmra.mrb[0].mxu0 %v3729
    %v3816 = vpop.f32.mrb[0].mxu0
    %v3817 = vadd.f32 %v3733, %v3816
    %v3818 = vpop.f32.mrb[0].mxu0
    %v3819 = vpop.f32.mrb[0].mxu0
    %v3820 = vpop.f32.mrb[0].mxu0
    %3821 = vdwg.mxu0
    %3822 = vst [vmem:[#allocation4] sm:$0x3] %v3817
    // Predicated region
    $region18: #{noisy_qnet_forward.1} parent=1 // pred_check
      _
    $region19: #{noisy_qnet_forward.1} parent=1 // pred_check_branch
      %3824 = sbr.rel (0) target = $region21
    $region20: #{noisy_qnet_forward.1} parent=1 // pred_region
      %s3826 = ssub.s32 32, 32
      %3827 = vsyncadd [#allocation5], %s3826
      %s3829 = sshll.u32 [#allocation4], 4
      %s3830 = int_to_ptr.vmem [resolvable:$true] %s3829
      %3832 = dma.vmem_to_hbm [thread:$0]  %s3830, 32, %s4, [#allocation5]
    $region21: #{noisy_qnet_forward.1} parent=1 // pred_fallthru
      _
    // Predicated region
    $region22: #{noisy_qnet_forward.1} parent=1 // pred_check
      _
    $region23: #{noisy_qnet_forward.1} parent=1 // pred_check_branch
      %3834 = sbr.rel (0) target = $region25
    $region24: #{noisy_qnet_forward.1} parent=1 // pred_region
      %3835 = dma.done [#allocation5], 32
    $region25: #{noisy_qnet_forward.1} parent=1 // pred_fallthru
      _
    %3836 = vsyncpa [#allocation5], 1
  %3837 = vsyncmov [#allocation3]
  %s3838 = vpop.sfrf %3837
  %p3839 = scmp.eq.s32.totalorder %s3838, 0
  %p3840 = pneg %p3839
  %3842 = shalt.err (%p3840)

</llo_original>
